<compile_context>
chip_gen: v7x
topology: tpu7x:2x2x1
jax: 0.10.0
libtpu: 0.0.40
codegen_flags: <defaults>
</compile_context>

<pallas_src>
import functools

import jax
import jax.numpy as jnp
from jax.experimental import pallas as pl
from jax.experimental.pallas import tpu as pltpu

NEG_SLOPE = 0.01  # F.leaky_relu default negative_slope

# Logical layer sizes (PyTorch spec) and lane-padded kernel sizes.
D_IN, D1, D2, D3, D_OUT = 100, 256, 512, 1024, 784
D_IN_PAD = 128    # 100 -> 128  (lane multiple for layer-1 K dim)
D_OUT_PAD = 896   # 784 -> 896  (lane multiple for unmasked output stores)


def _round_up(x, m):
    return ((x + m - 1) // m) * m


def _leaky_relu(v):
    # max(v, a*v) == leaky_relu(v) for 0 < a < 1; single VALU op per element.
    return jnp.maximum(v, NEG_SLOPE * v)


def _choose_tile(batch):
    """Batch tile: >=16 (bf16 packing), grid >= 2 steps when batch > 16 (v7x megacore),
    cap 512, and keep batch-padding waste small for ragged batches."""
    if batch <= 16:
        return 16
    steps = max(2, -(-batch // 512))
    tile = _round_up(-(-batch // steps), 16)
    return min(tile, 512)


def generator_kernel(x_ref, w1_ref, b1_ref, w2_ref, b2_ref, w3_ref, b3_ref,
                     w4_ref, b4_ref, o_ref, *scratch, manual_weights):
    # x_ref: (TM, 128) bf16; w_i: bf16 [in, out]; b_i: (1, out) f32; o_ref: (TM, 896) bf16.
    if manual_weights:
        # w2..w4 / b2..b4 arrive as raw HBM refs; copy into VMEM scratch and overlap the
        # transfers with layer 1-3 compute (wait right before each layer's matmul).
        w2_v, b2_v, w3_v, b3_v, w4_v, b4_v, sems = scratch
        copies = (
            pltpu.make_async_copy(w2_ref, w2_v, sems.at[0]),
            pltpu.make_async_copy(b2_ref, b2_v, sems.at[1]),
            pltpu.make_async_copy(w3_ref, w3_v, sems.at[2]),
            pltpu.make_async_copy(b3_ref, b3_v, sems.at[3]),
            pltpu.make_async_copy(w4_ref, w4_v, sems.at[4]),
            pltpu.make_async_copy(b4_ref, b4_v, sems.at[5]),
        )
        for cp in copies:
            cp.start()

    x = x_ref[...]

    # Layer 1: 128 -> 256
    h = jnp.dot(x, w1_ref[...], preferred_element_type=jnp.float32) + b1_ref[...]
    h = _leaky_relu(h).astype(jnp.bfloat16)

    # Layer 2: 256 -> 512
    if manual_weights:
        copies[0].wait()
        copies[1].wait()
        w2, b2 = w2_v[...], b2_v[...]
    else:
        w2, b2 = w2_ref[...], b2_ref[...]
    h = jnp.dot(h, w2, preferred_element_type=jnp.float32) + b2
    h = _leaky_relu(h).astype(jnp.bfloat16)

    # Layer 3: 512 -> 1024
    if manual_weights:
        copies[2].wait()
        copies[3].wait()
        w3, b3 = w3_v[...], b3_v[...]
    else:
        w3, b3 = w3_ref[...], b3_ref[...]
    h = jnp.dot(h, w3, preferred_element_type=jnp.float32) + b3
    h = _leaky_relu(h).astype(jnp.bfloat16)

    # Layer 4: 1024 -> 896 (padded 784); tanh in f32, store bf16.
    if manual_weights:
        copies[4].wait()
        copies[5].wait()
        w4, b4 = w4_v[...], b4_v[...]
    else:
        w4, b4 = w4_ref[...], b4_ref[...]
    h = jnp.dot(h, w4, preferred_element_type=jnp.float32) + b4
    o_ref[...] = jnp.tanh(h).astype(o_ref.dtype)


def init_params(key):
    """Synthetic parameters matching nn.Linear shapes, pre-padded / pre-cast for the kernel.

    Returns (kernel_params, ref_params):
      kernel_params: [w1p, b1, w2p, b2, w3p, b3, w4p, b4p] with weights bf16 [in, out]
                     (w1 K-padded to 128, w4/b4 N-padded to 896), biases f32 (1, out).
      ref_params:    unpadded f32 versions for a pure-JAX reference check.
    """
    sizes = [(D_IN, D1), (D1, D2), (D2, D3), (D3, D_OUT)]
    kernel_params, ref_params = [], []
    for fan_in, fan_out in sizes:
        kw, kb, key = jax.random.split(key, 3)
        bound = 1.0 / jnp.sqrt(fan_in)  # PyTorch Linear default init scale
        w = jax.random.uniform(kw, (fan_in, fan_out), jnp.float32, -bound, bound)
        b = jax.random.uniform(kb, (1, fan_out), jnp.float32, -bound, bound)
        ref_params.extend([w, b])

        wp, bp = w, b
        if fan_in == D_IN:      # pad K: 100 -> 128 with zero rows
            wp = jnp.zeros((D_IN_PAD, fan_out), jnp.float32).at[:fan_in, :].set(wp)
        if fan_out == D_OUT:    # pad N: 784 -> 896 with zero cols
            wp = jnp.zeros((wp.shape[0], D_OUT_PAD), jnp.float32).at[:, :fan_out].set(wp)
            bp = jnp.zeros((1, D_OUT_PAD), jnp.float32).at[:, :fan_out].set(bp)
        kernel_params.extend([wp.astype(jnp.bfloat16), bp])
    return kernel_params, ref_params


@functools.partial(jax.jit, static_argnames=("tm",))
def _generator_padded(xp, params, tm):
    """xp: (Bp, 128) bf16, Bp a multiple of tm. Returns (Bp, 896) bf16."""
    bp = xp.shape[0]
    grid_steps = bp // tm
    manual = grid_steps == 1  # single-step grid: hide the weight DMA behind compute

    w1, b1, w2, b2, w3, b3, w4, b4 = params

    def const_spec(shape):
        return pl.BlockSpec(shape, lambda i: (0, 0))

    x_spec = pl.BlockSpec((tm, D_IN_PAD), lambda i: (i, 0))
    out_spec = pl.BlockSpec((tm, D_OUT_PAD), lambda i: (i, 0))

    if manual:
        # Big weights stay in HBM; the kernel DMAs them into VMEM scratch itself so the
        # transfer overlaps layer 1-3 compute. Safe: grid has exactly one step.
        big_specs = [pl.BlockSpec(memory_space=pl.ANY)] * 6
        scratch = [
            pltpu.VMEM(w2.shape, w2.dtype), pltpu.VMEM(b2.shape, b2.dtype),
            pltpu.VMEM(w3.shape, w3.dtype), pltpu.VMEM(b3.shape, b3.dtype),
            pltpu.VMEM(w4.shape, w4.dtype), pltpu.VMEM(b4.shape, b4.dtype),
            pltpu.SemaphoreType.DMA((6,)),
        ]
        semantics = ("arbitrary",)
    else:
        # Multi-step grid: constant-index BlockSpecs -> weights DMA'd once per core and
        # stay resident; cost amortizes over grid steps and is megacore-correct.
        big_specs = [const_spec(w2.shape), const_spec(b2.shape),
                     const_spec(w3.shape), const_spec(b3.shape),
                     const_spec(w4.shape), const_spec(b4.shape)]
        scratch = []
        semantics = ("parallel",)

    in_specs = [x_spec, const_spec(w1.shape), const_spec(b1.shape)] + big_specs

    flops = 2 * bp * (D_IN_PAD * D1 + D1 * D2 + D2 * D3 + D3 * D_OUT_PAD)
    param_bytes = sum(int(p.size) * p.dtype.itemsize for p in params)
    bytes_accessed = int(xp.size) * 2 + bp * D_OUT_PAD * 2 + param_bytes

    kernel = functools.partial(generator_kernel, manual_weights=manual)

    return pl.pallas_call(
        kernel,
        grid=(grid_steps,),
        in_specs=in_specs,
        out_specs=out_spec,
        out_shape=jax.ShapeDtypeStruct((bp, D_OUT_PAD), jnp.bfloat16),
        scratch_shapes=scratch,
        compiler_params=pltpu.CompilerParams(
            dimension_semantics=semantics,
            vmem_limit_bytes=40 * 1024 * 1024,
        ),
        cost_estimate=pl.CostEstimate(
            flops=flops,
            transcendentals=bp * D_OUT_PAD,
            bytes_accessed=bytes_accessed,
        ),
    )(xp, *params)


def generator_forward(x, kernel_params):
    # x.view(-1, 100)
    x2d = x.reshape(-1, D_IN)
    batch = x2d.shape[0]

    tm = _choose_tile(batch)
    bp = _round_up(batch, tm)

    # Single-shot bf16 cast + pad (batch -> bp rows, K 100 -> 128 lanes).
    xp = jnp.pad(x2d.astype(jnp.bfloat16), ((0, bp - batch), (0, D_IN_PAD - D_IN)))

    out = _generator_padded(xp, tuple(kernel_params), tm=tm)

    # Crop padding, up-cast the bf16 kernel output to f32, then x.view(-1, 1, 28, 28).
    return out[:batch, :D_OUT].astype(jnp.float32).reshape(-1, 1, 28, 28)


def _reference_forward(x, ref_params):
    """Pure-JAX f32 reference for correctness checking."""
    w1, b1, w2, b2, w3, b3, w4, b4 = ref_params
    def lrelu(v):
        return jnp.where(v > 0, v, NEG_SLOPE * v)
    h = x.reshape(-1, D_IN).astype(jnp.float32)
    h = lrelu(h @ w1 + b1)
    h = lrelu(h @ w2 + b2)
    h = lrelu(h @ w3 + b3)
    h = jnp.tanh(h @ w4 + b4)
    return h.reshape(-1, 1, 28, 28)


if __name__ == "__main__":
    key = jax.random.PRNGKey(0)
    k_params, k_noise = jax.random.split(key)

    kernel_params, ref_params = init_params(k_params)

    # batch=2  -> grid=1  (manual overlapped weight DMA path)
    # batch=40 -> grid=2  (resident-weight, megacore-parallel path)
    for batch in (2, 40):
        z = jax.random.normal(jax.random.fold_in(k_noise, batch), (batch, 100),
                              dtype=jnp.float32)

        img = generator_forward(z, kernel_params)
        jax.block_until_ready(img)

        assert img.shape == (batch, 1, 28, 28), img.shape
        assert img.dtype == jnp.float32
        # tanh output must be in [-1, 1]
        assert bool(jnp.all(jnp.abs(img) <= 1.0 + 1e-6))

        # Compare against f32 reference with bf16-appropriate tolerance.
        ref = _reference_forward(z, ref_params)
        max_err = float(jnp.max(jnp.abs(img - ref)))
        assert max_err <= 5e-2, max_err

    print("KERNEL_OK")
</pallas_src>

<mosaic_0001>
module attributes {stable_mosaic.version = 11 : i64} {
  func.func @generator_kernel(%arg0: i32, %arg1: memref<16x128xbf16, #tpu.memory_space<vmem>>, %arg2: memref<128x256xbf16, #tpu.memory_space<vmem>>, %arg3: memref<1x256xf32, #tpu.memory_space<vmem>>, %arg4: memref<256x512xbf16, #tpu.memory_space<any>>, %arg5: memref<1x512xf32, #tpu.memory_space<any>>, %arg6: memref<512x1024xbf16, #tpu.memory_space<any>>, %arg7: memref<1x1024xf32, #tpu.memory_space<any>>, %arg8: memref<1024x896xbf16, #tpu.memory_space<any>>, %arg9: memref<1x896xf32, #tpu.memory_space<any>>, %arg10: memref<16x896xbf16, #tpu.memory_space<vmem>>, %arg11: memref<256x512xbf16, #tpu.memory_space<vmem>>, %arg12: memref<1x512xf32, #tpu.memory_space<vmem>>, %arg13: memref<512x1024xbf16, #tpu.memory_space<vmem>>, %arg14: memref<1x1024xf32, #tpu.memory_space<vmem>>, %arg15: memref<1024x896xbf16, #tpu.memory_space<vmem>>, %arg16: memref<1x896xf32, #tpu.memory_space<vmem>>, %arg17: memref<6x!tpu.dma_semaphore, #tpu.memory_space<semaphore_mem>>) attributes {dimension_semantics = [#tpu.dimension_semantics<arbitrary>], iteration_bounds = array<i64: 1>, scalar_prefetch = 0 : i64, scratch_operands = 7 : i64, tpu.core_type = #tpu.core_type<tc>, window_params = [{transform_indices = @transform_0, window_bounds = array<i64: 16, 128>}, {pipeline_mode = #tpu.pipeline_mode<synchronous>, transform_indices = @transform_1, window_bounds = array<i64: 128, 256>}, {pipeline_mode = #tpu.pipeline_mode<synchronous>, transform_indices = @transform_2, window_bounds = array<i64: 1, 256>}, {}, {}, {}, {}, {}, {}, {transform_indices = @transform_9, window_bounds = array<i64: 16, 896>}]} {
    %c0_i32 = arith.constant 0 : i32
    %0 = tpu.memref_slice %arg17[%c0_i32] : memref<6x!tpu.dma_semaphore, #tpu.memory_space<semaphore_mem>> -> memref<1x!tpu.dma_semaphore, #tpu.memory_space<semaphore_mem>>
    %1 = tpu.memref_squeeze %0 : memref<1x!tpu.dma_semaphore, #tpu.memory_space<semaphore_mem>> -> memref<!tpu.dma_semaphore, #tpu.memory_space<semaphore_mem>>
    tpu.enqueue_dma source(%arg4 : memref<256x512xbf16, #tpu.memory_space<any>>) target(%arg11 : memref<256x512xbf16, #tpu.memory_space<vmem>>) target_semaphore(%1 : memref<!tpu.dma_semaphore, #tpu.memory_space<semaphore_mem>>)
    %c1_i32 = arith.constant 1 : i32
    %2 = tpu.memref_slice %arg17[%c1_i32] : memref<6x!tpu.dma_semaphore, #tpu.memory_space<semaphore_mem>> -> memref<1x!tpu.dma_semaphore, #tpu.memory_space<semaphore_mem>>
    %3 = tpu.memref_squeeze %2 : memref<1x!tpu.dma_semaphore, #tpu.memory_space<semaphore_mem>> -> memref<!tpu.dma_semaphore, #tpu.memory_space<semaphore_mem>>
    tpu.enqueue_dma source(%arg5 : memref<1x512xf32, #tpu.memory_space<any>>) target(%arg12 : memref<1x512xf32, #tpu.memory_space<vmem>>) target_semaphore(%3 : memref<!tpu.dma_semaphore, #tpu.memory_space<semaphore_mem>>)
    %c2_i32 = arith.constant 2 : i32
    %4 = tpu.memref_slice %arg17[%c2_i32] : memref<6x!tpu.dma_semaphore, #tpu.memory_space<semaphore_mem>> -> memref<1x!tpu.dma_semaphore, #tpu.memory_space<semaphore_mem>>
    %5 = tpu.memref_squeeze %4 : memref<1x!tpu.dma_semaphore, #tpu.memory_space<semaphore_mem>> -> memref<!tpu.dma_semaphore, #tpu.memory_space<semaphore_mem>>
    tpu.enqueue_dma source(%arg6 : memref<512x1024xbf16, #tpu.memory_space<any>>) target(%arg13 : memref<512x1024xbf16, #tpu.memory_space<vmem>>) target_semaphore(%5 : memref<!tpu.dma_semaphore, #tpu.memory_space<semaphore_mem>>)
    %c3_i32 = arith.constant 3 : i32
    %6 = tpu.memref_slice %arg17[%c3_i32] : memref<6x!tpu.dma_semaphore, #tpu.memory_space<semaphore_mem>> -> memref<1x!tpu.dma_semaphore, #tpu.memory_space<semaphore_mem>>
    %7 = tpu.memref_squeeze %6 : memref<1x!tpu.dma_semaphore, #tpu.memory_space<semaphore_mem>> -> memref<!tpu.dma_semaphore, #tpu.memory_space<semaphore_mem>>
    tpu.enqueue_dma source(%arg7 : memref<1x1024xf32, #tpu.memory_space<any>>) target(%arg14 : memref<1x1024xf32, #tpu.memory_space<vmem>>) target_semaphore(%7 : memref<!tpu.dma_semaphore, #tpu.memory_space<semaphore_mem>>)
    %c4_i32 = arith.constant 4 : i32
    %8 = tpu.memref_slice %arg17[%c4_i32] : memref<6x!tpu.dma_semaphore, #tpu.memory_space<semaphore_mem>> -> memref<1x!tpu.dma_semaphore, #tpu.memory_space<semaphore_mem>>
    %9 = tpu.memref_squeeze %8 : memref<1x!tpu.dma_semaphore, #tpu.memory_space<semaphore_mem>> -> memref<!tpu.dma_semaphore, #tpu.memory_space<semaphore_mem>>
    tpu.enqueue_dma source(%arg8 : memref<1024x896xbf16, #tpu.memory_space<any>>) target(%arg15 : memref<1024x896xbf16, #tpu.memory_space<vmem>>) target_semaphore(%9 : memref<!tpu.dma_semaphore, #tpu.memory_space<semaphore_mem>>)
    %c5_i32 = arith.constant 5 : i32
    %10 = tpu.memref_slice %arg17[%c5_i32] : memref<6x!tpu.dma_semaphore, #tpu.memory_space<semaphore_mem>> -> memref<1x!tpu.dma_semaphore, #tpu.memory_space<semaphore_mem>>
    %11 = tpu.memref_squeeze %10 : memref<1x!tpu.dma_semaphore, #tpu.memory_space<semaphore_mem>> -> memref<!tpu.dma_semaphore, #tpu.memory_space<semaphore_mem>>
    tpu.enqueue_dma source(%arg9 : memref<1x896xf32, #tpu.memory_space<any>>) target(%arg16 : memref<1x896xf32, #tpu.memory_space<vmem>>) target_semaphore(%11 : memref<!tpu.dma_semaphore, #tpu.memory_space<semaphore_mem>>)
    %c0 = arith.constant 0 : index
    %c0_0 = arith.constant 0 : index
    %12 = vector.load %arg1[%c0, %c0_0] : memref<16x128xbf16, #tpu.memory_space<vmem>>, vector<16x128xbf16>
    %c0_1 = arith.constant 0 : index
    %c0_2 = arith.constant 0 : index
    %13 = vector.load %arg2[%c0_1, %c0_2] : memref<128x256xbf16, #tpu.memory_space<vmem>>, vector<128x256xbf16>
    %cst = arith.constant dense<0.000000e+00> : vector<16x256xf32>
    %14 = tpu.matmul %12, %13, %cst {dimension_numbers = #tpu.dot_dimension_numbers<[1], [0], [0], [1], [0, 0, 1, 1], [], []>} : vector<16x128xbf16>, vector<128x256xbf16>, vector<16x256xf32> -> vector<16x256xf32>
    %c0_3 = arith.constant 0 : index
    %c0_4 = arith.constant 0 : index
    %15 = vector.load %arg3[%c0_3, %c0_4] : memref<1x256xf32, #tpu.memory_space<vmem>>, vector<1x256xf32>
    %16 = vector.broadcast %15 : vector<1x256xf32> to vector<16x256xf32>
    %17 = arith.addf %14, %16 : vector<16x256xf32>
    %cst_5 = arith.constant 0.00999999977 : f32
    %18 = vector.broadcast %cst_5 : f32 to vector<16x256xf32>
    %19 = arith.mulf %18, %17 : vector<16x256xf32>
    %20 = arith.maximumf %17, %19 : vector<16x256xf32>
    %21 = arith.truncf %20 : vector<16x256xf32> to vector<16x256xbf16>
    %c0_i32_6 = arith.constant 0 : i32
    %22 = tpu.memref_slice %arg17[%c0_i32_6] : memref<6x!tpu.dma_semaphore, #tpu.memory_space<semaphore_mem>> -> memref<1x!tpu.dma_semaphore, #tpu.memory_space<semaphore_mem>>
    %23 = tpu.memref_squeeze %22 : memref<1x!tpu.dma_semaphore, #tpu.memory_space<semaphore_mem>> -> memref<!tpu.dma_semaphore, #tpu.memory_space<semaphore_mem>>
    tpu.wait_dma2 semaphore(%23 : memref<!tpu.dma_semaphore, #tpu.memory_space<semaphore_mem>>) src(%arg4 : memref<256x512xbf16, #tpu.memory_space<any>>) dst(%arg11 : memref<256x512xbf16, #tpu.memory_space<vmem>>)
    %c1_i32_7 = arith.constant 1 : i32
    %24 = tpu.memref_slice %arg17[%c1_i32_7] : memref<6x!tpu.dma_semaphore, #tpu.memory_space<semaphore_mem>> -> memref<1x!tpu.dma_semaphore, #tpu.memory_space<semaphore_mem>>
    %25 = tpu.memref_squeeze %24 : memref<1x!tpu.dma_semaphore, #tpu.memory_space<semaphore_mem>> -> memref<!tpu.dma_semaphore, #tpu.memory_space<semaphore_mem>>
    tpu.wait_dma2 semaphore(%25 : memref<!tpu.dma_semaphore, #tpu.memory_space<semaphore_mem>>) src(%arg5 : memref<1x512xf32, #tpu.memory_space<any>>) dst(%arg12 : memref<1x512xf32, #tpu.memory_space<vmem>>)
    %c0_8 = arith.constant 0 : index
    %c0_9 = arith.constant 0 : index
    %26 = vector.load %arg11[%c0_8, %c0_9] : memref<256x512xbf16, #tpu.memory_space<vmem>>, vector<256x512xbf16>
    %c0_10 = arith.constant 0 : index
    %c0_11 = arith.constant 0 : index
    %27 = vector.load %arg12[%c0_10, %c0_11] : memref<1x512xf32, #tpu.memory_space<vmem>>, vector<1x512xf32>
    %cst_12 = arith.constant dense<0.000000e+00> : vector<16x512xf32>
    %28 = tpu.matmul %21, %26, %cst_12 {dimension_numbers = #tpu.dot_dimension_numbers<[1], [0], [0], [1], [0, 0, 1, 1], [], []>} : vector<16x256xbf16>, vector<256x512xbf16>, vector<16x512xf32> -> vector<16x512xf32>
    %29 = vector.broadcast %27 : vector<1x512xf32> to vector<16x512xf32>
    %30 = arith.addf %28, %29 : vector<16x512xf32>
    %cst_13 = arith.constant 0.00999999977 : f32
    %31 = vector.broadcast %cst_13 : f32 to vector<16x512xf32>
    %32 = arith.mulf %31, %30 : vector<16x512xf32>
    %33 = arith.maximumf %30, %32 : vector<16x512xf32>
    %34 = arith.truncf %33 : vector<16x512xf32> to vector<16x512xbf16>
    %c2_i32_14 = arith.constant 2 : i32
    %35 = tpu.memref_slice %arg17[%c2_i32_14] : memref<6x!tpu.dma_semaphore, #tpu.memory_space<semaphore_mem>> -> memref<1x!tpu.dma_semaphore, #tpu.memory_space<semaphore_mem>>
    %36 = tpu.memref_squeeze %35 : memref<1x!tpu.dma_semaphore, #tpu.memory_space<semaphore_mem>> -> memref<!tpu.dma_semaphore, #tpu.memory_space<semaphore_mem>>
    tpu.wait_dma2 semaphore(%36 : memref<!tpu.dma_semaphore, #tpu.memory_space<semaphore_mem>>) src(%arg6 : memref<512x1024xbf16, #tpu.memory_space<any>>) dst(%arg13 : memref<512x1024xbf16, #tpu.memory_space<vmem>>)
    %c3_i32_15 = arith.constant 3 : i32
    %37 = tpu.memref_slice %arg17[%c3_i32_15] : memref<6x!tpu.dma_semaphore, #tpu.memory_space<semaphore_mem>> -> memref<1x!tpu.dma_semaphore, #tpu.memory_space<semaphore_mem>>
    %38 = tpu.memref_squeeze %37 : memref<1x!tpu.dma_semaphore, #tpu.memory_space<semaphore_mem>> -> memref<!tpu.dma_semaphore, #tpu.memory_space<semaphore_mem>>
    tpu.wait_dma2 semaphore(%38 : memref<!tpu.dma_semaphore, #tpu.memory_space<semaphore_mem>>) src(%arg7 : memref<1x1024xf32, #tpu.memory_space<any>>) dst(%arg14 : memref<1x1024xf32, #tpu.memory_space<vmem>>)
    %c0_16 = arith.constant 0 : index
    %c0_17 = arith.constant 0 : index
    %39 = vector.load %arg13[%c0_16, %c0_17] : memref<512x1024xbf16, #tpu.memory_space<vmem>>, vector<512x1024xbf16>
    %c0_18 = arith.constant 0 : index
    %c0_19 = arith.constant 0 : index
    %40 = vector.load %arg14[%c0_18, %c0_19] : memref<1x1024xf32, #tpu.memory_space<vmem>>, vector<1x1024xf32>
    %cst_20 = arith.constant dense<0.000000e+00> : vector<16x1024xf32>
    %41 = tpu.matmul %34, %39, %cst_20 {dimension_numbers = #tpu.dot_dimension_numbers<[1], [0], [0], [1], [0, 0, 1, 1], [], []>} : vector<16x512xbf16>, vector<512x1024xbf16>, vector<16x1024xf32> -> vector<16x1024xf32>
    %42 = vector.broadcast %40 : vector<1x1024xf32> to vector<16x1024xf32>
    %43 = arith.addf %41, %42 : vector<16x1024xf32>
    %cst_21 = arith.constant 0.00999999977 : f32
    %44 = vector.broadcast %cst_21 : f32 to vector<16x1024xf32>
    %45 = arith.mulf %44, %43 : vector<16x1024xf32>
    %46 = arith.maximumf %43, %45 : vector<16x1024xf32>
    %47 = arith.truncf %46 : vector<16x1024xf32> to vector<16x1024xbf16>
    %c4_i32_22 = arith.constant 4 : i32
    %48 = tpu.memref_slice %arg17[%c4_i32_22] : memref<6x!tpu.dma_semaphore, #tpu.memory_space<semaphore_mem>> -> memref<1x!tpu.dma_semaphore, #tpu.memory_space<semaphore_mem>>
    %49 = tpu.memref_squeeze %48 : memref<1x!tpu.dma_semaphore, #tpu.memory_space<semaphore_mem>> -> memref<!tpu.dma_semaphore, #tpu.memory_space<semaphore_mem>>
    tpu.wait_dma2 semaphore(%49 : memref<!tpu.dma_semaphore, #tpu.memory_space<semaphore_mem>>) src(%arg8 : memref<1024x896xbf16, #tpu.memory_space<any>>) dst(%arg15 : memref<1024x896xbf16, #tpu.memory_space<vmem>>)
    %c5_i32_23 = arith.constant 5 : i32
    %50 = tpu.memref_slice %arg17[%c5_i32_23] : memref<6x!tpu.dma_semaphore, #tpu.memory_space<semaphore_mem>> -> memref<1x!tpu.dma_semaphore, #tpu.memory_space<semaphore_mem>>
    %51 = tpu.memref_squeeze %50 : memref<1x!tpu.dma_semaphore, #tpu.memory_space<semaphore_mem>> -> memref<!tpu.dma_semaphore, #tpu.memory_space<semaphore_mem>>
    tpu.wait_dma2 semaphore(%51 : memref<!tpu.dma_semaphore, #tpu.memory_space<semaphore_mem>>) src(%arg9 : memref<1x896xf32, #tpu.memory_space<any>>) dst(%arg16 : memref<1x896xf32, #tpu.memory_space<vmem>>)
    %c0_24 = arith.constant 0 : index
    %c0_25 = arith.constant 0 : index
    %52 = vector.load %arg15[%c0_24, %c0_25] : memref<1024x896xbf16, #tpu.memory_space<vmem>>, vector<1024x896xbf16>
    %c0_26 = arith.constant 0 : index
    %c0_27 = arith.constant 0 : index
    %53 = vector.load %arg16[%c0_26, %c0_27] : memref<1x896xf32, #tpu.memory_space<vmem>>, vector<1x896xf32>
    %cst_28 = arith.constant dense<0.000000e+00> : vector<16x896xf32>
    %54 = tpu.matmul %47, %52, %cst_28 {dimension_numbers = #tpu.dot_dimension_numbers<[1], [0], [0], [1], [0, 0, 1, 1], [], []>} : vector<16x1024xbf16>, vector<1024x896xbf16>, vector<16x896xf32> -> vector<16x896xf32>
    %55 = vector.broadcast %53 : vector<1x896xf32> to vector<16x896xf32>
    %56 = arith.addf %54, %55 : vector<16x896xf32>
    %57 = math.tanh %56 : vector<16x896xf32>
    %58 = arith.truncf %57 : vector<16x896xf32> to vector<16x896xbf16>
    %c0_29 = arith.constant 0 : index
    %c0_30 = arith.constant 0 : index
    %59 = vector.load %arg10[%c0_29, %c0_30] : memref<16x896xbf16, #tpu.memory_space<vmem>>, vector<16x896xbf16>
    tpu.vector_store %arg10[%c0_29, %c0_30], %58 {strides = array<i32>} : memref<16x896xbf16, #tpu.memory_space<vmem>>, vector<16x896xbf16>,
    return
  }
  func.func @transform_0(%arg0: i32) -> (i32, i32) {
    %c0_i32 = arith.constant 0 : i32
    %c0_i32_0 = arith.constant 0 : i32
    return %arg0, %c0_i32 : i32, i32
  }
  func.func @transform_1(%arg0: i32) -> (i32, i32) {
    %c0_i32 = arith.constant 0 : i32
    %c0_i32_0 = arith.constant 0 : i32
    %c0_i32_1 = arith.constant 0 : i32
    return %c0_i32, %c0_i32_0 : i32, i32
  }
  func.func @transform_2(%arg0: i32) -> (i32, i32) {
    %c0_i32 = arith.constant 0 : i32
    %c0_i32_0 = arith.constant 0 : i32
    %c0_i32_1 = arith.constant 0 : i32
    return %c0_i32, %c0_i32_0 : i32, i32
  }
  func.func @transform_9(%arg0: i32) -> (i32, i32) {
    %c0_i32 = arith.constant 0 : i32
    %c0_i32_0 = arith.constant 0 : i32
    return %arg0, %c0_i32 : i32, i32
  }
}

</mosaic_0001>

<llo_original>
// kernel: _generator_padded.1
$region0: #{_generator_padded.1}
  #allocation0 [shape = 'u32[]', space=smem, size = 0x4, offset = 0x4, fixed_abs, tag = 'smem constant byte address 0x4 - core index']
  #allocation1 [shape = 'u32[144,128]{1,0:T(1,128)}', space=vmem, size = 0x12000, scoped, tag = 'internal scratch']
  #allocation2 [shape = 'bf16[256,512]{1,0:T(16,128)(2,1)}', space=vmem, size = 0x40000, scoped, tag = 'scratch operand']
  #allocation3 [shape = 'f32[1,512]{1,0:T(1,128)}', space=vmem, size = 0x800, scoped, tag = 'scratch operand']
  #allocation4 [shape = 'bf16[512,1024]{1,0:T(16,128)(2,1)}', space=vmem, size = 0x100000, scoped, tag = 'scratch operand']
  #allocation5 [shape = 'f32[1,1024]{1,0:T(1,128)}', space=vmem, size = 0x1000, scoped, tag = 'scratch operand']
  #allocation6 [shape = 'bf16[1024,896]{1,0:T(16,128)(2,1)}', space=vmem, size = 0x1c0000, scoped, tag = 'scratch operand']
  #allocation7 [shape = 'f32[1,896]{1,0:T(1,128)}', space=vmem, size = 0xe00, scoped, tag = 'scratch operand']
  #allocation8 [shape = 's32[6]{0}', space=sflag, size = 0x18, scoped, tag = 'scratch operand']
  #allocation16 [shape = 's32[]', space=sflag, size = 0x4, offset = 0, fixed_abs, tag = 'sflag constant byte address 0x0 - dummy sync flag']
  #allocation18 [shape = 's32[]', space=sflag, size = 0x4, offset = 0, fixed_abs, tag = 'sflag constant byte address 0x0 - dummy sync flag']
  #allocation19 [shape = 's32[]', space=sflag, size = 0x4, offset = 0, fixed_abs, tag = 'sflag constant byte address 0x0 - dummy sync flag']
  #allocation20 [shape = 'u32[]', space=smem, size = 0x4, offset = 0x44, fixed_abs, tag = 'smem constant byte address 0x44 - assertion arg 0']
  #allocation21 [shape = 'u32[]', space=smem, size = 0x4, offset = 0x48, fixed_abs, tag = 'smem constant byte address 0x48 - assertion arg 1']
  #allocation22 [shape = 's32[]', space=sflag, size = 0x4, offset = 0, fixed_abs, tag = 'sflag constant byte address 0x0 - dummy sync flag']
  #allocation24 [shape = 's32[]', space=sflag, size = 0x4, offset = 0, fixed_abs, tag = 'sflag constant byte address 0x0 - dummy sync flag']
  #allocation25 [shape = 's32[]', space=sflag, size = 0x4, offset = 0, fixed_abs, tag = 'sflag constant byte address 0x0 - dummy sync flag']
  #allocation26 [shape = 's32[]', space=sflag, size = 0x4, offset = 0, fixed_abs, tag = 'sflag constant byte address 0x0 - dummy sync flag']
  #allocation28 [shape = 's32[]', space=sflag, size = 0x4, offset = 0, fixed_abs, tag = 'sflag constant byte address 0x0 - dummy sync flag']
  #allocation29 [shape = 's32[]', space=sflag, size = 0x4, offset = 0, fixed_abs, tag = 'sflag constant byte address 0x0 - dummy sync flag']
  %s0 = inlined_call_operand.hbm [shape: bf16[16,128], index: 0, kind: input, shape index: {}]
  %s1 = inlined_call_operand.hbm [shape: bf16[128,256], index: 1, kind: input, shape index: {}]
  %s2 = inlined_call_operand.hbm [shape: f32[1,256], index: 2, kind: input, shape index: {}]
  %s3 = inlined_call_operand.hbm [shape: bf16[256,512], index: 3, kind: input, shape index: {}]
  %s4 = inlined_call_operand.hbm [shape: f32[1,512], index: 4, kind: input, shape index: {}]
  %s5 = inlined_call_operand.hbm [shape: bf16[512,1024], index: 5, kind: input, shape index: {}]
  %s6 = inlined_call_operand.hbm [shape: f32[1,1024], index: 6, kind: input, shape index: {}]
  %s7 = inlined_call_operand.hbm [shape: bf16[1024,896], index: 7, kind: input, shape index: {}]
  %s8 = inlined_call_operand.hbm [shape: f32[1,896], index: 8, kind: input, shape index: {}]
  %s9 = inlined_call_operand.hbm [shape: bf16[16,896], index: 9, kind: output, shape index: {}]
  %s10 = sld [smem:[#allocation0]]
  $region46: #{_generator_padded.1} parent=0
    _
  %s12 = ssub.s32 1, %s10
  %s13 = scalar_select 0, %s12, %s10
  $region1: #{_generator_padded.1} parent=0
    #allocation9 [shape = 'u8[4096]{0}', space=vmem, size = 0x1000, scoped, tag = 'input window, operand 0, single buffered']
    #allocation10 [shape = 's32[1]{0}', space=sflag, size = 0x4, scoped, tag = 'scoped memory for _generator_padded.1']
    #allocation11 [shape = 's32[1]{0}', space=sflag, size = 0x4, scoped, tag = 'scoped memory for _generator_padded.1']
    #allocation12 [shape = 'u8[65536]{0}', space=vmem, size = 0x10000, scoped, tag = 'input window, operand 1, single buffered']
    #allocation13 [shape = 's32[1]{0}', space=sflag, size = 0x4, scoped, tag = 'scoped memory for _generator_padded.1']
    #allocation14 [shape = 'u8[1024]{0}', space=vmem, size = 0x400, scoped, tag = 'input window, operand 2, single buffered']
    #allocation15 [shape = 'u8[28672]{0}', space=vmem, size = 0x7000, scoped, tag = 'output window, operand 0, single buffered']
    #allocation17 [shape = 'u32[9]{0}', space=smem, size = 0x24, scoped, tag = 'DMA stride descriptor']
    #allocation23 [shape = 'u32[9]{0}', space=smem, size = 0x24, scoped, tag = 'DMA stride descriptor']
    #allocation27 [shape = 'u32[9]{0}', space=smem, size = 0x24, scoped, tag = 'DMA stride descriptor']
    %14 = vsyncpa [#allocation10], 0
    %15 = vsyncpa [#allocation13], 0
    %16 = vsyncpa [#allocation11], 0
    // Predicated region
    $region2: #{_generator_padded.1} parent=1 // pred_check
      _
    $region3: #{_generator_padded.1} parent=1 // pred_check_branch
      %18 = sbr.rel (0) target = $region5
    $region4: #{_generator_padded.1} parent=1 // pred_region
      %s20 = ssub.s32 128, 128
      %21 = vsyncadd [#allocation10], %s20
      %s22 = sshll.u32 [#allocation9], 4
      %s23 = int_to_ptr.vmem [resolvable:$true] %s22
      %28 = dma.hbm_to_vmem [thread:$0]  %s0, 128, %s23, [#allocation10], 64, 64, 4
    $region5: #{_generator_padded.1} parent=1 // pred_fallthru
      _
    // Predicated region
    $region6: #{_generator_padded.1} parent=1 // pred_check
      _
    $region7: #{_generator_padded.1} parent=1 // pred_check_branch
      %30 = sbr.rel (0) target = $region9
    $region8: #{_generator_padded.1} parent=1 // pred_region
      %s32 = ssub.s32 2048, 2048
      %33 = vsyncadd [#allocation13], %s32
      %s34 = sshll.u32 [#allocation12], 4
      %s35 = int_to_ptr.vmem [resolvable:$true] %s34
      %40 = dma.hbm_to_vmem [thread:$0]  %s1, 2048, %s35, [#allocation13], 128, 128, 8
    $region9: #{_generator_padded.1} parent=1 // pred_fallthru
      _
    // Predicated region
    $region10: #{_generator_padded.1} parent=1 // pred_check
      _
    $region11: #{_generator_padded.1} parent=1 // pred_check_branch
      %42 = sbr.rel (0) target = $region13
    $region12: #{_generator_padded.1} parent=1 // pred_region
      %s44 = ssub.s32 32, 32
      %45 = vsyncadd [#allocation13], %s44
      %s47 = sshll.u32 [#allocation14], 4
      %s48 = int_to_ptr.vmem [resolvable:$true] %s47
      %50 = dma.hbm_to_vmem [thread:$0]  %s2, 32, %s48, [#allocation13]
    $region13: #{_generator_padded.1} parent=1 // pred_fallthru
      _
    // Predicated region
    $region14: #{_generator_padded.1} parent=1 // pred_check
      _
    $region15: #{_generator_padded.1} parent=1 // pred_check_branch
      %52 = sbr.rel (0) target = $region17
    $region16: #{_generator_padded.1} parent=1 // pred_region
      %53 = dma.done [#allocation10], 128
    $region17: #{_generator_padded.1} parent=1 // pred_fallthru
      _
    // Predicated region
    $region18: #{_generator_padded.1} parent=1 // pred_check
      _
    $region19: #{_generator_padded.1} parent=1 // pred_check_branch
      %55 = sbr.rel (0) target = $region21
    $region20: #{_generator_padded.1} parent=1 // pred_region
      %56 = dma.done [#allocation13], 2048
    $region21: #{_generator_padded.1} parent=1 // pred_fallthru
      _
    // Predicated region
    $region22: #{_generator_padded.1} parent=1 // pred_check
      _
    $region23: #{_generator_padded.1} parent=1 // pred_check_branch
      %58 = sbr.rel (0) target = $region25
    $region24: #{_generator_padded.1} parent=1 // pred_region
      %59 = dma.done [#allocation13], 32
    $region25: #{_generator_padded.1} parent=1 // pred_fallthru
      _
    %s62 = sshll.u32 1, 14
    %s63 = sxor.u32 4294967295, %s62
    %s65 = sld [smem:[#allocation0]]
    %s66 = sadd.s32 2, %s65
    %s68 = sshll.u32 7, 26
    %s69 = sxor.u32 4294967295, %s68
    %s70 = sand.u32 0, %s69
    %s71 = sshll.u32 %s66, 26
    %s72 = sor.u32 %s70, %s71
    %s73 = sshll.u32 [#allocation2], 4
    %s74 = int_to_ptr.vmem [resolvable:$true] %s73
    %77 = sst [smem:[#allocation17]] 512
    %s78 = scalar_lea.smem [#allocation17], 1
    %79 = sst [smem:[%s78]] 512
    %s80 = scalar_lea.smem [#allocation17], 2
    %81 = sst [smem:[%s80]] 4
    %s82 = scalar_lea.smem [#allocation17], 3
    %83 = sst [smem:[%s82]] 64
    %s84 = scalar_lea.smem [#allocation17], 4
    %85 = sst [smem:[%s84]] 128
    %s86 = scalar_lea.smem [#allocation17], 5
    %87 = sst [smem:[%s86]] 2
    %s88 = scalar_lea.smem [#allocation17], 6
    %89 = sst [smem:[%s88]] 256
    %s90 = scalar_lea.smem [#allocation17], 7
    %91 = sst [smem:[%s90]] 64
    %s92 = scalar_lea.smem [#allocation17], 8
    %93 = sst [smem:[%s92]] 4
    %95 = dma.general %s3, 8192, %s74, [#allocation8], [#allocation16], [#allocation17], %s72, 0
    %s96 = scalar_lea.sflag [#allocation8], 1
    // Predicated region
    $region26: #{_generator_padded.1} parent=1 // pred_check
      _
    $region27: #{_generator_padded.1} parent=1 // pred_check_branch
      %98 = sbr.rel target = $region29
    $region28: #{_generator_padded.1} parent=1 // pred_region
      %99 = sst [smem:[#allocation20]] [#allocation19]
      %100 = sst [smem:[#allocation21]] [#allocation18]
    $region29: #{_generator_padded.1} parent=1 // pred_fallthru
      _
    %102 = shalt.err (0)
    %s104 = sshll.u32 [#allocation3], 4
    %s105 = int_to_ptr.vmem [resolvable:$true] %s104
    %107 = dma.hbm_to_vmem [thread:$0]  %s4, 64, %s105, %s96
    %s108 = scalar_lea.sflag [#allocation8], 2
    %s110 = sshll.u32 1, 14
    %s111 = sxor.u32 4294967295, %s110
    %s113 = sadd.s32 2, %s65
    %s115 = sshll.u32 7, 26
    %s116 = sxor.u32 4294967295, %s115
    %s117 = sand.u32 0, %s116
    %s118 = sshll.u32 %s113, 26
    %s119 = sor.u32 %s117, %s118
    %s120 = sshll.u32 [#allocation4], 4
    %s121 = int_to_ptr.vmem [resolvable:$true] %s120
    %124 = sst [smem:[#allocation23]] 1024
    %s125 = scalar_lea.smem [#allocation23], 1
    %126 = sst [smem:[%s125]] 1024
    %s127 = scalar_lea.smem [#allocation23], 2
    %128 = sst [smem:[%s127]] 8
    %s129 = scalar_lea.smem [#allocation23], 3
    %130 = sst [smem:[%s129]] 64
    %s131 = scalar_lea.smem [#allocation23], 4
    %132 = sst [smem:[%s131]] 128
    %s133 = scalar_lea.smem [#allocation23], 5
    %134 = sst [smem:[%s133]] 2
    %s135 = scalar_lea.smem [#allocation23], 6
    %136 = sst [smem:[%s135]] 512
    %s137 = scalar_lea.smem [#allocation23], 7
    %138 = sst [smem:[%s137]] 64
    %s139 = scalar_lea.smem [#allocation23], 8
    %140 = sst [smem:[%s139]] 4
    %142 = dma.general %s5, 32768, %s121, %s108, [#allocation22], [#allocation23], %s119, 0
    %s143 = scalar_lea.sflag [#allocation8], 3
    // Predicated region
    $region30: #{_generator_padded.1} parent=1 // pred_check
      _
    $region31: #{_generator_padded.1} parent=1 // pred_check_branch
      %145 = sbr.rel target = $region33
    $region32: #{_generator_padded.1} parent=1 // pred_region
      %146 = sst [smem:[#allocation20]] [#allocation25]
      %147 = sst [smem:[#allocation21]] [#allocation24]
    $region33: #{_generator_padded.1} parent=1 // pred_fallthru
      _
    %149 = shalt.err (0)
    %s151 = sshll.u32 [#allocation5], 4
    %s152 = int_to_ptr.vmem [resolvable:$true] %s151
    %154 = dma.hbm_to_vmem [thread:$0]  %s6, 128, %s152, %s143
    %s155 = scalar_lea.sflag [#allocation8], 4
    %s157 = sshll.u32 1, 14
    %s158 = sxor.u32 4294967295, %s157
    %s160 = sadd.s32 2, %s65
    %s162 = sshll.u32 7, 26
    %s163 = sxor.u32 4294967295, %s162
    %s164 = sand.u32 0, %s163
    %s165 = sshll.u32 %s160, 26
    %s166 = sor.u32 %s164, %s165
    %s167 = sshll.u32 [#allocation6], 4
    %s168 = int_to_ptr.vmem [resolvable:$true] %s167
    %171 = sst [smem:[#allocation27]] 896
    %s172 = scalar_lea.smem [#allocation27], 1
    %173 = sst [smem:[%s172]] 896
    %s174 = scalar_lea.smem [#allocation27], 2
    %175 = sst [smem:[%s174]] 7
    %s176 = scalar_lea.smem [#allocation27], 3
    %177 = sst [smem:[%s176]] 64
    %s178 = scalar_lea.smem [#allocation27], 4
    %179 = sst [smem:[%s178]] 128
    %s180 = scalar_lea.smem [#allocation27], 5
    %181 = sst [smem:[%s180]] 2
    %s182 = scalar_lea.smem [#allocation27], 6
    %183 = sst [smem:[%s182]] 448
    %s184 = scalar_lea.smem [#allocation27], 7
    %185 = sst [smem:[%s184]] 64
    %s186 = scalar_lea.smem [#allocation27], 8
    %187 = sst [smem:[%s186]] 4
    %189 = dma.general %s7, 57344, %s168, %s155, [#allocation26], [#allocation27], %s166, 0
    %s190 = scalar_lea.sflag [#allocation8], 5
    // Predicated region
    $region34: #{_generator_padded.1} parent=1 // pred_check
      _
    $region35: #{_generator_padded.1} parent=1 // pred_check_branch
      %192 = sbr.rel target = $region37
    $region36: #{_generator_padded.1} parent=1 // pred_region
      %193 = sst [smem:[#allocation20]] [#allocation29]
      %194 = sst [smem:[#allocation21]] [#allocation28]
    $region37: #{_generator_padded.1} parent=1 // pred_fallthru
      _
    %196 = shalt.err (0)
    %s198 = sshll.u32 [#allocation7], 4
    %s199 = int_to_ptr.vmem [resolvable:$true] %s198
    %201 = dma.hbm_to_vmem [thread:$0]  %s8, 112, %s199, %s190
    %v202 = vld [vmem:[#allocation9] sm:$0xf]
    %v203 = vld [vmem:[#allocation9 + $0x4] sm:$0xf]
    %v204 = vld [vmem:[#allocation12] sm:$0xff]
    %v205 = vld [vmem:[#allocation12 + $0x8] sm:$0xff]
    %v206 = vld [vmem:[#allocation12 + $0x10] sm:$0xff]
    %v207 = vld [vmem:[#allocation12 + $0x18] sm:$0xff]
    %v208 = vld [vmem:[#allocation12 + $0x20] sm:$0xff]
    %v209 = vld [vmem:[#allocation12 + $0x28] sm:$0xff]
    %v210 = vld [vmem:[#allocation12 + $0x30] sm:$0xff]
    %v211 = vld [vmem:[#allocation12 + $0x38] sm:$0xff]
    %v212 = vld [vmem:[#allocation12 + $0x40] sm:$0xff]
    %v213 = vld [vmem:[#allocation12 + $0x48] sm:$0xff]
    %v214 = vld [vmem:[#allocation12 + $0x50] sm:$0xff]
    %v215 = vld [vmem:[#allocation12 + $0x58] sm:$0xff]
    %v216 = vld [vmem:[#allocation12 + $0x60] sm:$0xff]
    %v217 = vld [vmem:[#allocation12 + $0x68] sm:$0xff]
    %v218 = vld [vmem:[#allocation12 + $0x70] sm:$0xff]
    %v219 = vld [vmem:[#allocation12 + $0x78] sm:$0xff]
    %v220 = vld [vmem:[#allocation14] sm:$0x3]
    %v222 = vlaneseq
    %v223 = vshrl.u32 %v222, 7
    %v224 = vsub.s32 0, %v223
    %v225 = vrot.slane %v220, %v224
    %v226 = vlaneseq
    %v227 = vshrl.u32 %v226, 7
    %v228 = vsub.s32 1, %v227
    %v229 = vrot.slane %v220, %v228
    %v234 = vunpack.c.l.b16 %v202
    %v235 = vunpack.c.l.b16 %v203
    %v236 = vpack.c.b16 %v235, %v234
    %v254 = vunpack.c.l.b16 %v204
    %v255 = vunpack.c.h.b16 %v204
    %v256 = vunpack.c.l.b16 %v205
    %v257 = vunpack.c.h.b16 %v205
    %v258 = vunpack.c.l.b16 %v206
    %v259 = vunpack.c.h.b16 %v206
    %v260 = vunpack.c.l.b16 %v207
    %v261 = vunpack.c.h.b16 %v207
    %v262 = vunpack.c.l.b16 %v208
    %v263 = vunpack.c.h.b16 %v208
    %v264 = vunpack.c.l.b16 %v209
    %v265 = vunpack.c.h.b16 %v209
    %v266 = vunpack.c.l.b16 %v210
    %v267 = vunpack.c.h.b16 %v210
    %v268 = vunpack.c.l.b16 %v211
    %v269 = vunpack.c.h.b16 %v211
    %v270 = vunpack.c.l.b16 %v212
    %v271 = vunpack.c.h.b16 %v212
    %v272 = vunpack.c.l.b16 %v213
    %v273 = vunpack.c.h.b16 %v213
    %v274 = vunpack.c.l.b16 %v214
    %v275 = vunpack.c.h.b16 %v214
    %v276 = vunpack.c.l.b16 %v215
    %v277 = vunpack.c.h.b16 %v215
    %v278 = vunpack.c.l.b16 %v216
    %v279 = vunpack.c.h.b16 %v216
    %v280 = vunpack.c.l.b16 %v217
    %v281 = vunpack.c.h.b16 %v217
    %v282 = vunpack.c.l.b16 %v218
    %v283 = vunpack.c.h.b16 %v218
    %v284 = vunpack.c.l.b16 %v219
    %v285 = vunpack.c.h.b16 %v219
    %v286 = vpack.c.b16 %v256, %v254
    %v287 = vpack.c.b16 %v257, %v255
    %v288 = vpack.c.b16 %v260, %v258
    %v289 = vpack.c.b16 %v261, %v259
    %v290 = vpack.c.b16 %v264, %v262
    %v291 = vpack.c.b16 %v265, %v263
    %v292 = vpack.c.b16 %v268, %v266
    %v293 = vpack.c.b16 %v269, %v267
    %v294 = vpack.c.b16 %v272, %v270
    %v295 = vpack.c.b16 %v273, %v271
    %v296 = vpack.c.b16 %v276, %v274
    %v297 = vpack.c.b16 %v277, %v275
    %v298 = vpack.c.b16 %v280, %v278
    %v299 = vpack.c.b16 %v281, %v279
    %v300 = vpack.c.b16 %v284, %v282
    %v301 = vpack.c.b16 %v285, %v283
    %318 = vmatprep.subr.bf16.mxu0 %v287
    %319 = vmatpush1.bf16.msra.mxu0 %v286
    %320 = vmatprep.subr.bf16.mxu0 %v289
    %321 = vmatpush1.bf16.msra.mxu0 %v288
    %322 = vmatprep.subr.bf16.mxu0 %v291
    %323 = vmatpush1.bf16.msra.mxu0 %v290
    %324 = vmatprep.subr.bf16.mxu0 %v293
    %325 = vmatpush1.bf16.msra.mxu0 %v292
    %326 = vmatprep.subr.bf16.mxu0 %v295
    %327 = vmatpush1.bf16.msra.mxu0 %v294
    %328 = vmatprep.subr.bf16.mxu0 %v297
    %329 = vmatpush1.bf16.msra.mxu0 %v296
    %330 = vmatprep.subr.bf16.mxu0 %v299
    %331 = vmatpush1.bf16.msra.mxu0 %v298
    %332 = vmatprep.subr.bf16.mxu0 %v301
    %333 = vmatpush1.bf16.msra.mxu0 %v300
    %334 = vmatprep.subr.bf16.mxu0 0
    %335 = vmatpush1.bf16.msra.mxu0 0
    %336 = vmatprep.subr.bf16.mxu0 0
    %337 = vmatpush1.bf16.msra.mxu0 0
    %338 = vmatprep.subr.bf16.mxu0 0
    %339 = vmatpush1.bf16.msra.mxu0 0
    %340 = vmatprep.subr.bf16.mxu0 0
    %341 = vmatpush1.bf16.msra.mxu0 0
    %342 = vmatprep.subr.bf16.mxu0 0
    %343 = vmatpush1.bf16.msra.mxu0 0
    %344 = vmatprep.subr.bf16.mxu0 0
    %345 = vmatpush1.bf16.msra.mxu0 0
    %346 = vmatprep.subr.bf16.mxu0 0
    %347 = vmatpush1.bf16.msra.mxu0 0
    %348 = vmatprep.subr.bf16.mxu0 0
    %349 = vmatpush1.bf16.msra.mxu0 0
    %350 = vmatprep.mubr.bf16.mxu0 0
    %351 = vmatmul.mubr.bf16.gmra.mrb[0].mxu0 %v236
    %v352 = vpop.f32.mrb[0].mxu0
    %v353 = vadd.f32 %v225, %v352
    %v354 = vpop.f32.mrb[0].mxu0
    %v355 = vadd.f32 %v229, %v354
    %v356 = vpop.f32.mrb[0].mxu0
    %v357 = vadd.f32 %v225, %v356
    %v358 = vpop.f32.mrb[0].mxu0
    %v359 = vadd.f32 %v229, %v358
    %360 = vdwg.mxu0
    %v361 = vmul.f32 %v353, 0.01
    %v362 = vmul.f32 %v355, 0.01
    %v363 = vmul.f32 %v357, 0.01
    %v364 = vmul.f32 %v359, 0.01
    %v365 = vmax.f32 %v353, %v361
    %v366 = vmax.f32 %v355, %v362
    %v367 = vmax.f32 %v357, %v363
    %v368 = vmax.f32 %v359, %v364
    %v369 = vpack.c.bf16 %v367, %v365
    %v370 = vpack.c.bf16 %v368, %v366
    %s371 = smul.u32 4, 32
    %s372 = smul.u32 %s371, 4
    %s373 = sshll.u32 %s372, 4
    %374 = dma.done [#allocation8], %s373
    %s375 = smul.u32 1, 4
    %s376 = sshll.u32 %s375, 4
    %377 = dma.done %s96, %s376
    %v378 = vld [vmem:[#allocation2] sm:$0xff]
    %v379 = vld [vmem:[#allocation2 + $0x8] sm:$0xff]
    %v380 = vld [vmem:[#allocation2 + $0x10] sm:$0xff]
    %v381 = vld [vmem:[#allocation2 + $0x18] sm:$0xff]
    %v382 = vld [vmem:[#allocation2 + $0x20] sm:$0xff]
    %v383 = vld [vmem:[#allocation2 + $0x28] sm:$0xff]
    %v384 = vld [vmem:[#allocation2 + $0x30] sm:$0xff]
    %v385 = vld [vmem:[#allocation2 + $0x38] sm:$0xff]
    %v386 = vld [vmem:[#allocation2 + $0x40] sm:$0xff]
    %v387 = vld [vmem:[#allocation2 + $0x48] sm:$0xff]
    %v388 = vld [vmem:[#allocation2 + $0x50] sm:$0xff]
    %v389 = vld [vmem:[#allocation2 + $0x58] sm:$0xff]
    %v390 = vld [vmem:[#allocation2 + $0x60] sm:$0xff]
    %v391 = vld [vmem:[#allocation2 + $0x68] sm:$0xff]
    %v392 = vld [vmem:[#allocation2 + $0x70] sm:$0xff]
    %v393 = vld [vmem:[#allocation2 + $0x78] sm:$0xff]
    %v394 = vld [vmem:[#allocation2 + $0x80] sm:$0xff]
    %v395 = vld [vmem:[#allocation2 + $0x88] sm:$0xff]
    %v396 = vld [vmem:[#allocation2 + $0x90] sm:$0xff]
    %v397 = vld [vmem:[#allocation2 + $0x98] sm:$0xff]
    %v398 = vld [vmem:[#allocation2 + $0xa0] sm:$0xff]
    %v399 = vld [vmem:[#allocation2 + $0xa8] sm:$0xff]
    %v400 = vld [vmem:[#allocation2 + $0xb0] sm:$0xff]
    %v401 = vld [vmem:[#allocation2 + $0xb8] sm:$0xff]
    %v402 = vld [vmem:[#allocation2 + $0xc0] sm:$0xff]
    %v403 = vld [vmem:[#allocation2 + $0xc8] sm:$0xff]
    %v404 = vld [vmem:[#allocation2 + $0xd0] sm:$0xff]
    %v405 = vld [vmem:[#allocation2 + $0xd8] sm:$0xff]
    %v406 = vld [vmem:[#allocation2 + $0xe0] sm:$0xff]
    %v407 = vld [vmem:[#allocation2 + $0xe8] sm:$0xff]
    %v408 = vld [vmem:[#allocation2 + $0xf0] sm:$0xff]
    %v409 = vld [vmem:[#allocation2 + $0xf8] sm:$0xff]
    %v410 = vld [vmem:[#allocation2 + $0x100] sm:$0xff]
    %v411 = vld [vmem:[#allocation2 + $0x108] sm:$0xff]
    %v412 = vld [vmem:[#allocation2 + $0x110] sm:$0xff]
    %v413 = vld [vmem:[#allocation2 + $0x118] sm:$0xff]
    %v414 = vld [vmem:[#allocation2 + $0x120] sm:$0xff]
    %v415 = vld [vmem:[#allocation2 + $0x128] sm:$0xff]
    %v416 = vld [vmem:[#allocation2 + $0x130] sm:$0xff]
    %v417 = vld [vmem:[#allocation2 + $0x138] sm:$0xff]
    %v418 = vld [vmem:[#allocation2 + $0x140] sm:$0xff]
    %v419 = vld [vmem:[#allocation2 + $0x148] sm:$0xff]
    %v420 = vld [vmem:[#allocation2 + $0x150] sm:$0xff]
    %v421 = vld [vmem:[#allocation2 + $0x158] sm:$0xff]
    %v422 = vld [vmem:[#allocation2 + $0x160] sm:$0xff]
    %v423 = vld [vmem:[#allocation2 + $0x168] sm:$0xff]
    %v424 = vld [vmem:[#allocation2 + $0x170] sm:$0xff]
    %v425 = vld [vmem:[#allocation2 + $0x178] sm:$0xff]
    %v426 = vld [vmem:[#allocation2 + $0x180] sm:$0xff]
    %v427 = vld [vmem:[#allocation2 + $0x188] sm:$0xff]
    %v428 = vld [vmem:[#allocation2 + $0x190] sm:$0xff]
    %v429 = vld [vmem:[#allocation2 + $0x198] sm:$0xff]
    %v430 = vld [vmem:[#allocation2 + $0x1a0] sm:$0xff]
    %v431 = vld [vmem:[#allocation2 + $0x1a8] sm:$0xff]
    %v432 = vld [vmem:[#allocation2 + $0x1b0] sm:$0xff]
    %v433 = vld [vmem:[#allocation2 + $0x1b8] sm:$0xff]
    %v434 = vld [vmem:[#allocation2 + $0x1c0] sm:$0xff]
    %v435 = vld [vmem:[#allocation2 + $0x1c8] sm:$0xff]
    %v436 = vld [vmem:[#allocation2 + $0x1d0] sm:$0xff]
    %v437 = vld [vmem:[#allocation2 + $0x1d8] sm:$0xff]
    %v438 = vld [vmem:[#allocation2 + $0x1e0] sm:$0xff]
    %v439 = vld [vmem:[#allocation2 + $0x1e8] sm:$0xff]
    %v440 = vld [vmem:[#allocation2 + $0x1f0] sm:$0xff]
    %v441 = vld [vmem:[#allocation2 + $0x1f8] sm:$0xff]
    %v442 = vld [vmem:[#allocation3] sm:$0xf]
    %v444 = vlaneseq
    %v445 = vshrl.u32 %v444, 7
    %v446 = vsub.s32 0, %v445
    %v447 = vrot.slane %v442, %v446
    %v448 = vlaneseq
    %v449 = vshrl.u32 %v448, 7
    %v450 = vsub.s32 1, %v449
    %v451 = vrot.slane %v442, %v450
    %v452 = vlaneseq
    %v453 = vshrl.u32 %v452, 7
    %v454 = vsub.s32 2, %v453
    %v455 = vrot.slane %v442, %v454
    %v456 = vlaneseq
    %v457 = vshrl.u32 %v456, 7
    %v458 = vsub.s32 3, %v457
    %v459 = vrot.slane %v442, %v458
    %464 = vmatprep.subr.bf16.mxu0 %v379
    %465 = vmatpush1.bf16.msra.mxu0 %v378
    %466 = vmatprep.subr.bf16.mxu0 %v383
    %467 = vmatpush1.bf16.msra.mxu0 %v382
    %468 = vmatprep.subr.bf16.mxu0 %v387
    %469 = vmatpush1.bf16.msra.mxu0 %v386
    %470 = vmatprep.subr.bf16.mxu0 %v391
    %471 = vmatpush1.bf16.msra.mxu0 %v390
    %472 = vmatprep.subr.bf16.mxu0 %v395
    %473 = vmatpush1.bf16.msra.mxu0 %v394
    %474 = vmatprep.subr.bf16.mxu0 %v399
    %475 = vmatpush1.bf16.msra.mxu0 %v398
    %476 = vmatprep.subr.bf16.mxu0 %v403
    %477 = vmatpush1.bf16.msra.mxu0 %v402
    %478 = vmatprep.subr.bf16.mxu0 %v407
    %479 = vmatpush1.bf16.msra.mxu0 %v406
    %480 = vmatprep.subr.bf16.mxu0 %v411
    %481 = vmatpush1.bf16.msra.mxu0 %v410
    %482 = vmatprep.subr.bf16.mxu0 %v415
    %483 = vmatpush1.bf16.msra.mxu0 %v414
    %484 = vmatprep.subr.bf16.mxu0 %v419
    %485 = vmatpush1.bf16.msra.mxu0 %v418
    %486 = vmatprep.subr.bf16.mxu0 %v423
    %487 = vmatpush1.bf16.msra.mxu0 %v422
    %488 = vmatprep.subr.bf16.mxu0 %v427
    %489 = vmatpush1.bf16.msra.mxu0 %v426
    %490 = vmatprep.subr.bf16.mxu0 %v431
    %491 = vmatpush1.bf16.msra.mxu0 %v430
    %492 = vmatprep.subr.bf16.mxu0 %v435
    %493 = vmatpush1.bf16.msra.mxu0 %v434
    %494 = vmatprep.subr.bf16.mxu0 %v439
    %495 = vmatpush1.bf16.msra.mxu0 %v438
    %496 = vmatprep.mubr.bf16.mxu0 %v370
    %497 = vmatmul.mubr.bf16.gmra.mrb[0].mxu0 %v369
    %v498 = vpop.f32.mrb[0].mxu0
    %v499 = vadd.f32 %v447, %v498
    %v500 = vpop.f32.mrb[0].mxu0
    %v501 = vadd.f32 %v451, %v500
    %v502 = vpop.f32.mrb[0].mxu0
    %v503 = vadd.f32 %v447, %v502
    %v504 = vpop.f32.mrb[0].mxu0
    %v505 = vadd.f32 %v451, %v504
    %506 = vdwg.mxu0
    %507 = vmatprep.subr.bf16.mxu0 %v381
    %508 = vmatpush1.bf16.msra.mxu0 %v380
    %509 = vmatprep.subr.bf16.mxu0 %v385
    %510 = vmatpush1.bf16.msra.mxu0 %v384
    %511 = vmatprep.subr.bf16.mxu0 %v389
    %512 = vmatpush1.bf16.msra.mxu0 %v388
    %513 = vmatprep.subr.bf16.mxu0 %v393
    %514 = vmatpush1.bf16.msra.mxu0 %v392
    %515 = vmatprep.subr.bf16.mxu0 %v397
    %516 = vmatpush1.bf16.msra.mxu0 %v396
    %517 = vmatprep.subr.bf16.mxu0 %v401
    %518 = vmatpush1.bf16.msra.mxu0 %v400
    %519 = vmatprep.subr.bf16.mxu0 %v405
    %520 = vmatpush1.bf16.msra.mxu0 %v404
    %521 = vmatprep.subr.bf16.mxu0 %v409
    %522 = vmatpush1.bf16.msra.mxu0 %v408
    %523 = vmatprep.subr.bf16.mxu0 %v413
    %524 = vmatpush1.bf16.msra.mxu0 %v412
    %525 = vmatprep.subr.bf16.mxu0 %v417
    %526 = vmatpush1.bf16.msra.mxu0 %v416
    %527 = vmatprep.subr.bf16.mxu0 %v421
    %528 = vmatpush1.bf16.msra.mxu0 %v420
    %529 = vmatprep.subr.bf16.mxu0 %v425
    %530 = vmatpush1.bf16.msra.mxu0 %v424
    %531 = vmatprep.subr.bf16.mxu0 %v429
    %532 = vmatpush1.bf16.msra.mxu0 %v428
    %533 = vmatprep.subr.bf16.mxu0 %v433
    %534 = vmatpush1.bf16.msra.mxu0 %v432
    %535 = vmatprep.subr.bf16.mxu0 %v437
    %536 = vmatpush1.bf16.msra.mxu0 %v436
    %537 = vmatprep.subr.bf16.mxu0 %v441
    %538 = vmatpush1.bf16.msra.mxu0 %v440
    %539 = vmatprep.mubr.bf16.mxu0 %v370
    %540 = vmatmul.mubr.bf16.gmra.mrb[0].mxu0 %v369
    %v541 = vpop.f32.mrb[0].mxu0
    %v542 = vadd.f32 %v455, %v541
    %v543 = vpop.f32.mrb[0].mxu0
    %v544 = vadd.f32 %v459, %v543
    %v545 = vpop.f32.mrb[0].mxu0
    %v546 = vadd.f32 %v455, %v545
    %v547 = vpop.f32.mrb[0].mxu0
    %v548 = vadd.f32 %v459, %v547
    %549 = vdwg.mxu0
    %v550 = vmul.f32 %v499, 0.01
    %v551 = vmul.f32 %v501, 0.01
    %v552 = vmul.f32 %v542, 0.01
    %v553 = vmul.f32 %v544, 0.01
    %v554 = vmul.f32 %v503, 0.01
    %v555 = vmul.f32 %v505, 0.01
    %v556 = vmul.f32 %v546, 0.01
    %v557 = vmul.f32 %v548, 0.01
    %v558 = vmax.f32 %v499, %v550
    %v559 = vmax.f32 %v501, %v551
    %v560 = vmax.f32 %v542, %v552
    %v561 = vmax.f32 %v544, %v553
    %v562 = vmax.f32 %v503, %v554
    %v563 = vmax.f32 %v505, %v555
    %v564 = vmax.f32 %v546, %v556
    %v565 = vmax.f32 %v548, %v557
    %v566 = vpack.c.bf16 %v562, %v558
    %v567 = vpack.c.bf16 %v563, %v559
    %v568 = vpack.c.bf16 %v564, %v560
    %v569 = vpack.c.bf16 %v565, %v561
    %s570 = smul.u32 4, 64
    %s571 = smul.u32 %s570, 8
    %s572 = sshll.u32 %s571, 4
    %573 = dma.done %s108, %s572
    %s574 = smul.u32 1, 8
    %s575 = sshll.u32 %s574, 4
    %576 = dma.done %s143, %s575
    %v577 = vld [vmem:[#allocation4] sm:$0xff]
    %v578 = vld [vmem:[#allocation4 + $0x8] sm:$0xff]
    %v579 = vld [vmem:[#allocation4 + $0x10] sm:$0xff]
    %v580 = vld [vmem:[#allocation4 + $0x18] sm:$0xff]
    %v581 = vld [vmem:[#allocation4 + $0x20] sm:$0xff]
    %v582 = vld [vmem:[#allocation4 + $0x28] sm:$0xff]
    %v583 = vld [vmem:[#allocation4 + $0x30] sm:$0xff]
    %v584 = vld [vmem:[#allocation4 + $0x38] sm:$0xff]
    %v585 = vld [vmem:[#allocation4 + $0x40] sm:$0xff]
    %v586 = vld [vmem:[#allocation4 + $0x48] sm:$0xff]
    %v587 = vld [vmem:[#allocation4 + $0x50] sm:$0xff]
    %v588 = vld [vmem:[#allocation4 + $0x58] sm:$0xff]
    %v589 = vld [vmem:[#allocation4 + $0x60] sm:$0xff]
    %v590 = vld [vmem:[#allocation4 + $0x68] sm:$0xff]
    %v591 = vld [vmem:[#allocation4 + $0x70] sm:$0xff]
    %v592 = vld [vmem:[#allocation4 + $0x78] sm:$0xff]
    %v593 = vld [vmem:[#allocation4 + $0x80] sm:$0xff]
    %v594 = vld [vmem:[#allocation4 + $0x88] sm:$0xff]
    %v595 = vld [vmem:[#allocation4 + $0x90] sm:$0xff]
    %v596 = vld [vmem:[#allocation4 + $0x98] sm:$0xff]
    %v597 = vld [vmem:[#allocation4 + $0xa0] sm:$0xff]
    %v598 = vld [vmem:[#allocation4 + $0xa8] sm:$0xff]
    %v599 = vld [vmem:[#allocation4 + $0xb0] sm:$0xff]
    %v600 = vld [vmem:[#allocation4 + $0xb8] sm:$0xff]
    %v601 = vld [vmem:[#allocation4 + $0xc0] sm:$0xff]
    %v602 = vld [vmem:[#allocation4 + $0xc8] sm:$0xff]
    %v603 = vld [vmem:[#allocation4 + $0xd0] sm:$0xff]
    %v604 = vld [vmem:[#allocation4 + $0xd8] sm:$0xff]
    %v605 = vld [vmem:[#allocation4 + $0xe0] sm:$0xff]
    %v606 = vld [vmem:[#allocation4 + $0xe8] sm:$0xff]
    %v607 = vld [vmem:[#allocation4 + $0xf0] sm:$0xff]
    %v608 = vld [vmem:[#allocation4 + $0xf8] sm:$0xff]
    %v609 = vld [vmem:[#allocation4 + $0x100] sm:$0xff]
    %v610 = vld [vmem:[#allocation4 + $0x108] sm:$0xff]
    %v611 = vld [vmem:[#allocation4 + $0x110] sm:$0xff]
    %v612 = vld [vmem:[#allocation4 + $0x118] sm:$0xff]
    %v613 = vld [vmem:[#allocation4 + $0x120] sm:$0xff]
    %v614 = vld [vmem:[#allocation4 + $0x128] sm:$0xff]
    %v615 = vld [vmem:[#allocation4 + $0x130] sm:$0xff]
    %v616 = vld [vmem:[#allocation4 + $0x138] sm:$0xff]
    %v617 = vld [vmem:[#allocation4 + $0x140] sm:$0xff]
    %v618 = vld [vmem:[#allocation4 + $0x148] sm:$0xff]
    %v619 = vld [vmem:[#allocation4 + $0x150] sm:$0xff]
    %v620 = vld [vmem:[#allocation4 + $0x158] sm:$0xff]
    %v621 = vld [vmem:[#allocation4 + $0x160] sm:$0xff]
    %v622 = vld [vmem:[#allocation4 + $0x168] sm:$0xff]
    %v623 = vld [vmem:[#allocation4 + $0x170] sm:$0xff]
    %v624 = vld [vmem:[#allocation4 + $0x178] sm:$0xff]
    %v625 = vld [vmem:[#allocation4 + $0x180] sm:$0xff]
    %v626 = vld [vmem:[#allocation4 + $0x188] sm:$0xff]
    %v627 = vld [vmem:[#allocation4 + $0x190] sm:$0xff]
    %v628 = vld [vmem:[#allocation4 + $0x198] sm:$0xff]
    %v629 = vld [vmem:[#allocation4 + $0x1a0] sm:$0xff]
    %v630 = vld [vmem:[#allocation4 + $0x1a8] sm:$0xff]
    %v631 = vld [vmem:[#allocation4 + $0x1b0] sm:$0xff]
    %v632 = vld [vmem:[#allocation4 + $0x1b8] sm:$0xff]
    %v633 = vld [vmem:[#allocation4 + $0x1c0] sm:$0xff]
    %v634 = vld [vmem:[#allocation4 + $0x1c8] sm:$0xff]
    %v635 = vld [vmem:[#allocation4 + $0x1d0] sm:$0xff]
    %v636 = vld [vmem:[#allocation4 + $0x1d8] sm:$0xff]
    %v637 = vld [vmem:[#allocation4 + $0x1e0] sm:$0xff]
    %v638 = vld [vmem:[#allocation4 + $0x1e8] sm:$0xff]
    %v639 = vld [vmem:[#allocation4 + $0x1f0] sm:$0xff]
    %v640 = vld [vmem:[#allocation4 + $0x1f8] sm:$0xff]
    %v641 = vld [vmem:[#allocation4 + $0x200] sm:$0xff]
    %v642 = vld [vmem:[#allocation4 + $0x208] sm:$0xff]
    %v643 = vld [vmem:[#allocation4 + $0x210] sm:$0xff]
    %v644 = vld [vmem:[#allocation4 + $0x218] sm:$0xff]
    %v645 = vld [vmem:[#allocation4 + $0x220] sm:$0xff]
    %v646 = vld [vmem:[#allocation4 + $0x228] sm:$0xff]
    %v647 = vld [vmem:[#allocation4 + $0x230] sm:$0xff]
    %v648 = vld [vmem:[#allocation4 + $0x238] sm:$0xff]
    %v649 = vld [vmem:[#allocation4 + $0x240] sm:$0xff]
    %v650 = vld [vmem:[#allocation4 + $0x248] sm:$0xff]
    %v651 = vld [vmem:[#allocation4 + $0x250] sm:$0xff]
    %v652 = vld [vmem:[#allocation4 + $0x258] sm:$0xff]
    %v653 = vld [vmem:[#allocation4 + $0x260] sm:$0xff]
    %v654 = vld [vmem:[#allocation4 + $0x268] sm:$0xff]
    %v655 = vld [vmem:[#allocation4 + $0x270] sm:$0xff]
    %v656 = vld [vmem:[#allocation4 + $0x278] sm:$0xff]
    %v657 = vld [vmem:[#allocation4 + $0x280] sm:$0xff]
    %v658 = vld [vmem:[#allocation4 + $0x288] sm:$0xff]
    %v659 = vld [vmem:[#allocation4 + $0x290] sm:$0xff]
    %v660 = vld [vmem:[#allocation4 + $0x298] sm:$0xff]
    %v661 = vld [vmem:[#allocation4 + $0x2a0] sm:$0xff]
    %v662 = vld [vmem:[#allocation4 + $0x2a8] sm:$0xff]
    %v663 = vld [vmem:[#allocation4 + $0x2b0] sm:$0xff]
    %v664 = vld [vmem:[#allocation4 + $0x2b8] sm:$0xff]
    %v665 = vld [vmem:[#allocation4 + $0x2c0] sm:$0xff]
    %v666 = vld [vmem:[#allocation4 + $0x2c8] sm:$0xff]
    %v667 = vld [vmem:[#allocation4 + $0x2d0] sm:$0xff]
    %v668 = vld [vmem:[#allocation4 + $0x2d8] sm:$0xff]
    %v669 = vld [vmem:[#allocation4 + $0x2e0] sm:$0xff]
    %v670 = vld [vmem:[#allocation4 + $0x2e8] sm:$0xff]
    %v671 = vld [vmem:[#allocation4 + $0x2f0] sm:$0xff]
    %v672 = vld [vmem:[#allocation4 + $0x2f8] sm:$0xff]
    %v673 = vld [vmem:[#allocation4 + $0x300] sm:$0xff]
    %v674 = vld [vmem:[#allocation4 + $0x308] sm:$0xff]
    %v675 = vld [vmem:[#allocation4 + $0x310] sm:$0xff]
    %v676 = vld [vmem:[#allocation4 + $0x318] sm:$0xff]
    %v677 = vld [vmem:[#allocation4 + $0x320] sm:$0xff]
    %v678 = vld [vmem:[#allocation4 + $0x328] sm:$0xff]
    %v679 = vld [vmem:[#allocation4 + $0x330] sm:$0xff]
    %v680 = vld [vmem:[#allocation4 + $0x338] sm:$0xff]
    %v681 = vld [vmem:[#allocation4 + $0x340] sm:$0xff]
    %v682 = vld [vmem:[#allocation4 + $0x348] sm:$0xff]
    %v683 = vld [vmem:[#allocation4 + $0x350] sm:$0xff]
    %v684 = vld [vmem:[#allocation4 + $0x358] sm:$0xff]
    %v685 = vld [vmem:[#allocation4 + $0x360] sm:$0xff]
    %v686 = vld [vmem:[#allocation4 + $0x368] sm:$0xff]
    %v687 = vld [vmem:[#allocation4 + $0x370] sm:$0xff]
    %v688 = vld [vmem:[#allocation4 + $0x378] sm:$0xff]
    %v689 = vld [vmem:[#allocation4 + $0x380] sm:$0xff]
    %v690 = vld [vmem:[#allocation4 + $0x388] sm:$0xff]
    %v691 = vld [vmem:[#allocation4 + $0x390] sm:$0xff]
    %v692 = vld [vmem:[#allocation4 + $0x398] sm:$0xff]
    %v693 = vld [vmem:[#allocation4 + $0x3a0] sm:$0xff]
    %v694 = vld [vmem:[#allocation4 + $0x3a8] sm:$0xff]
    %v695 = vld [vmem:[#allocation4 + $0x3b0] sm:$0xff]
    %v696 = vld [vmem:[#allocation4 + $0x3b8] sm:$0xff]
    %v697 = vld [vmem:[#allocation4 + $0x3c0] sm:$0xff]
    %v698 = vld [vmem:[#allocation4 + $0x3c8] sm:$0xff]
    %v699 = vld [vmem:[#allocation4 + $0x3d0] sm:$0xff]
    %v700 = vld [vmem:[#allocation4 + $0x3d8] sm:$0xff]
    %v701 = vld [vmem:[#allocation4 + $0x3e0] sm:$0xff]
    %v702 = vld [vmem:[#allocation4 + $0x3e8] sm:$0xff]
    %v703 = vld [vmem:[#allocation4 + $0x3f0] sm:$0xff]
    %v704 = vld [vmem:[#allocation4 + $0x3f8] sm:$0xff]
    %v705 = vld [vmem:[#allocation4 + $0x400] sm:$0xff]
    %v706 = vld [vmem:[#allocation4 + $0x408] sm:$0xff]
    %v707 = vld [vmem:[#allocation4 + $0x410] sm:$0xff]
    %v708 = vld [vmem:[#allocation4 + $0x418] sm:$0xff]
    %v709 = vld [vmem:[#allocation4 + $0x420] sm:$0xff]
    %v710 = vld [vmem:[#allocation4 + $0x428] sm:$0xff]
    %v711 = vld [vmem:[#allocation4 + $0x430] sm:$0xff]
    %v712 = vld [vmem:[#allocation4 + $0x438] sm:$0xff]
    %v713 = vld [vmem:[#allocation4 + $0x440] sm:$0xff]
    %v714 = vld [vmem:[#allocation4 + $0x448] sm:$0xff]
    %v715 = vld [vmem:[#allocation4 + $0x450] sm:$0xff]
    %v716 = vld [vmem:[#allocation4 + $0x458] sm:$0xff]
    %v717 = vld [vmem:[#allocation4 + $0x460] sm:$0xff]
    %v718 = vld [vmem:[#allocation4 + $0x468] sm:$0xff]
    %v719 = vld [vmem:[#allocation4 + $0x470] sm:$0xff]
    %v720 = vld [vmem:[#allocation4 + $0x478] sm:$0xff]
    %v721 = vld [vmem:[#allocation4 + $0x480] sm:$0xff]
    %v722 = vld [vmem:[#allocation4 + $0x488] sm:$0xff]
    %v723 = vld [vmem:[#allocation4 + $0x490] sm:$0xff]
    %v724 = vld [vmem:[#allocation4 + $0x498] sm:$0xff]
    %v725 = vld [vmem:[#allocation4 + $0x4a0] sm:$0xff]
    %v726 = vld [vmem:[#allocation4 + $0x4a8] sm:$0xff]
    %v727 = vld [vmem:[#allocation4 + $0x4b0] sm:$0xff]
    %v728 = vld [vmem:[#allocation4 + $0x4b8] sm:$0xff]
    %v729 = vld [vmem:[#allocation4 + $0x4c0] sm:$0xff]
    %v730 = vld [vmem:[#allocation4 + $0x4c8] sm:$0xff]
    %v731 = vld [vmem:[#allocation4 + $0x4d0] sm:$0xff]
    %v732 = vld [vmem:[#allocation4 + $0x4d8] sm:$0xff]
    %v733 = vld [vmem:[#allocation4 + $0x4e0] sm:$0xff]
    %v734 = vld [vmem:[#allocation4 + $0x4e8] sm:$0xff]
    %v735 = vld [vmem:[#allocation4 + $0x4f0] sm:$0xff]
    %v736 = vld [vmem:[#allocation4 + $0x4f8] sm:$0xff]
    %v737 = vld [vmem:[#allocation4 + $0x500] sm:$0xff]
    %v738 = vld [vmem:[#allocation4 + $0x508] sm:$0xff]
    %v739 = vld [vmem:[#allocation4 + $0x510] sm:$0xff]
    %v740 = vld [vmem:[#allocation4 + $0x518] sm:$0xff]
    %v741 = vld [vmem:[#allocation4 + $0x520] sm:$0xff]
    %v742 = vld [vmem:[#allocation4 + $0x528] sm:$0xff]
    %v743 = vld [vmem:[#allocation4 + $0x530] sm:$0xff]
    %v744 = vld [vmem:[#allocation4 + $0x538] sm:$0xff]
    %v745 = vld [vmem:[#allocation4 + $0x540] sm:$0xff]
    %v746 = vld [vmem:[#allocation4 + $0x548] sm:$0xff]
    %v747 = vld [vmem:[#allocation4 + $0x550] sm:$0xff]
    %v748 = vld [vmem:[#allocation4 + $0x558] sm:$0xff]
    %v749 = vld [vmem:[#allocation4 + $0x560] sm:$0xff]
    %v750 = vld [vmem:[#allocation4 + $0x568] sm:$0xff]
    %v751 = vld [vmem:[#allocation4 + $0x570] sm:$0xff]
    %v752 = vld [vmem:[#allocation4 + $0x578] sm:$0xff]
    %v753 = vld [vmem:[#allocation4 + $0x580] sm:$0xff]
    %v754 = vld [vmem:[#allocation4 + $0x588] sm:$0xff]
    %v755 = vld [vmem:[#allocation4 + $0x590] sm:$0xff]
    %v756 = vld [vmem:[#allocation4 + $0x598] sm:$0xff]
    %v757 = vld [vmem:[#allocation4 + $0x5a0] sm:$0xff]
    %v758 = vld [vmem:[#allocation4 + $0x5a8] sm:$0xff]
    %v759 = vld [vmem:[#allocation4 + $0x5b0] sm:$0xff]
    %v760 = vld [vmem:[#allocation4 + $0x5b8] sm:$0xff]
    %v761 = vld [vmem:[#allocation4 + $0x5c0] sm:$0xff]
    %v762 = vld [vmem:[#allocation4 + $0x5c8] sm:$0xff]
    %v763 = vld [vmem:[#allocation4 + $0x5d0] sm:$0xff]
    %v764 = vld [vmem:[#allocation4 + $0x5d8] sm:$0xff]
    %v765 = vld [vmem:[#allocation4 + $0x5e0] sm:$0xff]
    %v766 = vld [vmem:[#allocation4 + $0x5e8] sm:$0xff]
    %v767 = vld [vmem:[#allocation4 + $0x5f0] sm:$0xff]
    %v768 = vld [vmem:[#allocation4 + $0x5f8] sm:$0xff]
    %v769 = vld [vmem:[#allocation4 + $0x600] sm:$0xff]
    %v770 = vld [vmem:[#allocation4 + $0x608] sm:$0xff]
    %v771 = vld [vmem:[#allocation4 + $0x610] sm:$0xff]
    %v772 = vld [vmem:[#allocation4 + $0x618] sm:$0xff]
    %v773 = vld [vmem:[#allocation4 + $0x620] sm:$0xff]
    %v774 = vld [vmem:[#allocation4 + $0x628] sm:$0xff]
    %v775 = vld [vmem:[#allocation4 + $0x630] sm:$0xff]
    %v776 = vld [vmem:[#allocation4 + $0x638] sm:$0xff]
    %v777 = vld [vmem:[#allocation4 + $0x640] sm:$0xff]
    %v778 = vld [vmem:[#allocation4 + $0x648] sm:$0xff]
    %v779 = vld [vmem:[#allocation4 + $0x650] sm:$0xff]
    %v780 = vld [vmem:[#allocation4 + $0x658] sm:$0xff]
    %v781 = vld [vmem:[#allocation4 + $0x660] sm:$0xff]
    %v782 = vld [vmem:[#allocation4 + $0x668] sm:$0xff]
    %v783 = vld [vmem:[#allocation4 + $0x670] sm:$0xff]
    %v784 = vld [vmem:[#allocation4 + $0x678] sm:$0xff]
    %v785 = vld [vmem:[#allocation4 + $0x680] sm:$0xff]
    %v786 = vld [vmem:[#allocation4 + $0x688] sm:$0xff]
    %v787 = vld [vmem:[#allocation4 + $0x690] sm:$0xff]
    %v788 = vld [vmem:[#allocation4 + $0x698] sm:$0xff]
    %v789 = vld [vmem:[#allocation4 + $0x6a0] sm:$0xff]
    %v790 = vld [vmem:[#allocation4 + $0x6a8] sm:$0xff]
    %v791 = vld [vmem:[#allocation4 + $0x6b0] sm:$0xff]
    %v792 = vld [vmem:[#allocation4 + $0x6b8] sm:$0xff]
    %v793 = vld [vmem:[#allocation4 + $0x6c0] sm:$0xff]
    %v794 = vld [vmem:[#allocation4 + $0x6c8] sm:$0xff]
    %v795 = vld [vmem:[#allocation4 + $0x6d0] sm:$0xff]
    %v796 = vld [vmem:[#allocation4 + $0x6d8] sm:$0xff]
    %v797 = vld [vmem:[#allocation4 + $0x6e0] sm:$0xff]
    %v798 = vld [vmem:[#allocation4 + $0x6e8] sm:$0xff]
    %v799 = vld [vmem:[#allocation4 + $0x6f0] sm:$0xff]
    %v800 = vld [vmem:[#allocation4 + $0x6f8] sm:$0xff]
    %v801 = vld [vmem:[#allocation4 + $0x700] sm:$0xff]
    %v802 = vld [vmem:[#allocation4 + $0x708] sm:$0xff]
    %v803 = vld [vmem:[#allocation4 + $0x710] sm:$0xff]
    %v804 = vld [vmem:[#allocation4 + $0x718] sm:$0xff]
    %v805 = vld [vmem:[#allocation4 + $0x720] sm:$0xff]
    %v806 = vld [vmem:[#allocation4 + $0x728] sm:$0xff]
    %v807 = vld [vmem:[#allocation4 + $0x730] sm:$0xff]
    %v808 = vld [vmem:[#allocation4 + $0x738] sm:$0xff]
    %v809 = vld [vmem:[#allocation4 + $0x740] sm:$0xff]
    %v810 = vld [vmem:[#allocation4 + $0x748] sm:$0xff]
    %v811 = vld [vmem:[#allocation4 + $0x750] sm:$0xff]
    %v812 = vld [vmem:[#allocation4 + $0x758] sm:$0xff]
    %v813 = vld [vmem:[#allocation4 + $0x760] sm:$0xff]
    %v814 = vld [vmem:[#allocation4 + $0x768] sm:$0xff]
    %v815 = vld [vmem:[#allocation4 + $0x770] sm:$0xff]
    %v816 = vld [vmem:[#allocation4 + $0x778] sm:$0xff]
    %v817 = vld [vmem:[#allocation4 + $0x780] sm:$0xff]
    %v818 = vld [vmem:[#allocation4 + $0x788] sm:$0xff]
    %v819 = vld [vmem:[#allocation4 + $0x790] sm:$0xff]
    %v820 = vld [vmem:[#allocation4 + $0x798] sm:$0xff]
    %v821 = vld [vmem:[#allocation4 + $0x7a0] sm:$0xff]
    %v822 = vld [vmem:[#allocation4 + $0x7a8] sm:$0xff]
    %v823 = vld [vmem:[#allocation4 + $0x7b0] sm:$0xff]
    %v824 = vld [vmem:[#allocation4 + $0x7b8] sm:$0xff]
    %v825 = vld [vmem:[#allocation4 + $0x7c0] sm:$0xff]
    %v826 = vld [vmem:[#allocation4 + $0x7c8] sm:$0xff]
    %v827 = vld [vmem:[#allocation4 + $0x7d0] sm:$0xff]
    %v828 = vld [vmem:[#allocation4 + $0x7d8] sm:$0xff]
    %v829 = vld [vmem:[#allocation4 + $0x7e0] sm:$0xff]
    %v830 = vld [vmem:[#allocation4 + $0x7e8] sm:$0xff]
    %v831 = vld [vmem:[#allocation4 + $0x7f0] sm:$0xff]
    %v832 = vld [vmem:[#allocation4 + $0x7f8] sm:$0xff]
    %v833 = vld [vmem:[#allocation5] sm:$0xff]
    %v835 = vlaneseq
    %v836 = vshrl.u32 %v835, 7
    %v837 = vsub.s32 0, %v836
    %v838 = vrot.slane %v833, %v837
    %v839 = vlaneseq
    %v840 = vshrl.u32 %v839, 7
    %v841 = vsub.s32 1, %v840
    %v842 = vrot.slane %v833, %v841
    %v843 = vlaneseq
    %v844 = vshrl.u32 %v843, 7
    %v845 = vsub.s32 2, %v844
    %v846 = vrot.slane %v833, %v845
    %v847 = vlaneseq
    %v848 = vshrl.u32 %v847, 7
    %v849 = vsub.s32 3, %v848
    %v850 = vrot.slane %v833, %v849
    %v851 = vlaneseq
    %v852 = vshrl.u32 %v851, 7
    %v853 = vsub.s32 4, %v852
    %v854 = vrot.slane %v833, %v853
    %v855 = vlaneseq
    %v856 = vshrl.u32 %v855, 7
    %v857 = vsub.s32 5, %v856
    %v858 = vrot.slane %v833, %v857
    %v859 = vlaneseq
    %v860 = vshrl.u32 %v859, 7
    %v861 = vsub.s32 6, %v860
    %v862 = vrot.slane %v833, %v861
    %v863 = vlaneseq
    %v864 = vshrl.u32 %v863, 7
    %v865 = vsub.s32 7, %v864
    %v866 = vrot.slane %v833, %v865
    %875 = vmatprep.subr.bf16.mxu0 %v578
    %876 = vmatpush1.bf16.msra.mxu0 %v577
    %877 = vmatprep.subr.bf16.mxu0 %v586
    %878 = vmatpush1.bf16.msra.mxu0 %v585
    %879 = vmatprep.subr.bf16.mxu0 %v594
    %880 = vmatpush1.bf16.msra.mxu0 %v593
    %881 = vmatprep.subr.bf16.mxu0 %v602
    %882 = vmatpush1.bf16.msra.mxu0 %v601
    %883 = vmatprep.subr.bf16.mxu0 %v610
    %884 = vmatpush1.bf16.msra.mxu0 %v609
    %885 = vmatprep.subr.bf16.mxu0 %v618
    %886 = vmatpush1.bf16.msra.mxu0 %v617
    %887 = vmatprep.subr.bf16.mxu0 %v626
    %888 = vmatpush1.bf16.msra.mxu0 %v625
    %889 = vmatprep.subr.bf16.mxu0 %v634
    %890 = vmatpush1.bf16.msra.mxu0 %v633
    %891 = vmatprep.subr.bf16.mxu0 %v642
    %892 = vmatpush1.bf16.msra.mxu0 %v641
    %893 = vmatprep.subr.bf16.mxu0 %v650
    %894 = vmatpush1.bf16.msra.mxu0 %v649
    %895 = vmatprep.subr.bf16.mxu0 %v658
    %896 = vmatpush1.bf16.msra.mxu0 %v657
    %897 = vmatprep.subr.bf16.mxu0 %v666
    %898 = vmatpush1.bf16.msra.mxu0 %v665
    %899 = vmatprep.subr.bf16.mxu0 %v674
    %900 = vmatpush1.bf16.msra.mxu0 %v673
    %901 = vmatprep.subr.bf16.mxu0 %v682
    %902 = vmatpush1.bf16.msra.mxu0 %v681
    %903 = vmatprep.subr.bf16.mxu0 %v690
    %904 = vmatpush1.bf16.msra.mxu0 %v689
    %905 = vmatprep.subr.bf16.mxu0 %v698
    %906 = vmatpush1.bf16.msra.mxu0 %v697
    %907 = vmatprep.mubr.bf16.mxu0 %v567
    %908 = vmatmul.mubr.bf16.gmra.mrb[0].mxu0 %v566
    %v909 = vpop.f32.mrb[0].mxu0
    %v910 = vadd.f32 %v838, %v909
    %v911 = vpop.f32.mrb[0].mxu0
    %v912 = vadd.f32 %v842, %v911
    %v913 = vpop.f32.mrb[0].mxu0
    %v914 = vadd.f32 %v838, %v913
    %v915 = vpop.f32.mrb[0].mxu0
    %v916 = vadd.f32 %v842, %v915
    %917 = vdwg.mxu0
    %918 = vmatprep.subr.bf16.mxu0 %v706
    %919 = vmatpush1.bf16.msra.mxu0 %v705
    %920 = vmatprep.subr.bf16.mxu0 %v714
    %921 = vmatpush1.bf16.msra.mxu0 %v713
    %922 = vmatprep.subr.bf16.mxu0 %v722
    %923 = vmatpush1.bf16.msra.mxu0 %v721
    %924 = vmatprep.subr.bf16.mxu0 %v730
    %925 = vmatpush1.bf16.msra.mxu0 %v729
    %926 = vmatprep.subr.bf16.mxu0 %v738
    %927 = vmatpush1.bf16.msra.mxu0 %v737
    %928 = vmatprep.subr.bf16.mxu0 %v746
    %929 = vmatpush1.bf16.msra.mxu0 %v745
    %930 = vmatprep.subr.bf16.mxu0 %v754
    %931 = vmatpush1.bf16.msra.mxu0 %v753
    %932 = vmatprep.subr.bf16.mxu0 %v762
    %933 = vmatpush1.bf16.msra.mxu0 %v761
    %934 = vmatprep.subr.bf16.mxu0 %v770
    %935 = vmatpush1.bf16.msra.mxu0 %v769
    %936 = vmatprep.subr.bf16.mxu0 %v778
    %937 = vmatpush1.bf16.msra.mxu0 %v777
    %938 = vmatprep.subr.bf16.mxu0 %v786
    %939 = vmatpush1.bf16.msra.mxu0 %v785
    %940 = vmatprep.subr.bf16.mxu0 %v794
    %941 = vmatpush1.bf16.msra.mxu0 %v793
    %942 = vmatprep.subr.bf16.mxu0 %v802
    %943 = vmatpush1.bf16.msra.mxu0 %v801
    %944 = vmatprep.subr.bf16.mxu0 %v810
    %945 = vmatpush1.bf16.msra.mxu0 %v809
    %946 = vmatprep.subr.bf16.mxu0 %v818
    %947 = vmatpush1.bf16.msra.mxu0 %v817
    %948 = vmatprep.subr.bf16.mxu0 %v826
    %949 = vmatpush1.bf16.msra.mxu0 %v825
    %950 = vmatprep.mubr.bf16.mxu0 %v569
    %951 = vmatmul.mubr.bf16.gmra.mrb[0].mxu0 %v568
    %v952 = vpop.f32.mrb[0].mxu0
    %v953 = vadd.f32 %v910, %v952
    %v954 = vpop.f32.mrb[0].mxu0
    %v955 = vadd.f32 %v912, %v954
    %v956 = vpop.f32.mrb[0].mxu0
    %v957 = vadd.f32 %v914, %v956
    %v958 = vpop.f32.mrb[0].mxu0
    %v959 = vadd.f32 %v916, %v958
    %960 = vdwg.mxu0
    %961 = vmatprep.subr.bf16.mxu0 %v580
    %962 = vmatpush1.bf16.msra.mxu0 %v579
    %963 = vmatprep.subr.bf16.mxu0 %v588
    %964 = vmatpush1.bf16.msra.mxu0 %v587
    %965 = vmatprep.subr.bf16.mxu0 %v596
    %966 = vmatpush1.bf16.msra.mxu0 %v595
    %967 = vmatprep.subr.bf16.mxu0 %v604
    %968 = vmatpush1.bf16.msra.mxu0 %v603
    %969 = vmatprep.subr.bf16.mxu0 %v612
    %970 = vmatpush1.bf16.msra.mxu0 %v611
    %971 = vmatprep.subr.bf16.mxu0 %v620
    %972 = vmatpush1.bf16.msra.mxu0 %v619
    %973 = vmatprep.subr.bf16.mxu0 %v628
    %974 = vmatpush1.bf16.msra.mxu0 %v627
    %975 = vmatprep.subr.bf16.mxu0 %v636
    %976 = vmatpush1.bf16.msra.mxu0 %v635
    %977 = vmatprep.subr.bf16.mxu0 %v644
    %978 = vmatpush1.bf16.msra.mxu0 %v643
    %979 = vmatprep.subr.bf16.mxu0 %v652
    %980 = vmatpush1.bf16.msra.mxu0 %v651
    %981 = vmatprep.subr.bf16.mxu0 %v660
    %982 = vmatpush1.bf16.msra.mxu0 %v659
    %983 = vmatprep.subr.bf16.mxu0 %v668
    %984 = vmatpush1.bf16.msra.mxu0 %v667
    %985 = vmatprep.subr.bf16.mxu0 %v676
    %986 = vmatpush1.bf16.msra.mxu0 %v675
    %987 = vmatprep.subr.bf16.mxu0 %v684
    %988 = vmatpush1.bf16.msra.mxu0 %v683
    %989 = vmatprep.subr.bf16.mxu0 %v692
    %990 = vmatpush1.bf16.msra.mxu0 %v691
    %991 = vmatprep.subr.bf16.mxu0 %v700
    %992 = vmatpush1.bf16.msra.mxu0 %v699
    %993 = vmatprep.mubr.bf16.mxu0 %v567
    %994 = vmatmul.mubr.bf16.gmra.mrb[0].mxu0 %v566
    %v995 = vpop.f32.mrb[0].mxu0
    %v996 = vadd.f32 %v846, %v995
    %v997 = vpop.f32.mrb[0].mxu0
    %v998 = vadd.f32 %v850, %v997
    %v999 = vpop.f32.mrb[0].mxu0
    %v1000 = vadd.f32 %v846, %v999
    %v1001 = vpop.f32.mrb[0].mxu0
    %v1002 = vadd.f32 %v850, %v1001
    %1003 = vdwg.mxu0
    %1004 = vmatprep.subr.bf16.mxu0 %v708
    %1005 = vmatpush1.bf16.msra.mxu0 %v707
    %1006 = vmatprep.subr.bf16.mxu0 %v716
    %1007 = vmatpush1.bf16.msra.mxu0 %v715
    %1008 = vmatprep.subr.bf16.mxu0 %v724
    %1009 = vmatpush1.bf16.msra.mxu0 %v723
    %1010 = vmatprep.subr.bf16.mxu0 %v732
    %1011 = vmatpush1.bf16.msra.mxu0 %v731
    %1012 = vmatprep.subr.bf16.mxu0 %v740
    %1013 = vmatpush1.bf16.msra.mxu0 %v739
    %1014 = vmatprep.subr.bf16.mxu0 %v748
    %1015 = vmatpush1.bf16.msra.mxu0 %v747
    %1016 = vmatprep.subr.bf16.mxu0 %v756
    %1017 = vmatpush1.bf16.msra.mxu0 %v755
    %1018 = vmatprep.subr.bf16.mxu0 %v764
    %1019 = vmatpush1.bf16.msra.mxu0 %v763
    %1020 = vmatprep.subr.bf16.mxu0 %v772
    %1021 = vmatpush1.bf16.msra.mxu0 %v771
    %1022 = vmatprep.subr.bf16.mxu0 %v780
    %1023 = vmatpush1.bf16.msra.mxu0 %v779
    %1024 = vmatprep.subr.bf16.mxu0 %v788
    %1025 = vmatpush1.bf16.msra.mxu0 %v787
    %1026 = vmatprep.subr.bf16.mxu0 %v796
    %1027 = vmatpush1.bf16.msra.mxu0 %v795
    %1028 = vmatprep.subr.bf16.mxu0 %v804
    %1029 = vmatpush1.bf16.msra.mxu0 %v803
    %1030 = vmatprep.subr.bf16.mxu0 %v812
    %1031 = vmatpush1.bf16.msra.mxu0 %v811
    %1032 = vmatprep.subr.bf16.mxu0 %v820
    %1033 = vmatpush1.bf16.msra.mxu0 %v819
    %1034 = vmatprep.subr.bf16.mxu0 %v828
    %1035 = vmatpush1.bf16.msra.mxu0 %v827
    %1036 = vmatprep.mubr.bf16.mxu0 %v569
    %1037 = vmatmul.mubr.bf16.gmra.mrb[0].mxu0 %v568
    %v1038 = vpop.f32.mrb[0].mxu0
    %v1039 = vadd.f32 %v996, %v1038
    %v1040 = vpop.f32.mrb[0].mxu0
    %v1041 = vadd.f32 %v998, %v1040
    %v1042 = vpop.f32.mrb[0].mxu0
    %v1043 = vadd.f32 %v1000, %v1042
    %v1044 = vpop.f32.mrb[0].mxu0
    %v1045 = vadd.f32 %v1002, %v1044
    %1046 = vdwg.mxu0
    %1047 = vmatprep.subr.bf16.mxu0 %v582
    %1048 = vmatpush1.bf16.msra.mxu0 %v581
    %1049 = vmatprep.subr.bf16.mxu0 %v590
    %1050 = vmatpush1.bf16.msra.mxu0 %v589
    %1051 = vmatprep.subr.bf16.mxu0 %v598
    %1052 = vmatpush1.bf16.msra.mxu0 %v597
    %1053 = vmatprep.subr.bf16.mxu0 %v606
    %1054 = vmatpush1.bf16.msra.mxu0 %v605
    %1055 = vmatprep.subr.bf16.mxu0 %v614
    %1056 = vmatpush1.bf16.msra.mxu0 %v613
    %1057 = vmatprep.subr.bf16.mxu0 %v622
    %1058 = vmatpush1.bf16.msra.mxu0 %v621
    %1059 = vmatprep.subr.bf16.mxu0 %v630
    %1060 = vmatpush1.bf16.msra.mxu0 %v629
    %1061 = vmatprep.subr.bf16.mxu0 %v638
    %1062 = vmatpush1.bf16.msra.mxu0 %v637
    %1063 = vmatprep.subr.bf16.mxu0 %v646
    %1064 = vmatpush1.bf16.msra.mxu0 %v645
    %1065 = vmatprep.subr.bf16.mxu0 %v654
    %1066 = vmatpush1.bf16.msra.mxu0 %v653
    %1067 = vmatprep.subr.bf16.mxu0 %v662
    %1068 = vmatpush1.bf16.msra.mxu0 %v661
    %1069 = vmatprep.subr.bf16.mxu0 %v670
    %1070 = vmatpush1.bf16.msra.mxu0 %v669
    %1071 = vmatprep.subr.bf16.mxu0 %v678
    %1072 = vmatpush1.bf16.msra.mxu0 %v677
    %1073 = vmatprep.subr.bf16.mxu0 %v686
    %1074 = vmatpush1.bf16.msra.mxu0 %v685
    %1075 = vmatprep.subr.bf16.mxu0 %v694
    %1076 = vmatpush1.bf16.msra.mxu0 %v693
    %1077 = vmatprep.subr.bf16.mxu0 %v702
    %1078 = vmatpush1.bf16.msra.mxu0 %v701
    %1079 = vmatprep.mubr.bf16.mxu0 %v567
    %1080 = vmatmul.mubr.bf16.gmra.mrb[0].mxu0 %v566
    %v1081 = vpop.f32.mrb[0].mxu0
    %v1082 = vadd.f32 %v854, %v1081
    %v1083 = vpop.f32.mrb[0].mxu0
    %v1084 = vadd.f32 %v858, %v1083
    %v1085 = vpop.f32.mrb[0].mxu0
    %v1086 = vadd.f32 %v854, %v1085
    %v1087 = vpop.f32.mrb[0].mxu0
    %v1088 = vadd.f32 %v858, %v1087
    %1089 = vdwg.mxu0
    %1090 = vmatprep.subr.bf16.mxu0 %v710
    %1091 = vmatpush1.bf16.msra.mxu0 %v709
    %1092 = vmatprep.subr.bf16.mxu0 %v718
    %1093 = vmatpush1.bf16.msra.mxu0 %v717
    %1094 = vmatprep.subr.bf16.mxu0 %v726
    %1095 = vmatpush1.bf16.msra.mxu0 %v725
    %1096 = vmatprep.subr.bf16.mxu0 %v734
    %1097 = vmatpush1.bf16.msra.mxu0 %v733
    %1098 = vmatprep.subr.bf16.mxu0 %v742
    %1099 = vmatpush1.bf16.msra.mxu0 %v741
    %1100 = vmatprep.subr.bf16.mxu0 %v750
    %1101 = vmatpush1.bf16.msra.mxu0 %v749
    %1102 = vmatprep.subr.bf16.mxu0 %v758
    %1103 = vmatpush1.bf16.msra.mxu0 %v757
    %1104 = vmatprep.subr.bf16.mxu0 %v766
    %1105 = vmatpush1.bf16.msra.mxu0 %v765
    %1106 = vmatprep.subr.bf16.mxu0 %v774
    %1107 = vmatpush1.bf16.msra.mxu0 %v773
    %1108 = vmatprep.subr.bf16.mxu0 %v782
    %1109 = vmatpush1.bf16.msra.mxu0 %v781
    %1110 = vmatprep.subr.bf16.mxu0 %v790
    %1111 = vmatpush1.bf16.msra.mxu0 %v789
    %1112 = vmatprep.subr.bf16.mxu0 %v798
    %1113 = vmatpush1.bf16.msra.mxu0 %v797
    %1114 = vmatprep.subr.bf16.mxu0 %v806
    %1115 = vmatpush1.bf16.msra.mxu0 %v805
    %1116 = vmatprep.subr.bf16.mxu0 %v814
    %1117 = vmatpush1.bf16.msra.mxu0 %v813
    %1118 = vmatprep.subr.bf16.mxu0 %v822
    %1119 = vmatpush1.bf16.msra.mxu0 %v821
    %1120 = vmatprep.subr.bf16.mxu0 %v830
    %1121 = vmatpush1.bf16.msra.mxu0 %v829
    %1122 = vmatprep.mubr.bf16.mxu0 %v569
    %1123 = vmatmul.mubr.bf16.gmra.mrb[0].mxu0 %v568
    %v1124 = vpop.f32.mrb[0].mxu0
    %v1125 = vadd.f32 %v1082, %v1124
    %v1126 = vpop.f32.mrb[0].mxu0
    %v1127 = vadd.f32 %v1084, %v1126
    %v1128 = vpop.f32.mrb[0].mxu0
    %v1129 = vadd.f32 %v1086, %v1128
    %v1130 = vpop.f32.mrb[0].mxu0
    %v1131 = vadd.f32 %v1088, %v1130
    %1132 = vdwg.mxu0
    %1133 = vmatprep.subr.bf16.mxu0 %v584
    %1134 = vmatpush1.bf16.msra.mxu0 %v583
    %1135 = vmatprep.subr.bf16.mxu0 %v592
    %1136 = vmatpush1.bf16.msra.mxu0 %v591
    %1137 = vmatprep.subr.bf16.mxu0 %v600
    %1138 = vmatpush1.bf16.msra.mxu0 %v599
    %1139 = vmatprep.subr.bf16.mxu0 %v608
    %1140 = vmatpush1.bf16.msra.mxu0 %v607
    %1141 = vmatprep.subr.bf16.mxu0 %v616
    %1142 = vmatpush1.bf16.msra.mxu0 %v615
    %1143 = vmatprep.subr.bf16.mxu0 %v624
    %1144 = vmatpush1.bf16.msra.mxu0 %v623
    %1145 = vmatprep.subr.bf16.mxu0 %v632
    %1146 = vmatpush1.bf16.msra.mxu0 %v631
    %1147 = vmatprep.subr.bf16.mxu0 %v640
    %1148 = vmatpush1.bf16.msra.mxu0 %v639
    %1149 = vmatprep.subr.bf16.mxu0 %v648
    %1150 = vmatpush1.bf16.msra.mxu0 %v647
    %1151 = vmatprep.subr.bf16.mxu0 %v656
    %1152 = vmatpush1.bf16.msra.mxu0 %v655
    %1153 = vmatprep.subr.bf16.mxu0 %v664
    %1154 = vmatpush1.bf16.msra.mxu0 %v663
    %1155 = vmatprep.subr.bf16.mxu0 %v672
    %1156 = vmatpush1.bf16.msra.mxu0 %v671
    %1157 = vmatprep.subr.bf16.mxu0 %v680
    %1158 = vmatpush1.bf16.msra.mxu0 %v679
    %1159 = vmatprep.subr.bf16.mxu0 %v688
    %1160 = vmatpush1.bf16.msra.mxu0 %v687
    %1161 = vmatprep.subr.bf16.mxu0 %v696
    %1162 = vmatpush1.bf16.msra.mxu0 %v695
    %1163 = vmatprep.subr.bf16.mxu0 %v704
    %1164 = vmatpush1.bf16.msra.mxu0 %v703
    %1165 = vmatprep.mubr.bf16.mxu0 %v567
    %1166 = vmatmul.mubr.bf16.gmra.mrb[0].mxu0 %v566
    %v1167 = vpop.f32.mrb[0].mxu0
    %v1168 = vadd.f32 %v862, %v1167
    %v1169 = vpop.f32.mrb[0].mxu0
    %v1170 = vadd.f32 %v866, %v1169
    %v1171 = vpop.f32.mrb[0].mxu0
    %v1172 = vadd.f32 %v862, %v1171
    %v1173 = vpop.f32.mrb[0].mxu0
    %v1174 = vadd.f32 %v866, %v1173
    %1175 = vdwg.mxu0
    %1176 = vmatprep.subr.bf16.mxu0 %v712
    %1177 = vmatpush1.bf16.msra.mxu0 %v711
    %1178 = vmatprep.subr.bf16.mxu0 %v720
    %1179 = vmatpush1.bf16.msra.mxu0 %v719
    %1180 = vmatprep.subr.bf16.mxu0 %v728
    %1181 = vmatpush1.bf16.msra.mxu0 %v727
    %1182 = vmatprep.subr.bf16.mxu0 %v736
    %1183 = vmatpush1.bf16.msra.mxu0 %v735
    %1184 = vmatprep.subr.bf16.mxu0 %v744
    %1185 = vmatpush1.bf16.msra.mxu0 %v743
    %1186 = vmatprep.subr.bf16.mxu0 %v752
    %1187 = vmatpush1.bf16.msra.mxu0 %v751
    %1188 = vmatprep.subr.bf16.mxu0 %v760
    %1189 = vmatpush1.bf16.msra.mxu0 %v759
    %1190 = vmatprep.subr.bf16.mxu0 %v768
    %1191 = vmatpush1.bf16.msra.mxu0 %v767
    %1192 = vmatprep.subr.bf16.mxu0 %v776
    %1193 = vmatpush1.bf16.msra.mxu0 %v775
    %1194 = vmatprep.subr.bf16.mxu0 %v784
    %1195 = vmatpush1.bf16.msra.mxu0 %v783
    %1196 = vmatprep.subr.bf16.mxu0 %v792
    %1197 = vmatpush1.bf16.msra.mxu0 %v791
    %1198 = vmatprep.subr.bf16.mxu0 %v800
    %1199 = vmatpush1.bf16.msra.mxu0 %v799
    %1200 = vmatprep.subr.bf16.mxu0 %v808
    %1201 = vmatpush1.bf16.msra.mxu0 %v807
    %1202 = vmatprep.subr.bf16.mxu0 %v816
    %1203 = vmatpush1.bf16.msra.mxu0 %v815
    %1204 = vmatprep.subr.bf16.mxu0 %v824
    %1205 = vmatpush1.bf16.msra.mxu0 %v823
    %1206 = vmatprep.subr.bf16.mxu0 %v832
    %1207 = vmatpush1.bf16.msra.mxu0 %v831
    %1208 = vmatprep.mubr.bf16.mxu0 %v569
    %1209 = vmatmul.mubr.bf16.gmra.mrb[0].mxu0 %v568
    %v1210 = vpop.f32.mrb[0].mxu0
    %v1211 = vadd.f32 %v1168, %v1210
    %v1212 = vpop.f32.mrb[0].mxu0
    %v1213 = vadd.f32 %v1170, %v1212
    %v1214 = vpop.f32.mrb[0].mxu0
    %v1215 = vadd.f32 %v1172, %v1214
    %v1216 = vpop.f32.mrb[0].mxu0
    %v1217 = vadd.f32 %v1174, %v1216
    %1218 = vdwg.mxu0
    %v1219 = vmul.f32 %v953, 0.01
    %v1220 = vmul.f32 %v955, 0.01
    %v1221 = vmul.f32 %v1039, 0.01
    %v1222 = vmul.f32 %v1041, 0.01
    %v1223 = vmul.f32 %v1125, 0.01
    %v1224 = vmul.f32 %v1127, 0.01
    %v1225 = vmul.f32 %v1211, 0.01
    %v1226 = vmul.f32 %v1213, 0.01
    %v1227 = vmul.f32 %v957, 0.01
    %v1228 = vmul.f32 %v959, 0.01
    %v1229 = vmul.f32 %v1043, 0.01
    %v1230 = vmul.f32 %v1045, 0.01
    %v1231 = vmul.f32 %v1129, 0.01
    %v1232 = vmul.f32 %v1131, 0.01
    %v1233 = vmul.f32 %v1215, 0.01
    %v1234 = vmul.f32 %v1217, 0.01
    %v1235 = vmax.f32 %v953, %v1219
    %v1236 = vmax.f32 %v955, %v1220
    %v1237 = vmax.f32 %v1039, %v1221
    %v1238 = vmax.f32 %v1041, %v1222
    %v1239 = vmax.f32 %v1125, %v1223
    %v1240 = vmax.f32 %v1127, %v1224
    %v1241 = vmax.f32 %v1211, %v1225
    %v1242 = vmax.f32 %v1213, %v1226
    %v1243 = vmax.f32 %v957, %v1227
    %v1244 = vmax.f32 %v959, %v1228
    %v1245 = vmax.f32 %v1043, %v1229
    %v1246 = vmax.f32 %v1045, %v1230
    %v1247 = vmax.f32 %v1129, %v1231
    %v1248 = vmax.f32 %v1131, %v1232
    %v1249 = vmax.f32 %v1215, %v1233
    %v1250 = vmax.f32 %v1217, %v1234
    %v1251 = vpack.c.bf16 %v1243, %v1235
    %v1252 = vpack.c.bf16 %v1244, %v1236
    %v1253 = vpack.c.bf16 %v1245, %v1237
    %v1254 = vpack.c.bf16 %v1246, %v1238
    %v1255 = vpack.c.bf16 %v1247, %v1239
    %v1256 = vpack.c.bf16 %v1248, %v1240
    %v1257 = vpack.c.bf16 %v1249, %v1241
    %v1258 = vpack.c.bf16 %v1250, %v1242
    %s1259 = smul.u32 4, 128
    %s1260 = smul.u32 %s1259, 7
    %s1261 = sshll.u32 %s1260, 4
    %1262 = dma.done %s155, %s1261
    %s1263 = smul.u32 1, 7
    %s1264 = sshll.u32 %s1263, 4
    %1265 = dma.done %s190, %s1264
    %v1266 = vld [vmem:[#allocation6] sm:$0xff]
    %v1267 = vld [vmem:[#allocation6 + $0x8] sm:$0xff]
    %v1268 = vld [vmem:[#allocation6 + $0x10] sm:$0xff]
    %v1269 = vld [vmem:[#allocation6 + $0x18] sm:$0xff]
    %v1270 = vld [vmem:[#allocation6 + $0x20] sm:$0xff]
    %v1271 = vld [vmem:[#allocation6 + $0x28] sm:$0xff]
    %v1272 = vld [vmem:[#allocation6 + $0x30] sm:$0xff]
    %v1273 = vld [vmem:[#allocation6 + $0x38] sm:$0xff]
    %v1274 = vld [vmem:[#allocation6 + $0x40] sm:$0xff]
    %v1275 = vld [vmem:[#allocation6 + $0x48] sm:$0xff]
    %v1276 = vld [vmem:[#allocation6 + $0x50] sm:$0xff]
    %v1277 = vld [vmem:[#allocation6 + $0x58] sm:$0xff]
    %v1278 = vld [vmem:[#allocation6 + $0x60] sm:$0xff]
    %v1279 = vld [vmem:[#allocation6 + $0x68] sm:$0xff]
    %v1280 = vld [vmem:[#allocation6 + $0x70] sm:$0xff]
    %v1281 = vld [vmem:[#allocation6 + $0x78] sm:$0xff]
    %v1282 = vld [vmem:[#allocation6 + $0x80] sm:$0xff]
    %v1283 = vld [vmem:[#allocation6 + $0x88] sm:$0xff]
    %v1284 = vld [vmem:[#allocation6 + $0x90] sm:$0xff]
    %v1285 = vld [vmem:[#allocation6 + $0x98] sm:$0xff]
    %v1286 = vld [vmem:[#allocation6 + $0xa0] sm:$0xff]
    %v1287 = vld [vmem:[#allocation6 + $0xa8] sm:$0xff]
    %v1288 = vld [vmem:[#allocation6 + $0xb0] sm:$0xff]
    %v1289 = vld [vmem:[#allocation6 + $0xb8] sm:$0xff]
    %v1290 = vld [vmem:[#allocation6 + $0xc0] sm:$0xff]
    %v1291 = vld [vmem:[#allocation6 + $0xc8] sm:$0xff]
    %v1292 = vld [vmem:[#allocation6 + $0xd0] sm:$0xff]
    %v1293 = vld [vmem:[#allocation6 + $0xd8] sm:$0xff]
    %v1294 = vld [vmem:[#allocation6 + $0xe0] sm:$0xff]
    %v1295 = vld [vmem:[#allocation6 + $0xe8] sm:$0xff]
    %v1296 = vld [vmem:[#allocation6 + $0xf0] sm:$0xff]
    %v1297 = vld [vmem:[#allocation6 + $0xf8] sm:$0xff]
    %v1298 = vld [vmem:[#allocation6 + $0x100] sm:$0xff]
    %v1299 = vld [vmem:[#allocation6 + $0x108] sm:$0xff]
    %v1300 = vld [vmem:[#allocation6 + $0x110] sm:$0xff]
    %v1301 = vld [vmem:[#allocation6 + $0x118] sm:$0xff]
    %v1302 = vld [vmem:[#allocation6 + $0x120] sm:$0xff]
    %v1303 = vld [vmem:[#allocation6 + $0x128] sm:$0xff]
    %v1304 = vld [vmem:[#allocation6 + $0x130] sm:$0xff]
    %v1305 = vld [vmem:[#allocation6 + $0x138] sm:$0xff]
    %v1306 = vld [vmem:[#allocation6 + $0x140] sm:$0xff]
    %v1307 = vld [vmem:[#allocation6 + $0x148] sm:$0xff]
    %v1308 = vld [vmem:[#allocation6 + $0x150] sm:$0xff]
    %v1309 = vld [vmem:[#allocation6 + $0x158] sm:$0xff]
    %v1310 = vld [vmem:[#allocation6 + $0x160] sm:$0xff]
    %v1311 = vld [vmem:[#allocation6 + $0x168] sm:$0xff]
    %v1312 = vld [vmem:[#allocation6 + $0x170] sm:$0xff]
    %v1313 = vld [vmem:[#allocation6 + $0x178] sm:$0xff]
    %v1314 = vld [vmem:[#allocation6 + $0x180] sm:$0xff]
    %v1315 = vld [vmem:[#allocation6 + $0x188] sm:$0xff]
    %v1316 = vld [vmem:[#allocation6 + $0x190] sm:$0xff]
    %v1317 = vld [vmem:[#allocation6 + $0x198] sm:$0xff]
    %v1318 = vld [vmem:[#allocation6 + $0x1a0] sm:$0xff]
    %v1319 = vld [vmem:[#allocation6 + $0x1a8] sm:$0xff]
    %v1320 = vld [vmem:[#allocation6 + $0x1b0] sm:$0xff]
    %v1321 = vld [vmem:[#allocation6 + $0x1b8] sm:$0xff]
    %v1322 = vld [vmem:[#allocation6 + $0x1c0] sm:$0xff]
    %v1323 = vld [vmem:[#allocation6 + $0x1c8] sm:$0xff]
    %v1324 = vld [vmem:[#allocation6 + $0x1d0] sm:$0xff]
    %v1325 = vld [vmem:[#allocation6 + $0x1d8] sm:$0xff]
    %v1326 = vld [vmem:[#allocation6 + $0x1e0] sm:$0xff]
    %v1327 = vld [vmem:[#allocation6 + $0x1e8] sm:$0xff]
    %v1328 = vld [vmem:[#allocation6 + $0x1f0] sm:$0xff]
    %v1329 = vld [vmem:[#allocation6 + $0x1f8] sm:$0xff]
    %v1330 = vld [vmem:[#allocation6 + $0x200] sm:$0xff]
    %v1331 = vld [vmem:[#allocation6 + $0x208] sm:$0xff]
    %v1332 = vld [vmem:[#allocation6 + $0x210] sm:$0xff]
    %v1333 = vld [vmem:[#allocation6 + $0x218] sm:$0xff]
    %v1334 = vld [vmem:[#allocation6 + $0x220] sm:$0xff]
    %v1335 = vld [vmem:[#allocation6 + $0x228] sm:$0xff]
    %v1336 = vld [vmem:[#allocation6 + $0x230] sm:$0xff]
    %v1337 = vld [vmem:[#allocation6 + $0x238] sm:$0xff]
    %v1338 = vld [vmem:[#allocation6 + $0x240] sm:$0xff]
    %v1339 = vld [vmem:[#allocation6 + $0x248] sm:$0xff]
    %v1340 = vld [vmem:[#allocation6 + $0x250] sm:$0xff]
    %v1341 = vld [vmem:[#allocation6 + $0x258] sm:$0xff]
    %v1342 = vld [vmem:[#allocation6 + $0x260] sm:$0xff]
    %v1343 = vld [vmem:[#allocation6 + $0x268] sm:$0xff]
    %v1344 = vld [vmem:[#allocation6 + $0x270] sm:$0xff]
    %v1345 = vld [vmem:[#allocation6 + $0x278] sm:$0xff]
    %v1346 = vld [vmem:[#allocation6 + $0x280] sm:$0xff]
    %v1347 = vld [vmem:[#allocation6 + $0x288] sm:$0xff]
    %v1348 = vld [vmem:[#allocation6 + $0x290] sm:$0xff]
    %v1349 = vld [vmem:[#allocation6 + $0x298] sm:$0xff]
    %v1350 = vld [vmem:[#allocation6 + $0x2a0] sm:$0xff]
    %v1351 = vld [vmem:[#allocation6 + $0x2a8] sm:$0xff]
    %v1352 = vld [vmem:[#allocation6 + $0x2b0] sm:$0xff]
    %v1353 = vld [vmem:[#allocation6 + $0x2b8] sm:$0xff]
    %v1354 = vld [vmem:[#allocation6 + $0x2c0] sm:$0xff]
    %v1355 = vld [vmem:[#allocation6 + $0x2c8] sm:$0xff]
    %v1356 = vld [vmem:[#allocation6 + $0x2d0] sm:$0xff]
    %v1357 = vld [vmem:[#allocation6 + $0x2d8] sm:$0xff]
    %v1358 = vld [vmem:[#allocation6 + $0x2e0] sm:$0xff]
    %v1359 = vld [vmem:[#allocation6 + $0x2e8] sm:$0xff]
    %v1360 = vld [vmem:[#allocation6 + $0x2f0] sm:$0xff]
    %v1361 = vld [vmem:[#allocation6 + $0x2f8] sm:$0xff]
    %v1362 = vld [vmem:[#allocation6 + $0x300] sm:$0xff]
    %v1363 = vld [vmem:[#allocation6 + $0x308] sm:$0xff]
    %v1364 = vld [vmem:[#allocation6 + $0x310] sm:$0xff]
    %v1365 = vld [vmem:[#allocation6 + $0x318] sm:$0xff]
    %v1366 = vld [vmem:[#allocation6 + $0x320] sm:$0xff]
    %v1367 = vld [vmem:[#allocation6 + $0x328] sm:$0xff]
    %v1368 = vld [vmem:[#allocation6 + $0x330] sm:$0xff]
    %v1369 = vld [vmem:[#allocation6 + $0x338] sm:$0xff]
    %v1370 = vld [vmem:[#allocation6 + $0x340] sm:$0xff]
    %v1371 = vld [vmem:[#allocation6 + $0x348] sm:$0xff]
    %v1372 = vld [vmem:[#allocation6 + $0x350] sm:$0xff]
    %v1373 = vld [vmem:[#allocation6 + $0x358] sm:$0xff]
    %v1374 = vld [vmem:[#allocation6 + $0x360] sm:$0xff]
    %v1375 = vld [vmem:[#allocation6 + $0x368] sm:$0xff]
    %v1376 = vld [vmem:[#allocation6 + $0x370] sm:$0xff]
    %v1377 = vld [vmem:[#allocation6 + $0x378] sm:$0xff]
    %v1378 = vld [vmem:[#allocation6 + $0x380] sm:$0xff]
    %v1379 = vld [vmem:[#allocation6 + $0x388] sm:$0xff]
    %v1380 = vld [vmem:[#allocation6 + $0x390] sm:$0xff]
    %v1381 = vld [vmem:[#allocation6 + $0x398] sm:$0xff]
    %v1382 = vld [vmem:[#allocation6 + $0x3a0] sm:$0xff]
    %v1383 = vld [vmem:[#allocation6 + $0x3a8] sm:$0xff]
    %v1384 = vld [vmem:[#allocation6 + $0x3b0] sm:$0xff]
    %v1385 = vld [vmem:[#allocation6 + $0x3b8] sm:$0xff]
    %v1386 = vld [vmem:[#allocation6 + $0x3c0] sm:$0xff]
    %v1387 = vld [vmem:[#allocation6 + $0x3c8] sm:$0xff]
    %v1388 = vld [vmem:[#allocation6 + $0x3d0] sm:$0xff]
    %v1389 = vld [vmem:[#allocation6 + $0x3d8] sm:$0xff]
    %v1390 = vld [vmem:[#allocation6 + $0x3e0] sm:$0xff]
    %v1391 = vld [vmem:[#allocation6 + $0x3e8] sm:$0xff]
    %v1392 = vld [vmem:[#allocation6 + $0x3f0] sm:$0xff]
    %v1393 = vld [vmem:[#allocation6 + $0x3f8] sm:$0xff]
    %v1394 = vld [vmem:[#allocation6 + $0x400] sm:$0xff]
    %v1395 = vld [vmem:[#allocation6 + $0x408] sm:$0xff]
    %v1396 = vld [vmem:[#allocation6 + $0x410] sm:$0xff]
    %v1397 = vld [vmem:[#allocation6 + $0x418] sm:$0xff]
    %v1398 = vld [vmem:[#allocation6 + $0x420] sm:$0xff]
    %v1399 = vld [vmem:[#allocation6 + $0x428] sm:$0xff]
    %v1400 = vld [vmem:[#allocation6 + $0x430] sm:$0xff]
    %v1401 = vld [vmem:[#allocation6 + $0x438] sm:$0xff]
    %v1402 = vld [vmem:[#allocation6 + $0x440] sm:$0xff]
    %v1403 = vld [vmem:[#allocation6 + $0x448] sm:$0xff]
    %v1404 = vld [vmem:[#allocation6 + $0x450] sm:$0xff]
    %v1405 = vld [vmem:[#allocation6 + $0x458] sm:$0xff]
    %v1406 = vld [vmem:[#allocation6 + $0x460] sm:$0xff]
    %v1407 = vld [vmem:[#allocation6 + $0x468] sm:$0xff]
    %v1408 = vld [vmem:[#allocation6 + $0x470] sm:$0xff]
    %v1409 = vld [vmem:[#allocation6 + $0x478] sm:$0xff]
    %v1410 = vld [vmem:[#allocation6 + $0x480] sm:$0xff]
    %v1411 = vld [vmem:[#allocation6 + $0x488] sm:$0xff]
    %v1412 = vld [vmem:[#allocation6 + $0x490] sm:$0xff]
    %v1413 = vld [vmem:[#allocation6 + $0x498] sm:$0xff]
    %v1414 = vld [vmem:[#allocation6 + $0x4a0] sm:$0xff]
    %v1415 = vld [vmem:[#allocation6 + $0x4a8] sm:$0xff]
    %v1416 = vld [vmem:[#allocation6 + $0x4b0] sm:$0xff]
    %v1417 = vld [vmem:[#allocation6 + $0x4b8] sm:$0xff]
    %v1418 = vld [vmem:[#allocation6 + $0x4c0] sm:$0xff]
    %v1419 = vld [vmem:[#allocation6 + $0x4c8] sm:$0xff]
    %v1420 = vld [vmem:[#allocation6 + $0x4d0] sm:$0xff]
    %v1421 = vld [vmem:[#allocation6 + $0x4d8] sm:$0xff]
    %v1422 = vld [vmem:[#allocation6 + $0x4e0] sm:$0xff]
    %v1423 = vld [vmem:[#allocation6 + $0x4e8] sm:$0xff]
    %v1424 = vld [vmem:[#allocation6 + $0x4f0] sm:$0xff]
    %v1425 = vld [vmem:[#allocation6 + $0x4f8] sm:$0xff]
    %v1426 = vld [vmem:[#allocation6 + $0x500] sm:$0xff]
    %v1427 = vld [vmem:[#allocation6 + $0x508] sm:$0xff]
    %v1428 = vld [vmem:[#allocation6 + $0x510] sm:$0xff]
    %v1429 = vld [vmem:[#allocation6 + $0x518] sm:$0xff]
    %v1430 = vld [vmem:[#allocation6 + $0x520] sm:$0xff]
    %v1431 = vld [vmem:[#allocation6 + $0x528] sm:$0xff]
    %v1432 = vld [vmem:[#allocation6 + $0x530] sm:$0xff]
    %v1433 = vld [vmem:[#allocation6 + $0x538] sm:$0xff]
    %v1434 = vld [vmem:[#allocation6 + $0x540] sm:$0xff]
    %v1435 = vld [vmem:[#allocation6 + $0x548] sm:$0xff]
    %v1436 = vld [vmem:[#allocation6 + $0x550] sm:$0xff]
    %v1437 = vld [vmem:[#allocation6 + $0x558] sm:$0xff]
    %v1438 = vld [vmem:[#allocation6 + $0x560] sm:$0xff]
    %v1439 = vld [vmem:[#allocation6 + $0x568] sm:$0xff]
    %v1440 = vld [vmem:[#allocation6 + $0x570] sm:$0xff]
    %v1441 = vld [vmem:[#allocation6 + $0x578] sm:$0xff]
    %v1442 = vld [vmem:[#allocation6 + $0x580] sm:$0xff]
    %v1443 = vld [vmem:[#allocation6 + $0x588] sm:$0xff]
    %v1444 = vld [vmem:[#allocation6 + $0x590] sm:$0xff]
    %v1445 = vld [vmem:[#allocation6 + $0x598] sm:$0xff]
    %v1446 = vld [vmem:[#allocation6 + $0x5a0] sm:$0xff]
    %v1447 = vld [vmem:[#allocation6 + $0x5a8] sm:$0xff]
    %v1448 = vld [vmem:[#allocation6 + $0x5b0] sm:$0xff]
    %v1449 = vld [vmem:[#allocation6 + $0x5b8] sm:$0xff]
    %v1450 = vld [vmem:[#allocation6 + $0x5c0] sm:$0xff]
    %v1451 = vld [vmem:[#allocation6 + $0x5c8] sm:$0xff]
    %v1452 = vld [vmem:[#allocation6 + $0x5d0] sm:$0xff]
    %v1453 = vld [vmem:[#allocation6 + $0x5d8] sm:$0xff]
    %v1454 = vld [vmem:[#allocation6 + $0x5e0] sm:$0xff]
    %v1455 = vld [vmem:[#allocation6 + $0x5e8] sm:$0xff]
    %v1456 = vld [vmem:[#allocation6 + $0x5f0] sm:$0xff]
    %v1457 = vld [vmem:[#allocation6 + $0x5f8] sm:$0xff]
    %v1458 = vld [vmem:[#allocation6 + $0x600] sm:$0xff]
    %v1459 = vld [vmem:[#allocation6 + $0x608] sm:$0xff]
    %v1460 = vld [vmem:[#allocation6 + $0x610] sm:$0xff]
    %v1461 = vld [vmem:[#allocation6 + $0x618] sm:$0xff]
    %v1462 = vld [vmem:[#allocation6 + $0x620] sm:$0xff]
    %v1463 = vld [vmem:[#allocation6 + $0x628] sm:$0xff]
    %v1464 = vld [vmem:[#allocation6 + $0x630] sm:$0xff]
    %v1465 = vld [vmem:[#allocation6 + $0x638] sm:$0xff]
    %v1466 = vld [vmem:[#allocation6 + $0x640] sm:$0xff]
    %v1467 = vld [vmem:[#allocation6 + $0x648] sm:$0xff]
    %v1468 = vld [vmem:[#allocation6 + $0x650] sm:$0xff]
    %v1469 = vld [vmem:[#allocation6 + $0x658] sm:$0xff]
    %v1470 = vld [vmem:[#allocation6 + $0x660] sm:$0xff]
    %v1471 = vld [vmem:[#allocation6 + $0x668] sm:$0xff]
    %v1472 = vld [vmem:[#allocation6 + $0x670] sm:$0xff]
    %v1473 = vld [vmem:[#allocation6 + $0x678] sm:$0xff]
    %v1474 = vld [vmem:[#allocation6 + $0x680] sm:$0xff]
    %v1475 = vld [vmem:[#allocation6 + $0x688] sm:$0xff]
    %v1476 = vld [vmem:[#allocation6 + $0x690] sm:$0xff]
    %v1477 = vld [vmem:[#allocation6 + $0x698] sm:$0xff]
    %v1478 = vld [vmem:[#allocation6 + $0x6a0] sm:$0xff]
    %v1479 = vld [vmem:[#allocation6 + $0x6a8] sm:$0xff]
    %v1480 = vld [vmem:[#allocation6 + $0x6b0] sm:$0xff]
    %v1481 = vld [vmem:[#allocation6 + $0x6b8] sm:$0xff]
    %v1482 = vld [vmem:[#allocation6 + $0x6c0] sm:$0xff]
    %v1483 = vld [vmem:[#allocation6 + $0x6c8] sm:$0xff]
    %v1484 = vld [vmem:[#allocation6 + $0x6d0] sm:$0xff]
    %v1485 = vld [vmem:[#allocation6 + $0x6d8] sm:$0xff]
    %v1486 = vld [vmem:[#allocation6 + $0x6e0] sm:$0xff]
    %v1487 = vld [vmem:[#allocation6 + $0x6e8] sm:$0xff]
    %v1488 = vld [vmem:[#allocation6 + $0x6f0] sm:$0xff]
    %v1489 = vld [vmem:[#allocation6 + $0x6f8] sm:$0xff]
    %v1490 = vld [vmem:[#allocation6 + $0x700] sm:$0xff]
    %v1491 = vld [vmem:[#allocation6 + $0x708] sm:$0xff]
    %v1492 = vld [vmem:[#allocation6 + $0x710] sm:$0xff]
    %v1493 = vld [vmem:[#allocation6 + $0x718] sm:$0xff]
    %v1494 = vld [vmem:[#allocation6 + $0x720] sm:$0xff]
    %v1495 = vld [vmem:[#allocation6 + $0x728] sm:$0xff]
    %v1496 = vld [vmem:[#allocation6 + $0x730] sm:$0xff]
    %v1497 = vld [vmem:[#allocation6 + $0x738] sm:$0xff]
    %v1498 = vld [vmem:[#allocation6 + $0x740] sm:$0xff]
    %v1499 = vld [vmem:[#allocation6 + $0x748] sm:$0xff]
    %v1500 = vld [vmem:[#allocation6 + $0x750] sm:$0xff]
    %v1501 = vld [vmem:[#allocation6 + $0x758] sm:$0xff]
    %v1502 = vld [vmem:[#allocation6 + $0x760] sm:$0xff]
    %v1503 = vld [vmem:[#allocation6 + $0x768] sm:$0xff]
    %v1504 = vld [vmem:[#allocation6 + $0x770] sm:$0xff]
    %v1505 = vld [vmem:[#allocation6 + $0x778] sm:$0xff]
    %v1506 = vld [vmem:[#allocation6 + $0x780] sm:$0xff]
    %v1507 = vld [vmem:[#allocation6 + $0x788] sm:$0xff]
    %v1508 = vld [vmem:[#allocation6 + $0x790] sm:$0xff]
    %v1509 = vld [vmem:[#allocation6 + $0x798] sm:$0xff]
    %v1510 = vld [vmem:[#allocation6 + $0x7a0] sm:$0xff]
    %v1511 = vld [vmem:[#allocation6 + $0x7a8] sm:$0xff]
    %v1512 = vld [vmem:[#allocation6 + $0x7b0] sm:$0xff]
    %v1513 = vld [vmem:[#allocation6 + $0x7b8] sm:$0xff]
    %v1514 = vld [vmem:[#allocation6 + $0x7c0] sm:$0xff]
    %v1515 = vld [vmem:[#allocation6 + $0x7c8] sm:$0xff]
    %v1516 = vld [vmem:[#allocation6 + $0x7d0] sm:$0xff]
    %v1517 = vld [vmem:[#allocation6 + $0x7d8] sm:$0xff]
    %v1518 = vld [vmem:[#allocation6 + $0x7e0] sm:$0xff]
    %v1519 = vld [vmem:[#allocation6 + $0x7e8] sm:$0xff]
    %v1520 = vld [vmem:[#allocation6 + $0x7f0] sm:$0xff]
    %v1521 = vld [vmem:[#allocation6 + $0x7f8] sm:$0xff]
    %v1522 = vld [vmem:[#allocation6 + $0x800] sm:$0xff]
    %v1523 = vld [vmem:[#allocation6 + $0x808] sm:$0xff]
    %v1524 = vld [vmem:[#allocation6 + $0x810] sm:$0xff]
    %v1525 = vld [vmem:[#allocation6 + $0x818] sm:$0xff]
    %v1526 = vld [vmem:[#allocation6 + $0x820] sm:$0xff]
    %v1527 = vld [vmem:[#allocation6 + $0x828] sm:$0xff]
    %v1528 = vld [vmem:[#allocation6 + $0x830] sm:$0xff]
    %v1529 = vld [vmem:[#allocation6 + $0x838] sm:$0xff]
    %v1530 = vld [vmem:[#allocation6 + $0x840] sm:$0xff]
    %v1531 = vld [vmem:[#allocation6 + $0x848] sm:$0xff]
    %v1532 = vld [vmem:[#allocation6 + $0x850] sm:$0xff]
    %v1533 = vld [vmem:[#allocation6 + $0x858] sm:$0xff]
    %v1534 = vld [vmem:[#allocation6 + $0x860] sm:$0xff]
    %v1535 = vld [vmem:[#allocation6 + $0x868] sm:$0xff]
    %v1536 = vld [vmem:[#allocation6 + $0x870] sm:$0xff]
    %v1537 = vld [vmem:[#allocation6 + $0x878] sm:$0xff]
    %v1538 = vld [vmem:[#allocation6 + $0x880] sm:$0xff]
    %v1539 = vld [vmem:[#allocation6 + $0x888] sm:$0xff]
    %v1540 = vld [vmem:[#allocation6 + $0x890] sm:$0xff]
    %v1541 = vld [vmem:[#allocation6 + $0x898] sm:$0xff]
    %v1542 = vld [vmem:[#allocation6 + $0x8a0] sm:$0xff]
    %v1543 = vld [vmem:[#allocation6 + $0x8a8] sm:$0xff]
    %v1544 = vld [vmem:[#allocation6 + $0x8b0] sm:$0xff]
    %v1545 = vld [vmem:[#allocation6 + $0x8b8] sm:$0xff]
    %v1546 = vld [vmem:[#allocation6 + $0x8c0] sm:$0xff]
    %v1547 = vld [vmem:[#allocation6 + $0x8c8] sm:$0xff]
    %v1548 = vld [vmem:[#allocation6 + $0x8d0] sm:$0xff]
    %v1549 = vld [vmem:[#allocation6 + $0x8d8] sm:$0xff]
    %v1550 = vld [vmem:[#allocation6 + $0x8e0] sm:$0xff]
    %v1551 = vld [vmem:[#allocation6 + $0x8e8] sm:$0xff]
    %v1552 = vld [vmem:[#allocation6 + $0x8f0] sm:$0xff]
    %v1553 = vld [vmem:[#allocation6 + $0x8f8] sm:$0xff]
    %v1554 = vld [vmem:[#allocation6 + $0x900] sm:$0xff]
    %v1555 = vld [vmem:[#allocation6 + $0x908] sm:$0xff]
    %v1556 = vld [vmem:[#allocation6 + $0x910] sm:$0xff]
    %v1557 = vld [vmem:[#allocation6 + $0x918] sm:$0xff]
    %v1558 = vld [vmem:[#allocation6 + $0x920] sm:$0xff]
    %v1559 = vld [vmem:[#allocation6 + $0x928] sm:$0xff]
    %v1560 = vld [vmem:[#allocation6 + $0x930] sm:$0xff]
    %v1561 = vld [vmem:[#allocation6 + $0x938] sm:$0xff]
    %v1562 = vld [vmem:[#allocation6 + $0x940] sm:$0xff]
    %v1563 = vld [vmem:[#allocation6 + $0x948] sm:$0xff]
    %v1564 = vld [vmem:[#allocation6 + $0x950] sm:$0xff]
    %v1565 = vld [vmem:[#allocation6 + $0x958] sm:$0xff]
    %v1566 = vld [vmem:[#allocation6 + $0x960] sm:$0xff]
    %v1567 = vld [vmem:[#allocation6 + $0x968] sm:$0xff]
    %v1568 = vld [vmem:[#allocation6 + $0x970] sm:$0xff]
    %v1569 = vld [vmem:[#allocation6 + $0x978] sm:$0xff]
    %v1570 = vld [vmem:[#allocation6 + $0x980] sm:$0xff]
    %v1571 = vld [vmem:[#allocation6 + $0x988] sm:$0xff]
    %v1572 = vld [vmem:[#allocation6 + $0x990] sm:$0xff]
    %v1573 = vld [vmem:[#allocation6 + $0x998] sm:$0xff]
    %v1574 = vld [vmem:[#allocation6 + $0x9a0] sm:$0xff]
    %v1575 = vld [vmem:[#allocation6 + $0x9a8] sm:$0xff]
    %v1576 = vld [vmem:[#allocation6 + $0x9b0] sm:$0xff]
    %v1577 = vld [vmem:[#allocation6 + $0x9b8] sm:$0xff]
    %v1578 = vld [vmem:[#allocation6 + $0x9c0] sm:$0xff]
    %v1579 = vld [vmem:[#allocation6 + $0x9c8] sm:$0xff]
    %v1580 = vld [vmem:[#allocation6 + $0x9d0] sm:$0xff]
    %v1581 = vld [vmem:[#allocation6 + $0x9d8] sm:$0xff]
    %v1582 = vld [vmem:[#allocation6 + $0x9e0] sm:$0xff]
    %v1583 = vld [vmem:[#allocation6 + $0x9e8] sm:$0xff]
    %v1584 = vld [vmem:[#allocation6 + $0x9f0] sm:$0xff]
    %v1585 = vld [vmem:[#allocation6 + $0x9f8] sm:$0xff]
    %v1586 = vld [vmem:[#allocation6 + $0xa00] sm:$0xff]
    %v1587 = vld [vmem:[#allocation6 + $0xa08] sm:$0xff]
    %v1588 = vld [vmem:[#allocation6 + $0xa10] sm:$0xff]
    %v1589 = vld [vmem:[#allocation6 + $0xa18] sm:$0xff]
    %v1590 = vld [vmem:[#allocation6 + $0xa20] sm:$0xff]
    %v1591 = vld [vmem:[#allocation6 + $0xa28] sm:$0xff]
    %v1592 = vld [vmem:[#allocation6 + $0xa30] sm:$0xff]
    %v1593 = vld [vmem:[#allocation6 + $0xa38] sm:$0xff]
    %v1594 = vld [vmem:[#allocation6 + $0xa40] sm:$0xff]
    %v1595 = vld [vmem:[#allocation6 + $0xa48] sm:$0xff]
    %v1596 = vld [vmem:[#allocation6 + $0xa50] sm:$0xff]
    %v1597 = vld [vmem:[#allocation6 + $0xa58] sm:$0xff]
    %v1598 = vld [vmem:[#allocation6 + $0xa60] sm:$0xff]
    %v1599 = vld [vmem:[#allocation6 + $0xa68] sm:$0xff]
    %v1600 = vld [vmem:[#allocation6 + $0xa70] sm:$0xff]
    %v1601 = vld [vmem:[#allocation6 + $0xa78] sm:$0xff]
    %v1602 = vld [vmem:[#allocation6 + $0xa80] sm:$0xff]
    %v1603 = vld [vmem:[#allocation6 + $0xa88] sm:$0xff]
    %v1604 = vld [vmem:[#allocation6 + $0xa90] sm:$0xff]
    %v1605 = vld [vmem:[#allocation6 + $0xa98] sm:$0xff]
    %v1606 = vld [vmem:[#allocation6 + $0xaa0] sm:$0xff]
    %v1607 = vld [vmem:[#allocation6 + $0xaa8] sm:$0xff]
    %v1608 = vld [vmem:[#allocation6 + $0xab0] sm:$0xff]
    %v1609 = vld [vmem:[#allocation6 + $0xab8] sm:$0xff]
    %v1610 = vld [vmem:[#allocation6 + $0xac0] sm:$0xff]
    %v1611 = vld [vmem:[#allocation6 + $0xac8] sm:$0xff]
    %v1612 = vld [vmem:[#allocation6 + $0xad0] sm:$0xff]
    %v1613 = vld [vmem:[#allocation6 + $0xad8] sm:$0xff]
    %v1614 = vld [vmem:[#allocation6 + $0xae0] sm:$0xff]
    %v1615 = vld [vmem:[#allocation6 + $0xae8] sm:$0xff]
    %v1616 = vld [vmem:[#allocation6 + $0xaf0] sm:$0xff]
    %v1617 = vld [vmem:[#allocation6 + $0xaf8] sm:$0xff]
    %v1618 = vld [vmem:[#allocation6 + $0xb00] sm:$0xff]
    %v1619 = vld [vmem:[#allocation6 + $0xb08] sm:$0xff]
    %v1620 = vld [vmem:[#allocation6 + $0xb10] sm:$0xff]
    %v1621 = vld [vmem:[#allocation6 + $0xb18] sm:$0xff]
    %v1622 = vld [vmem:[#allocation6 + $0xb20] sm:$0xff]
    %v1623 = vld [vmem:[#allocation6 + $0xb28] sm:$0xff]
    %v1624 = vld [vmem:[#allocation6 + $0xb30] sm:$0xff]
    %v1625 = vld [vmem:[#allocation6 + $0xb38] sm:$0xff]
    %v1626 = vld [vmem:[#allocation6 + $0xb40] sm:$0xff]
    %v1627 = vld [vmem:[#allocation6 + $0xb48] sm:$0xff]
    %v1628 = vld [vmem:[#allocation6 + $0xb50] sm:$0xff]
    %v1629 = vld [vmem:[#allocation6 + $0xb58] sm:$0xff]
    %v1630 = vld [vmem:[#allocation6 + $0xb60] sm:$0xff]
    %v1631 = vld [vmem:[#allocation6 + $0xb68] sm:$0xff]
    %v1632 = vld [vmem:[#allocation6 + $0xb70] sm:$0xff]
    %v1633 = vld [vmem:[#allocation6 + $0xb78] sm:$0xff]
    %v1634 = vld [vmem:[#allocation6 + $0xb80] sm:$0xff]
    %v1635 = vld [vmem:[#allocation6 + $0xb88] sm:$0xff]
    %v1636 = vld [vmem:[#allocation6 + $0xb90] sm:$0xff]
    %v1637 = vld [vmem:[#allocation6 + $0xb98] sm:$0xff]
    %v1638 = vld [vmem:[#allocation6 + $0xba0] sm:$0xff]
    %v1639 = vld [vmem:[#allocation6 + $0xba8] sm:$0xff]
    %v1640 = vld [vmem:[#allocation6 + $0xbb0] sm:$0xff]
    %v1641 = vld [vmem:[#allocation6 + $0xbb8] sm:$0xff]
    %v1642 = vld [vmem:[#allocation6 + $0xbc0] sm:$0xff]
    %v1643 = vld [vmem:[#allocation6 + $0xbc8] sm:$0xff]
    %v1644 = vld [vmem:[#allocation6 + $0xbd0] sm:$0xff]
    %v1645 = vld [vmem:[#allocation6 + $0xbd8] sm:$0xff]
    %v1646 = vld [vmem:[#allocation6 + $0xbe0] sm:$0xff]
    %v1647 = vld [vmem:[#allocation6 + $0xbe8] sm:$0xff]
    %v1648 = vld [vmem:[#allocation6 + $0xbf0] sm:$0xff]
    %v1649 = vld [vmem:[#allocation6 + $0xbf8] sm:$0xff]
    %v1650 = vld [vmem:[#allocation6 + $0xc00] sm:$0xff]
    %v1651 = vld [vmem:[#allocation6 + $0xc08] sm:$0xff]
    %v1652 = vld [vmem:[#allocation6 + $0xc10] sm:$0xff]
    %v1653 = vld [vmem:[#allocation6 + $0xc18] sm:$0xff]
    %v1654 = vld [vmem:[#allocation6 + $0xc20] sm:$0xff]
    %v1655 = vld [vmem:[#allocation6 + $0xc28] sm:$0xff]
    %v1656 = vld [vmem:[#allocation6 + $0xc30] sm:$0xff]
    %v1657 = vld [vmem:[#allocation6 + $0xc38] sm:$0xff]
    %v1658 = vld [vmem:[#allocation6 + $0xc40] sm:$0xff]
    %v1659 = vld [vmem:[#allocation6 + $0xc48] sm:$0xff]
    %v1660 = vld [vmem:[#allocation6 + $0xc50] sm:$0xff]
    %v1661 = vld [vmem:[#allocation6 + $0xc58] sm:$0xff]
    %v1662 = vld [vmem:[#allocation6 + $0xc60] sm:$0xff]
    %v1663 = vld [vmem:[#allocation6 + $0xc68] sm:$0xff]
    %v1664 = vld [vmem:[#allocation6 + $0xc70] sm:$0xff]
    %v1665 = vld [vmem:[#allocation6 + $0xc78] sm:$0xff]
    %v1666 = vld [vmem:[#allocation6 + $0xc80] sm:$0xff]
    %v1667 = vld [vmem:[#allocation6 + $0xc88] sm:$0xff]
    %v1668 = vld [vmem:[#allocation6 + $0xc90] sm:$0xff]
    %v1669 = vld [vmem:[#allocation6 + $0xc98] sm:$0xff]
    %v1670 = vld [vmem:[#allocation6 + $0xca0] sm:$0xff]
    %v1671 = vld [vmem:[#allocation6 + $0xca8] sm:$0xff]
    %v1672 = vld [vmem:[#allocation6 + $0xcb0] sm:$0xff]
    %v1673 = vld [vmem:[#allocation6 + $0xcb8] sm:$0xff]
    %v1674 = vld [vmem:[#allocation6 + $0xcc0] sm:$0xff]
    %v1675 = vld [vmem:[#allocation6 + $0xcc8] sm:$0xff]
    %v1676 = vld [vmem:[#allocation6 + $0xcd0] sm:$0xff]
    %v1677 = vld [vmem:[#allocation6 + $0xcd8] sm:$0xff]
    %v1678 = vld [vmem:[#allocation6 + $0xce0] sm:$0xff]
    %v1679 = vld [vmem:[#allocation6 + $0xce8] sm:$0xff]
    %v1680 = vld [vmem:[#allocation6 + $0xcf0] sm:$0xff]
    %v1681 = vld [vmem:[#allocation6 + $0xcf8] sm:$0xff]
    %v1682 = vld [vmem:[#allocation6 + $0xd00] sm:$0xff]
    %v1683 = vld [vmem:[#allocation6 + $0xd08] sm:$0xff]
    %v1684 = vld [vmem:[#allocation6 + $0xd10] sm:$0xff]
    %v1685 = vld [vmem:[#allocation6 + $0xd18] sm:$0xff]
    %v1686 = vld [vmem:[#allocation6 + $0xd20] sm:$0xff]
    %v1687 = vld [vmem:[#allocation6 + $0xd28] sm:$0xff]
    %v1688 = vld [vmem:[#allocation6 + $0xd30] sm:$0xff]
    %v1689 = vld [vmem:[#allocation6 + $0xd38] sm:$0xff]
    %v1690 = vld [vmem:[#allocation6 + $0xd40] sm:$0xff]
    %v1691 = vld [vmem:[#allocation6 + $0xd48] sm:$0xff]
    %v1692 = vld [vmem:[#allocation6 + $0xd50] sm:$0xff]
    %v1693 = vld [vmem:[#allocation6 + $0xd58] sm:$0xff]
    %v1694 = vld [vmem:[#allocation6 + $0xd60] sm:$0xff]
    %v1695 = vld [vmem:[#allocation6 + $0xd68] sm:$0xff]
    %v1696 = vld [vmem:[#allocation6 + $0xd70] sm:$0xff]
    %v1697 = vld [vmem:[#allocation6 + $0xd78] sm:$0xff]
    %v1698 = vld [vmem:[#allocation6 + $0xd80] sm:$0xff]
    %v1699 = vld [vmem:[#allocation6 + $0xd88] sm:$0xff]
    %v1700 = vld [vmem:[#allocation6 + $0xd90] sm:$0xff]
    %v1701 = vld [vmem:[#allocation6 + $0xd98] sm:$0xff]
    %v1702 = vld [vmem:[#allocation6 + $0xda0] sm:$0xff]
    %v1703 = vld [vmem:[#allocation6 + $0xda8] sm:$0xff]
    %v1704 = vld [vmem:[#allocation6 + $0xdb0] sm:$0xff]
    %v1705 = vld [vmem:[#allocation6 + $0xdb8] sm:$0xff]
    %v1706 = vld [vmem:[#allocation6 + $0xdc0] sm:$0xff]
    %v1707 = vld [vmem:[#allocation6 + $0xdc8] sm:$0xff]
    %v1708 = vld [vmem:[#allocation6 + $0xdd0] sm:$0xff]
    %v1709 = vld [vmem:[#allocation6 + $0xdd8] sm:$0xff]
    %v1710 = vld [vmem:[#allocation6 + $0xde0] sm:$0xff]
    %v1711 = vld [vmem:[#allocation6 + $0xde8] sm:$0xff]
    %v1712 = vld [vmem:[#allocation6 + $0xdf0] sm:$0xff]
    %v1713 = vld [vmem:[#allocation6 + $0xdf8] sm:$0xff]
    %v1714 = vld [vmem:[#allocation7] sm:$0xff]
    %v1716 = vlaneseq
    %v1717 = vshrl.u32 %v1716, 7
    %v1718 = vsub.s32 0, %v1717
    %v1719 = vrot.slane %v1714, %v1718
    %v1720 = vlaneseq
    %v1721 = vshrl.u32 %v1720, 7
    %v1722 = vsub.s32 1, %v1721
    %v1723 = vrot.slane %v1714, %v1722
    %v1724 = vlaneseq
    %v1725 = vshrl.u32 %v1724, 7
    %v1726 = vsub.s32 2, %v1725
    %v1727 = vrot.slane %v1714, %v1726
    %v1728 = vlaneseq
    %v1729 = vshrl.u32 %v1728, 7
    %v1730 = vsub.s32 3, %v1729
    %v1731 = vrot.slane %v1714, %v1730
    %v1732 = vlaneseq
    %v1733 = vshrl.u32 %v1732, 7
    %v1734 = vsub.s32 4, %v1733
    %v1735 = vrot.slane %v1714, %v1734
    %v1736 = vlaneseq
    %v1737 = vshrl.u32 %v1736, 7
    %v1738 = vsub.s32 5, %v1737
    %v1739 = vrot.slane %v1714, %v1738
    %v1740 = vlaneseq
    %v1741 = vshrl.u32 %v1740, 7
    %v1742 = vsub.s32 6, %v1741
    %v1743 = vrot.slane %v1714, %v1742
    %1751 = vmatprep.subr.bf16.mxu0 %v1267
    %1752 = vmatpush1.bf16.msra.mxu0 %v1266
    %1753 = vmatprep.subr.bf16.mxu0 %v1274
    %1754 = vmatpush1.bf16.msra.mxu0 %v1273
    %1755 = vmatprep.subr.bf16.mxu0 %v1281
    %1756 = vmatpush1.bf16.msra.mxu0 %v1280
    %1757 = vmatprep.subr.bf16.mxu0 %v1288
    %1758 = vmatpush1.bf16.msra.mxu0 %v1287
    %1759 = vmatprep.subr.bf16.mxu0 %v1295
    %1760 = vmatpush1.bf16.msra.mxu0 %v1294
    %1761 = vmatprep.subr.bf16.mxu0 %v1302
    %1762 = vmatpush1.bf16.msra.mxu0 %v1301
    %1763 = vmatprep.subr.bf16.mxu0 %v1309
    %1764 = vmatpush1.bf16.msra.mxu0 %v1308
    %1765 = vmatprep.subr.bf16.mxu0 %v1316
    %1766 = vmatpush1.bf16.msra.mxu0 %v1315
    %1767 = vmatprep.subr.bf16.mxu0 %v1323
    %1768 = vmatpush1.bf16.msra.mxu0 %v1322
    %1769 = vmatprep.subr.bf16.mxu0 %v1330
    %1770 = vmatpush1.bf16.msra.mxu0 %v1329
    %1771 = vmatprep.subr.bf16.mxu0 %v1337
    %1772 = vmatpush1.bf16.msra.mxu0 %v1336
    %1773 = vmatprep.subr.bf16.mxu0 %v1344
    %1774 = vmatpush1.bf16.msra.mxu0 %v1343
    %1775 = vmatprep.subr.bf16.mxu0 %v1351
    %1776 = vmatpush1.bf16.msra.mxu0 %v1350
    %1777 = vmatprep.subr.bf16.mxu0 %v1358
    %1778 = vmatpush1.bf16.msra.mxu0 %v1357
    %1779 = vmatprep.subr.bf16.mxu0 %v1365
    %1780 = vmatpush1.bf16.msra.mxu0 %v1364
    %1781 = vmatprep.subr.bf16.mxu0 %v1372
    %1782 = vmatpush1.bf16.msra.mxu0 %v1371
    %1783 = vmatprep.mubr.bf16.mxu0 %v1252
    %1784 = vmatmul.mubr.bf16.gmra.mrb[0].mxu0 %v1251
    %v1785 = vpop.f32.mrb[0].mxu0
    %v1786 = vadd.f32 %v1719, %v1785
    %v1787 = vpop.f32.mrb[0].mxu0
    %v1788 = vadd.f32 %v1723, %v1787
    %v1789 = vpop.f32.mrb[0].mxu0
    %v1790 = vadd.f32 %v1719, %v1789
    %v1791 = vpop.f32.mrb[0].mxu0
    %v1792 = vadd.f32 %v1723, %v1791
    %1793 = vdwg.mxu0
    %1794 = vmatprep.subr.bf16.mxu0 %v1379
    %1795 = vmatpush1.bf16.msra.mxu0 %v1378
    %1796 = vmatprep.subr.bf16.mxu0 %v1386
    %1797 = vmatpush1.bf16.msra.mxu0 %v1385
    %1798 = vmatprep.subr.bf16.mxu0 %v1393
    %1799 = vmatpush1.bf16.msra.mxu0 %v1392
    %1800 = vmatprep.subr.bf16.mxu0 %v1400
    %1801 = vmatpush1.bf16.msra.mxu0 %v1399
    %1802 = vmatprep.subr.bf16.mxu0 %v1407
    %1803 = vmatpush1.bf16.msra.mxu0 %v1406
    %1804 = vmatprep.subr.bf16.mxu0 %v1414
    %1805 = vmatpush1.bf16.msra.mxu0 %v1413
    %1806 = vmatprep.subr.bf16.mxu0 %v1421
    %1807 = vmatpush1.bf16.msra.mxu0 %v1420
    %1808 = vmatprep.subr.bf16.mxu0 %v1428
    %1809 = vmatpush1.bf16.msra.mxu0 %v1427
    %1810 = vmatprep.subr.bf16.mxu0 %v1435
    %1811 = vmatpush1.bf16.msra.mxu0 %v1434
    %1812 = vmatprep.subr.bf16.mxu0 %v1442
    %1813 = vmatpush1.bf16.msra.mxu0 %v1441
    %1814 = vmatprep.subr.bf16.mxu0 %v1449
    %1815 = vmatpush1.bf16.msra.mxu0 %v1448
    %1816 = vmatprep.subr.bf16.mxu0 %v1456
    %1817 = vmatpush1.bf16.msra.mxu0 %v1455
    %1818 = vmatprep.subr.bf16.mxu0 %v1463
    %1819 = vmatpush1.bf16.msra.mxu0 %v1462
    %1820 = vmatprep.subr.bf16.mxu0 %v1470
    %1821 = vmatpush1.bf16.msra.mxu0 %v1469
    %1822 = vmatprep.subr.bf16.mxu0 %v1477
    %1823 = vmatpush1.bf16.msra.mxu0 %v1476
    %1824 = vmatprep.subr.bf16.mxu0 %v1484
    %1825 = vmatpush1.bf16.msra.mxu0 %v1483
    %1826 = vmatprep.mubr.bf16.mxu0 %v1254
    %1827 = vmatmul.mubr.bf16.gmra.mrb[0].mxu0 %v1253
    %v1828 = vpop.f32.mrb[0].mxu0
    %v1829 = vadd.f32 %v1786, %v1828
    %v1830 = vpop.f32.mrb[0].mxu0
    %v1831 = vadd.f32 %v1788, %v1830
    %v1832 = vpop.f32.mrb[0].mxu0
    %v1833 = vadd.f32 %v1790, %v1832
    %v1834 = vpop.f32.mrb[0].mxu0
    %v1835 = vadd.f32 %v1792, %v1834
    %1836 = vdwg.mxu0
    %1837 = vmatprep.subr.bf16.mxu0 %v1491
    %1838 = vmatpush1.bf16.msra.mxu0 %v1490
    %1839 = vmatprep.subr.bf16.mxu0 %v1498
    %1840 = vmatpush1.bf16.msra.mxu0 %v1497
    %1841 = vmatprep.subr.bf16.mxu0 %v1505
    %1842 = vmatpush1.bf16.msra.mxu0 %v1504
    %1843 = vmatprep.subr.bf16.mxu0 %v1512
    %1844 = vmatpush1.bf16.msra.mxu0 %v1511
    %1845 = vmatprep.subr.bf16.mxu0 %v1519
    %1846 = vmatpush1.bf16.msra.mxu0 %v1518
    %1847 = vmatprep.subr.bf16.mxu0 %v1526
    %1848 = vmatpush1.bf16.msra.mxu0 %v1525
    %1849 = vmatprep.subr.bf16.mxu0 %v1533
    %1850 = vmatpush1.bf16.msra.mxu0 %v1532
    %1851 = vmatprep.subr.bf16.mxu0 %v1540
    %1852 = vmatpush1.bf16.msra.mxu0 %v1539
    %1853 = vmatprep.subr.bf16.mxu0 %v1547
    %1854 = vmatpush1.bf16.msra.mxu0 %v1546
    %1855 = vmatprep.subr.bf16.mxu0 %v1554
    %1856 = vmatpush1.bf16.msra.mxu0 %v1553
    %1857 = vmatprep.subr.bf16.mxu0 %v1561
    %1858 = vmatpush1.bf16.msra.mxu0 %v1560
    %1859 = vmatprep.subr.bf16.mxu0 %v1568
    %1860 = vmatpush1.bf16.msra.mxu0 %v1567
    %1861 = vmatprep.subr.bf16.mxu0 %v1575
    %1862 = vmatpush1.bf16.msra.mxu0 %v1574
    %1863 = vmatprep.subr.bf16.mxu0 %v1582
    %1864 = vmatpush1.bf16.msra.mxu0 %v1581
    %1865 = vmatprep.subr.bf16.mxu0 %v1589
    %1866 = vmatpush1.bf16.msra.mxu0 %v1588
    %1867 = vmatprep.subr.bf16.mxu0 %v1596
    %1868 = vmatpush1.bf16.msra.mxu0 %v1595
    %1869 = vmatprep.mubr.bf16.mxu0 %v1256
    %1870 = vmatmul.mubr.bf16.gmra.mrb[0].mxu0 %v1255
    %v1871 = vpop.f32.mrb[0].mxu0
    %v1872 = vadd.f32 %v1829, %v1871
    %v1873 = vpop.f32.mrb[0].mxu0
    %v1874 = vadd.f32 %v1831, %v1873
    %v1875 = vpop.f32.mrb[0].mxu0
    %v1876 = vadd.f32 %v1833, %v1875
    %v1877 = vpop.f32.mrb[0].mxu0
    %v1878 = vadd.f32 %v1835, %v1877
    %1879 = vdwg.mxu0
    %1880 = vmatprep.subr.bf16.mxu0 %v1603
    %1881 = vmatpush1.bf16.msra.mxu0 %v1602
    %1882 = vmatprep.subr.bf16.mxu0 %v1610
    %1883 = vmatpush1.bf16.msra.mxu0 %v1609
    %1884 = vmatprep.subr.bf16.mxu0 %v1617
    %1885 = vmatpush1.bf16.msra.mxu0 %v1616
    %1886 = vmatprep.subr.bf16.mxu0 %v1624
    %1887 = vmatpush1.bf16.msra.mxu0 %v1623
    %1888 = vmatprep.subr.bf16.mxu0 %v1631
    %1889 = vmatpush1.bf16.msra.mxu0 %v1630
    %1890 = vmatprep.subr.bf16.mxu0 %v1638
    %1891 = vmatpush1.bf16.msra.mxu0 %v1637
    %1892 = vmatprep.subr.bf16.mxu0 %v1645
    %1893 = vmatpush1.bf16.msra.mxu0 %v1644
    %1894 = vmatprep.subr.bf16.mxu0 %v1652
    %1895 = vmatpush1.bf16.msra.mxu0 %v1651
    %1896 = vmatprep.subr.bf16.mxu0 %v1659
    %1897 = vmatpush1.bf16.msra.mxu0 %v1658
    %1898 = vmatprep.subr.bf16.mxu0 %v1666
    %1899 = vmatpush1.bf16.msra.mxu0 %v1665
    %1900 = vmatprep.subr.bf16.mxu0 %v1673
    %1901 = vmatpush1.bf16.msra.mxu0 %v1672
    %1902 = vmatprep.subr.bf16.mxu0 %v1680
    %1903 = vmatpush1.bf16.msra.mxu0 %v1679
    %1904 = vmatprep.subr.bf16.mxu0 %v1687
    %1905 = vmatpush1.bf16.msra.mxu0 %v1686
    %1906 = vmatprep.subr.bf16.mxu0 %v1694
    %1907 = vmatpush1.bf16.msra.mxu0 %v1693
    %1908 = vmatprep.subr.bf16.mxu0 %v1701
    %1909 = vmatpush1.bf16.msra.mxu0 %v1700
    %1910 = vmatprep.subr.bf16.mxu0 %v1708
    %1911 = vmatpush1.bf16.msra.mxu0 %v1707
    %1912 = vmatprep.mubr.bf16.mxu0 %v1258
    %1913 = vmatmul.mubr.bf16.gmra.mrb[0].mxu0 %v1257
    %v1914 = vpop.f32.mrb[0].mxu0
    %v1915 = vadd.f32 %v1872, %v1914
    %v1916 = vpop.f32.mrb[0].mxu0
    %v1917 = vadd.f32 %v1874, %v1916
    %v1918 = vpop.f32.mrb[0].mxu0
    %v1919 = vadd.f32 %v1876, %v1918
    %v1920 = vpop.f32.mrb[0].mxu0
    %v1921 = vadd.f32 %v1878, %v1920
    %1922 = vdwg.mxu0
    %1923 = vmatprep.subr.bf16.mxu0 %v1269
    %1924 = vmatpush1.bf16.msra.mxu0 %v1268
    %1925 = vmatprep.subr.bf16.mxu0 %v1276
    %1926 = vmatpush1.bf16.msra.mxu0 %v1275
    %1927 = vmatprep.subr.bf16.mxu0 %v1283
    %1928 = vmatpush1.bf16.msra.mxu0 %v1282
    %1929 = vmatprep.subr.bf16.mxu0 %v1290
    %1930 = vmatpush1.bf16.msra.mxu0 %v1289
    %1931 = vmatprep.subr.bf16.mxu0 %v1297
    %1932 = vmatpush1.bf16.msra.mxu0 %v1296
    %1933 = vmatprep.subr.bf16.mxu0 %v1304
    %1934 = vmatpush1.bf16.msra.mxu0 %v1303
    %1935 = vmatprep.subr.bf16.mxu0 %v1311
    %1936 = vmatpush1.bf16.msra.mxu0 %v1310
    %1937 = vmatprep.subr.bf16.mxu0 %v1318
    %1938 = vmatpush1.bf16.msra.mxu0 %v1317
    %1939 = vmatprep.subr.bf16.mxu0 %v1325
    %1940 = vmatpush1.bf16.msra.mxu0 %v1324
    %1941 = vmatprep.subr.bf16.mxu0 %v1332
    %1942 = vmatpush1.bf16.msra.mxu0 %v1331
    %1943 = vmatprep.subr.bf16.mxu0 %v1339
    %1944 = vmatpush1.bf16.msra.mxu0 %v1338
    %1945 = vmatprep.subr.bf16.mxu0 %v1346
    %1946 = vmatpush1.bf16.msra.mxu0 %v1345
    %1947 = vmatprep.subr.bf16.mxu0 %v1353
    %1948 = vmatpush1.bf16.msra.mxu0 %v1352
    %1949 = vmatprep.subr.bf16.mxu0 %v1360
    %1950 = vmatpush1.bf16.msra.mxu0 %v1359
    %1951 = vmatprep.subr.bf16.mxu0 %v1367
    %1952 = vmatpush1.bf16.msra.mxu0 %v1366
    %1953 = vmatprep.subr.bf16.mxu0 %v1374
    %1954 = vmatpush1.bf16.msra.mxu0 %v1373
    %1955 = vmatprep.mubr.bf16.mxu0 %v1252
    %1956 = vmatmul.mubr.bf16.gmra.mrb[0].mxu0 %v1251
    %v1957 = vpop.f32.mrb[0].mxu0
    %v1958 = vadd.f32 %v1727, %v1957
    %v1959 = vpop.f32.mrb[0].mxu0
    %v1960 = vadd.f32 %v1731, %v1959
    %v1961 = vpop.f32.mrb[0].mxu0
    %v1962 = vadd.f32 %v1727, %v1961
    %v1963 = vpop.f32.mrb[0].mxu0
    %v1964 = vadd.f32 %v1731, %v1963
    %1965 = vdwg.mxu0
    %1966 = vmatprep.subr.bf16.mxu0 %v1381
    %1967 = vmatpush1.bf16.msra.mxu0 %v1380
    %1968 = vmatprep.subr.bf16.mxu0 %v1388
    %1969 = vmatpush1.bf16.msra.mxu0 %v1387
    %1970 = vmatprep.subr.bf16.mxu0 %v1395
    %1971 = vmatpush1.bf16.msra.mxu0 %v1394
    %1972 = vmatprep.subr.bf16.mxu0 %v1402
    %1973 = vmatpush1.bf16.msra.mxu0 %v1401
    %1974 = vmatprep.subr.bf16.mxu0 %v1409
    %1975 = vmatpush1.bf16.msra.mxu0 %v1408
    %1976 = vmatprep.subr.bf16.mxu0 %v1416
    %1977 = vmatpush1.bf16.msra.mxu0 %v1415
    %1978 = vmatprep.subr.bf16.mxu0 %v1423
    %1979 = vmatpush1.bf16.msra.mxu0 %v1422
    %1980 = vmatprep.subr.bf16.mxu0 %v1430
    %1981 = vmatpush1.bf16.msra.mxu0 %v1429
    %1982 = vmatprep.subr.bf16.mxu0 %v1437
    %1983 = vmatpush1.bf16.msra.mxu0 %v1436
    %1984 = vmatprep.subr.bf16.mxu0 %v1444
    %1985 = vmatpush1.bf16.msra.mxu0 %v1443
    %1986 = vmatprep.subr.bf16.mxu0 %v1451
    %1987 = vmatpush1.bf16.msra.mxu0 %v1450
    %1988 = vmatprep.subr.bf16.mxu0 %v1458
    %1989 = vmatpush1.bf16.msra.mxu0 %v1457
    %1990 = vmatprep.subr.bf16.mxu0 %v1465
    %1991 = vmatpush1.bf16.msra.mxu0 %v1464
    %1992 = vmatprep.subr.bf16.mxu0 %v1472
    %1993 = vmatpush1.bf16.msra.mxu0 %v1471
    %1994 = vmatprep.subr.bf16.mxu0 %v1479
    %1995 = vmatpush1.bf16.msra.mxu0 %v1478
    %1996 = vmatprep.subr.bf16.mxu0 %v1486
    %1997 = vmatpush1.bf16.msra.mxu0 %v1485
    %1998 = vmatprep.mubr.bf16.mxu0 %v1254
    %1999 = vmatmul.mubr.bf16.gmra.mrb[0].mxu0 %v1253
    %v2000 = vpop.f32.mrb[0].mxu0
    %v2001 = vadd.f32 %v1958, %v2000
    %v2002 = vpop.f32.mrb[0].mxu0
    %v2003 = vadd.f32 %v1960, %v2002
    %v2004 = vpop.f32.mrb[0].mxu0
    %v2005 = vadd.f32 %v1962, %v2004
    %v2006 = vpop.f32.mrb[0].mxu0
    %v2007 = vadd.f32 %v1964, %v2006
    %2008 = vdwg.mxu0
    %2009 = vmatprep.subr.bf16.mxu0 %v1493
    %2010 = vmatpush1.bf16.msra.mxu0 %v1492
    %2011 = vmatprep.subr.bf16.mxu0 %v1500
    %2012 = vmatpush1.bf16.msra.mxu0 %v1499
    %2013 = vmatprep.subr.bf16.mxu0 %v1507
    %2014 = vmatpush1.bf16.msra.mxu0 %v1506
    %2015 = vmatprep.subr.bf16.mxu0 %v1514
    %2016 = vmatpush1.bf16.msra.mxu0 %v1513
    %2017 = vmatprep.subr.bf16.mxu0 %v1521
    %2018 = vmatpush1.bf16.msra.mxu0 %v1520
    %2019 = vmatprep.subr.bf16.mxu0 %v1528
    %2020 = vmatpush1.bf16.msra.mxu0 %v1527
    %2021 = vmatprep.subr.bf16.mxu0 %v1535
    %2022 = vmatpush1.bf16.msra.mxu0 %v1534
    %2023 = vmatprep.subr.bf16.mxu0 %v1542
    %2024 = vmatpush1.bf16.msra.mxu0 %v1541
    %2025 = vmatprep.subr.bf16.mxu0 %v1549
    %2026 = vmatpush1.bf16.msra.mxu0 %v1548
    %2027 = vmatprep.subr.bf16.mxu0 %v1556
    %2028 = vmatpush1.bf16.msra.mxu0 %v1555
    %2029 = vmatprep.subr.bf16.mxu0 %v1563
    %2030 = vmatpush1.bf16.msra.mxu0 %v1562
    %2031 = vmatprep.subr.bf16.mxu0 %v1570
    %2032 = vmatpush1.bf16.msra.mxu0 %v1569
    %2033 = vmatprep.subr.bf16.mxu0 %v1577
    %2034 = vmatpush1.bf16.msra.mxu0 %v1576
    %2035 = vmatprep.subr.bf16.mxu0 %v1584
    %2036 = vmatpush1.bf16.msra.mxu0 %v1583
    %2037 = vmatprep.subr.bf16.mxu0 %v1591
    %2038 = vmatpush1.bf16.msra.mxu0 %v1590
    %2039 = vmatprep.subr.bf16.mxu0 %v1598
    %2040 = vmatpush1.bf16.msra.mxu0 %v1597
    %2041 = vmatprep.mubr.bf16.mxu0 %v1256
    %2042 = vmatmul.mubr.bf16.gmra.mrb[0].mxu0 %v1255
    %v2043 = vpop.f32.mrb[0].mxu0
    %v2044 = vadd.f32 %v2001, %v2043
    %v2045 = vpop.f32.mrb[0].mxu0
    %v2046 = vadd.f32 %v2003, %v2045
    %v2047 = vpop.f32.mrb[0].mxu0
    %v2048 = vadd.f32 %v2005, %v2047
    %v2049 = vpop.f32.mrb[0].mxu0
    %v2050 = vadd.f32 %v2007, %v2049
    %2051 = vdwg.mxu0
    %2052 = vmatprep.subr.bf16.mxu0 %v1605
    %2053 = vmatpush1.bf16.msra.mxu0 %v1604
    %2054 = vmatprep.subr.bf16.mxu0 %v1612
    %2055 = vmatpush1.bf16.msra.mxu0 %v1611
    %2056 = vmatprep.subr.bf16.mxu0 %v1619
    %2057 = vmatpush1.bf16.msra.mxu0 %v1618
    %2058 = vmatprep.subr.bf16.mxu0 %v1626
    %2059 = vmatpush1.bf16.msra.mxu0 %v1625
    %2060 = vmatprep.subr.bf16.mxu0 %v1633
    %2061 = vmatpush1.bf16.msra.mxu0 %v1632
    %2062 = vmatprep.subr.bf16.mxu0 %v1640
    %2063 = vmatpush1.bf16.msra.mxu0 %v1639
    %2064 = vmatprep.subr.bf16.mxu0 %v1647
    %2065 = vmatpush1.bf16.msra.mxu0 %v1646
    %2066 = vmatprep.subr.bf16.mxu0 %v1654
    %2067 = vmatpush1.bf16.msra.mxu0 %v1653
    %2068 = vmatprep.subr.bf16.mxu0 %v1661
    %2069 = vmatpush1.bf16.msra.mxu0 %v1660
    %2070 = vmatprep.subr.bf16.mxu0 %v1668
    %2071 = vmatpush1.bf16.msra.mxu0 %v1667
    %2072 = vmatprep.subr.bf16.mxu0 %v1675
    %2073 = vmatpush1.bf16.msra.mxu0 %v1674
    %2074 = vmatprep.subr.bf16.mxu0 %v1682
    %2075 = vmatpush1.bf16.msra.mxu0 %v1681
    %2076 = vmatprep.subr.bf16.mxu0 %v1689
    %2077 = vmatpush1.bf16.msra.mxu0 %v1688
    %2078 = vmatprep.subr.bf16.mxu0 %v1696
    %2079 = vmatpush1.bf16.msra.mxu0 %v1695
    %2080 = vmatprep.subr.bf16.mxu0 %v1703
    %2081 = vmatpush1.bf16.msra.mxu0 %v1702
    %2082 = vmatprep.subr.bf16.mxu0 %v1710
    %2083 = vmatpush1.bf16.msra.mxu0 %v1709
    %2084 = vmatprep.mubr.bf16.mxu0 %v1258
    %2085 = vmatmul.mubr.bf16.gmra.mrb[0].mxu0 %v1257
    %v2086 = vpop.f32.mrb[0].mxu0
    %v2087 = vadd.f32 %v2044, %v2086
    %v2088 = vpop.f32.mrb[0].mxu0
    %v2089 = vadd.f32 %v2046, %v2088
    %v2090 = vpop.f32.mrb[0].mxu0
    %v2091 = vadd.f32 %v2048, %v2090
    %v2092 = vpop.f32.mrb[0].mxu0
    %v2093 = vadd.f32 %v2050, %v2092
    %2094 = vdwg.mxu0
    %2095 = vmatprep.subr.bf16.mxu0 %v1271
    %2096 = vmatpush1.bf16.msra.mxu0 %v1270
    %2097 = vmatprep.subr.bf16.mxu0 %v1278
    %2098 = vmatpush1.bf16.msra.mxu0 %v1277
    %2099 = vmatprep.subr.bf16.mxu0 %v1285
    %2100 = vmatpush1.bf16.msra.mxu0 %v1284
    %2101 = vmatprep.subr.bf16.mxu0 %v1292
    %2102 = vmatpush1.bf16.msra.mxu0 %v1291
    %2103 = vmatprep.subr.bf16.mxu0 %v1299
    %2104 = vmatpush1.bf16.msra.mxu0 %v1298
    %2105 = vmatprep.subr.bf16.mxu0 %v1306
    %2106 = vmatpush1.bf16.msra.mxu0 %v1305
    %2107 = vmatprep.subr.bf16.mxu0 %v1313
    %2108 = vmatpush1.bf16.msra.mxu0 %v1312
    %2109 = vmatprep.subr.bf16.mxu0 %v1320
    %2110 = vmatpush1.bf16.msra.mxu0 %v1319
    %2111 = vmatprep.subr.bf16.mxu0 %v1327
    %2112 = vmatpush1.bf16.msra.mxu0 %v1326
    %2113 = vmatprep.subr.bf16.mxu0 %v1334
    %2114 = vmatpush1.bf16.msra.mxu0 %v1333
    %2115 = vmatprep.subr.bf16.mxu0 %v1341
    %2116 = vmatpush1.bf16.msra.mxu0 %v1340
    %2117 = vmatprep.subr.bf16.mxu0 %v1348
    %2118 = vmatpush1.bf16.msra.mxu0 %v1347
    %2119 = vmatprep.subr.bf16.mxu0 %v1355
    %2120 = vmatpush1.bf16.msra.mxu0 %v1354
    %2121 = vmatprep.subr.bf16.mxu0 %v1362
    %2122 = vmatpush1.bf16.msra.mxu0 %v1361
    %2123 = vmatprep.subr.bf16.mxu0 %v1369
    %2124 = vmatpush1.bf16.msra.mxu0 %v1368
    %2125 = vmatprep.subr.bf16.mxu0 %v1376
    %2126 = vmatpush1.bf16.msra.mxu0 %v1375
    %2127 = vmatprep.mubr.bf16.mxu0 %v1252
    %2128 = vmatmul.mubr.bf16.gmra.mrb[0].mxu0 %v1251
    %v2129 = vpop.f32.mrb[0].mxu0
    %v2130 = vadd.f32 %v1735, %v2129
    %v2131 = vpop.f32.mrb[0].mxu0
    %v2132 = vadd.f32 %v1739, %v2131
    %v2133 = vpop.f32.mrb[0].mxu0
    %v2134 = vadd.f32 %v1735, %v2133
    %v2135 = vpop.f32.mrb[0].mxu0
    %v2136 = vadd.f32 %v1739, %v2135
    %2137 = vdwg.mxu0
    %2138 = vmatprep.subr.bf16.mxu0 %v1383
    %2139 = vmatpush1.bf16.msra.mxu0 %v1382
    %2140 = vmatprep.subr.bf16.mxu0 %v1390
    %2141 = vmatpush1.bf16.msra.mxu0 %v1389
    %2142 = vmatprep.subr.bf16.mxu0 %v1397
    %2143 = vmatpush1.bf16.msra.mxu0 %v1396
    %2144 = vmatprep.subr.bf16.mxu0 %v1404
    %2145 = vmatpush1.bf16.msra.mxu0 %v1403
    %2146 = vmatprep.subr.bf16.mxu0 %v1411
    %2147 = vmatpush1.bf16.msra.mxu0 %v1410
    %2148 = vmatprep.subr.bf16.mxu0 %v1418
    %2149 = vmatpush1.bf16.msra.mxu0 %v1417
    %2150 = vmatprep.subr.bf16.mxu0 %v1425
    %2151 = vmatpush1.bf16.msra.mxu0 %v1424
    %2152 = vmatprep.subr.bf16.mxu0 %v1432
    %2153 = vmatpush1.bf16.msra.mxu0 %v1431
    %2154 = vmatprep.subr.bf16.mxu0 %v1439
    %2155 = vmatpush1.bf16.msra.mxu0 %v1438
    %2156 = vmatprep.subr.bf16.mxu0 %v1446
    %2157 = vmatpush1.bf16.msra.mxu0 %v1445
    %2158 = vmatprep.subr.bf16.mxu0 %v1453
    %2159 = vmatpush1.bf16.msra.mxu0 %v1452
    %2160 = vmatprep.subr.bf16.mxu0 %v1460
    %2161 = vmatpush1.bf16.msra.mxu0 %v1459
    %2162 = vmatprep.subr.bf16.mxu0 %v1467
    %2163 = vmatpush1.bf16.msra.mxu0 %v1466
    %2164 = vmatprep.subr.bf16.mxu0 %v1474
    %2165 = vmatpush1.bf16.msra.mxu0 %v1473
    %2166 = vmatprep.subr.bf16.mxu0 %v1481
    %2167 = vmatpush1.bf16.msra.mxu0 %v1480
    %2168 = vmatprep.subr.bf16.mxu0 %v1488
    %2169 = vmatpush1.bf16.msra.mxu0 %v1487
    %2170 = vmatprep.mubr.bf16.mxu0 %v1254
    %2171 = vmatmul.mubr.bf16.gmra.mrb[0].mxu0 %v1253
    %v2172 = vpop.f32.mrb[0].mxu0
    %v2173 = vadd.f32 %v2130, %v2172
    %v2174 = vpop.f32.mrb[0].mxu0
    %v2175 = vadd.f32 %v2132, %v2174
    %v2176 = vpop.f32.mrb[0].mxu0
    %v2177 = vadd.f32 %v2134, %v2176
    %v2178 = vpop.f32.mrb[0].mxu0
    %v2179 = vadd.f32 %v2136, %v2178
    %2180 = vdwg.mxu0
    %2181 = vmatprep.subr.bf16.mxu0 %v1495
    %2182 = vmatpush1.bf16.msra.mxu0 %v1494
    %2183 = vmatprep.subr.bf16.mxu0 %v1502
    %2184 = vmatpush1.bf16.msra.mxu0 %v1501
    %2185 = vmatprep.subr.bf16.mxu0 %v1509
    %2186 = vmatpush1.bf16.msra.mxu0 %v1508
    %2187 = vmatprep.subr.bf16.mxu0 %v1516
    %2188 = vmatpush1.bf16.msra.mxu0 %v1515
    %2189 = vmatprep.subr.bf16.mxu0 %v1523
    %2190 = vmatpush1.bf16.msra.mxu0 %v1522
    %2191 = vmatprep.subr.bf16.mxu0 %v1530
    %2192 = vmatpush1.bf16.msra.mxu0 %v1529
    %2193 = vmatprep.subr.bf16.mxu0 %v1537
    %2194 = vmatpush1.bf16.msra.mxu0 %v1536
    %2195 = vmatprep.subr.bf16.mxu0 %v1544
    %2196 = vmatpush1.bf16.msra.mxu0 %v1543
    %2197 = vmatprep.subr.bf16.mxu0 %v1551
    %2198 = vmatpush1.bf16.msra.mxu0 %v1550
    %2199 = vmatprep.subr.bf16.mxu0 %v1558
    %2200 = vmatpush1.bf16.msra.mxu0 %v1557
    %2201 = vmatprep.subr.bf16.mxu0 %v1565
    %2202 = vmatpush1.bf16.msra.mxu0 %v1564
    %2203 = vmatprep.subr.bf16.mxu0 %v1572
    %2204 = vmatpush1.bf16.msra.mxu0 %v1571
    %2205 = vmatprep.subr.bf16.mxu0 %v1579
    %2206 = vmatpush1.bf16.msra.mxu0 %v1578
    %2207 = vmatprep.subr.bf16.mxu0 %v1586
    %2208 = vmatpush1.bf16.msra.mxu0 %v1585
    %2209 = vmatprep.subr.bf16.mxu0 %v1593
    %2210 = vmatpush1.bf16.msra.mxu0 %v1592
    %2211 = vmatprep.subr.bf16.mxu0 %v1600
    %2212 = vmatpush1.bf16.msra.mxu0 %v1599
    %2213 = vmatprep.mubr.bf16.mxu0 %v1256
    %2214 = vmatmul.mubr.bf16.gmra.mrb[0].mxu0 %v1255
    %v2215 = vpop.f32.mrb[0].mxu0
    %v2216 = vadd.f32 %v2173, %v2215
    %v2217 = vpop.f32.mrb[0].mxu0
    %v2218 = vadd.f32 %v2175, %v2217
    %v2219 = vpop.f32.mrb[0].mxu0
    %v2220 = vadd.f32 %v2177, %v2219
    %v2221 = vpop.f32.mrb[0].mxu0
    %v2222 = vadd.f32 %v2179, %v2221
    %2223 = vdwg.mxu0
    %2224 = vmatprep.subr.bf16.mxu0 %v1607
    %2225 = vmatpush1.bf16.msra.mxu0 %v1606
    %2226 = vmatprep.subr.bf16.mxu0 %v1614
    %2227 = vmatpush1.bf16.msra.mxu0 %v1613
    %2228 = vmatprep.subr.bf16.mxu0 %v1621
    %2229 = vmatpush1.bf16.msra.mxu0 %v1620
    %2230 = vmatprep.subr.bf16.mxu0 %v1628
    %2231 = vmatpush1.bf16.msra.mxu0 %v1627
    %2232 = vmatprep.subr.bf16.mxu0 %v1635
    %2233 = vmatpush1.bf16.msra.mxu0 %v1634
    %2234 = vmatprep.subr.bf16.mxu0 %v1642
    %2235 = vmatpush1.bf16.msra.mxu0 %v1641
    %2236 = vmatprep.subr.bf16.mxu0 %v1649
    %2237 = vmatpush1.bf16.msra.mxu0 %v1648
    %2238 = vmatprep.subr.bf16.mxu0 %v1656
    %2239 = vmatpush1.bf16.msra.mxu0 %v1655
    %2240 = vmatprep.subr.bf16.mxu0 %v1663
    %2241 = vmatpush1.bf16.msra.mxu0 %v1662
    %2242 = vmatprep.subr.bf16.mxu0 %v1670
    %2243 = vmatpush1.bf16.msra.mxu0 %v1669
    %2244 = vmatprep.subr.bf16.mxu0 %v1677
    %2245 = vmatpush1.bf16.msra.mxu0 %v1676
    %2246 = vmatprep.subr.bf16.mxu0 %v1684
    %2247 = vmatpush1.bf16.msra.mxu0 %v1683
    %2248 = vmatprep.subr.bf16.mxu0 %v1691
    %2249 = vmatpush1.bf16.msra.mxu0 %v1690
    %2250 = vmatprep.subr.bf16.mxu0 %v1698
    %2251 = vmatpush1.bf16.msra.mxu0 %v1697
    %2252 = vmatprep.subr.bf16.mxu0 %v1705
    %2253 = vmatpush1.bf16.msra.mxu0 %v1704
    %2254 = vmatprep.subr.bf16.mxu0 %v1712
    %2255 = vmatpush1.bf16.msra.mxu0 %v1711
    %2256 = vmatprep.mubr.bf16.mxu0 %v1258
    %2257 = vmatmul.mubr.bf16.gmra.mrb[0].mxu0 %v1257
    %v2258 = vpop.f32.mrb[0].mxu0
    %v2259 = vadd.f32 %v2216, %v2258
    %v2260 = vpop.f32.mrb[0].mxu0
    %v2261 = vadd.f32 %v2218, %v2260
    %v2262 = vpop.f32.mrb[0].mxu0
    %v2263 = vadd.f32 %v2220, %v2262
    %v2264 = vpop.f32.mrb[0].mxu0
    %v2265 = vadd.f32 %v2222, %v2264
    %2266 = vdwg.mxu0
    %2267 = vmatprep.subr.bf16.mxu0 0
    %2268 = vmatpush1.bf16.msra.mxu0 %v1272
    %2269 = vmatprep.subr.bf16.mxu0 0
    %2270 = vmatpush1.bf16.msra.mxu0 %v1279
    %2271 = vmatprep.subr.bf16.mxu0 0
    %2272 = vmatpush1.bf16.msra.mxu0 %v1286
    %2273 = vmatprep.subr.bf16.mxu0 0
    %2274 = vmatpush1.bf16.msra.mxu0 %v1293
    %2275 = vmatprep.subr.bf16.mxu0 0
    %2276 = vmatpush1.bf16.msra.mxu0 %v1300
    %2277 = vmatprep.subr.bf16.mxu0 0
    %2278 = vmatpush1.bf16.msra.mxu0 %v1307
    %2279 = vmatprep.subr.bf16.mxu0 0
    %2280 = vmatpush1.bf16.msra.mxu0 %v1314
    %2281 = vmatprep.subr.bf16.mxu0 0
    %2282 = vmatpush1.bf16.msra.mxu0 %v1321
    %2283 = vmatprep.subr.bf16.mxu0 0
    %2284 = vmatpush1.bf16.msra.mxu0 %v1328
    %2285 = vmatprep.subr.bf16.mxu0 0
    %2286 = vmatpush1.bf16.msra.mxu0 %v1335
    %2287 = vmatprep.subr.bf16.mxu0 0
    %2288 = vmatpush1.bf16.msra.mxu0 %v1342
    %2289 = vmatprep.subr.bf16.mxu0 0
    %2290 = vmatpush1.bf16.msra.mxu0 %v1349
    %2291 = vmatprep.subr.bf16.mxu0 0
    %2292 = vmatpush1.bf16.msra.mxu0 %v1356
    %2293 = vmatprep.subr.bf16.mxu0 0
    %2294 = vmatpush1.bf16.msra.mxu0 %v1363
    %2295 = vmatprep.subr.bf16.mxu0 0
    %2296 = vmatpush1.bf16.msra.mxu0 %v1370
    %2297 = vmatprep.subr.bf16.mxu0 0
    %2298 = vmatpush1.bf16.msra.mxu0 %v1377
    %2299 = vmatprep.mubr.bf16.mxu0 %v1252
    %2300 = vmatmul.mubr.bf16.gmra.mrb[0].mxu0 %v1251
    %v2301 = vpop.f32.mrb[0].mxu0
    %v2302 = vadd.f32 %v1743, %v2301
    %v2303 = vpop.f32.mrb[0].mxu0
    %v2304 = vpop.f32.mrb[0].mxu0
    %v2305 = vadd.f32 %v1743, %v2304
    %v2306 = vpop.f32.mrb[0].mxu0
    %2307 = vdwg.mxu0
    %2308 = vmatprep.subr.bf16.mxu0 0
    %2309 = vmatpush1.bf16.msra.mxu0 %v1384
    %2310 = vmatprep.subr.bf16.mxu0 0
    %2311 = vmatpush1.bf16.msra.mxu0 %v1391
    %2312 = vmatprep.subr.bf16.mxu0 0
    %2313 = vmatpush1.bf16.msra.mxu0 %v1398
    %2314 = vmatprep.subr.bf16.mxu0 0
    %2315 = vmatpush1.bf16.msra.mxu0 %v1405
    %2316 = vmatprep.subr.bf16.mxu0 0
    %2317 = vmatpush1.bf16.msra.mxu0 %v1412
    %2318 = vmatprep.subr.bf16.mxu0 0
    %2319 = vmatpush1.bf16.msra.mxu0 %v1419
    %2320 = vmatprep.subr.bf16.mxu0 0
    %2321 = vmatpush1.bf16.msra.mxu0 %v1426
    %2322 = vmatprep.subr.bf16.mxu0 0
    %2323 = vmatpush1.bf16.msra.mxu0 %v1433
    %2324 = vmatprep.subr.bf16.mxu0 0
    %2325 = vmatpush1.bf16.msra.mxu0 %v1440
    %2326 = vmatprep.subr.bf16.mxu0 0
    %2327 = vmatpush1.bf16.msra.mxu0 %v1447
    %2328 = vmatprep.subr.bf16.mxu0 0
    %2329 = vmatpush1.bf16.msra.mxu0 %v1454
    %2330 = vmatprep.subr.bf16.mxu0 0
    %2331 = vmatpush1.bf16.msra.mxu0 %v1461
    %2332 = vmatprep.subr.bf16.mxu0 0
    %2333 = vmatpush1.bf16.msra.mxu0 %v1468
    %2334 = vmatprep.subr.bf16.mxu0 0
    %2335 = vmatpush1.bf16.msra.mxu0 %v1475
    %2336 = vmatprep.subr.bf16.mxu0 0
    %2337 = vmatpush1.bf16.msra.mxu0 %v1482
    %2338 = vmatprep.subr.bf16.mxu0 0
    %2339 = vmatpush1.bf16.msra.mxu0 %v1489
    %2340 = vmatprep.mubr.bf16.mxu0 %v1254
    %2341 = vmatmul.mubr.bf16.gmra.mrb[0].mxu0 %v1253
    %v2342 = vpop.f32.mrb[0].mxu0
    %v2343 = vadd.f32 %v2302, %v2342
    %v2344 = vpop.f32.mrb[0].mxu0
    %v2345 = vpop.f32.mrb[0].mxu0
    %v2346 = vadd.f32 %v2305, %v2345
    %v2347 = vpop.f32.mrb[0].mxu0
    %2348 = vdwg.mxu0
    %2349 = vmatprep.subr.bf16.mxu0 0
    %2350 = vmatpush1.bf16.msra.mxu0 %v1496
    %2351 = vmatprep.subr.bf16.mxu0 0
    %2352 = vmatpush1.bf16.msra.mxu0 %v1503
    %2353 = vmatprep.subr.bf16.mxu0 0
    %2354 = vmatpush1.bf16.msra.mxu0 %v1510
    %2355 = vmatprep.subr.bf16.mxu0 0
    %2356 = vmatpush1.bf16.msra.mxu0 %v1517
    %2357 = vmatprep.subr.bf16.mxu0 0
    %2358 = vmatpush1.bf16.msra.mxu0 %v1524
    %2359 = vmatprep.subr.bf16.mxu0 0
    %2360 = vmatpush1.bf16.msra.mxu0 %v1531
    %2361 = vmatprep.subr.bf16.mxu0 0
    %2362 = vmatpush1.bf16.msra.mxu0 %v1538
    %2363 = vmatprep.subr.bf16.mxu0 0
    %2364 = vmatpush1.bf16.msra.mxu0 %v1545
    %2365 = vmatprep.subr.bf16.mxu0 0
    %2366 = vmatpush1.bf16.msra.mxu0 %v1552
    %2367 = vmatprep.subr.bf16.mxu0 0
    %2368 = vmatpush1.bf16.msra.mxu0 %v1559
    %2369 = vmatprep.subr.bf16.mxu0 0
    %2370 = vmatpush1.bf16.msra.mxu0 %v1566
    %2371 = vmatprep.subr.bf16.mxu0 0
    %2372 = vmatpush1.bf16.msra.mxu0 %v1573
    %2373 = vmatprep.subr.bf16.mxu0 0
    %2374 = vmatpush1.bf16.msra.mxu0 %v1580
    %2375 = vmatprep.subr.bf16.mxu0 0
    %2376 = vmatpush1.bf16.msra.mxu0 %v1587
    %2377 = vmatprep.subr.bf16.mxu0 0
    %2378 = vmatpush1.bf16.msra.mxu0 %v1594
    %2379 = vmatprep.subr.bf16.mxu0 0
    %2380 = vmatpush1.bf16.msra.mxu0 %v1601
    %2381 = vmatprep.mubr.bf16.mxu0 %v1256
    %2382 = vmatmul.mubr.bf16.gmra.mrb[0].mxu0 %v1255
    %v2383 = vpop.f32.mrb[0].mxu0
    %v2384 = vadd.f32 %v2343, %v2383
    %v2385 = vpop.f32.mrb[0].mxu0
    %v2386 = vpop.f32.mrb[0].mxu0
    %v2387 = vadd.f32 %v2346, %v2386
    %v2388 = vpop.f32.mrb[0].mxu0
    %2389 = vdwg.mxu0
    %2390 = vmatprep.subr.bf16.mxu0 0
    %2391 = vmatpush1.bf16.msra.mxu0 %v1608
    %2392 = vmatprep.subr.bf16.mxu0 0
    %2393 = vmatpush1.bf16.msra.mxu0 %v1615
    %2394 = vmatprep.subr.bf16.mxu0 0
    %2395 = vmatpush1.bf16.msra.mxu0 %v1622
    %2396 = vmatprep.subr.bf16.mxu0 0
    %2397 = vmatpush1.bf16.msra.mxu0 %v1629
    %2398 = vmatprep.subr.bf16.mxu0 0
    %2399 = vmatpush1.bf16.msra.mxu0 %v1636
    %2400 = vmatprep.subr.bf16.mxu0 0
    %2401 = vmatpush1.bf16.msra.mxu0 %v1643
    %2402 = vmatprep.subr.bf16.mxu0 0
    %2403 = vmatpush1.bf16.msra.mxu0 %v1650
    %2404 = vmatprep.subr.bf16.mxu0 0
    %2405 = vmatpush1.bf16.msra.mxu0 %v1657
    %2406 = vmatprep.subr.bf16.mxu0 0
    %2407 = vmatpush1.bf16.msra.mxu0 %v1664
    %2408 = vmatprep.subr.bf16.mxu0 0
    %2409 = vmatpush1.bf16.msra.mxu0 %v1671
    %2410 = vmatprep.subr.bf16.mxu0 0
    %2411 = vmatpush1.bf16.msra.mxu0 %v1678
    %2412 = vmatprep.subr.bf16.mxu0 0
    %2413 = vmatpush1.bf16.msra.mxu0 %v1685
    %2414 = vmatprep.subr.bf16.mxu0 0
    %2415 = vmatpush1.bf16.msra.mxu0 %v1692
    %2416 = vmatprep.subr.bf16.mxu0 0
    %2417 = vmatpush1.bf16.msra.mxu0 %v1699
    %2418 = vmatprep.subr.bf16.mxu0 0
    %2419 = vmatpush1.bf16.msra.mxu0 %v1706
    %2420 = vmatprep.subr.bf16.mxu0 0
    %2421 = vmatpush1.bf16.msra.mxu0 %v1713
    %2422 = vmatprep.mubr.bf16.mxu0 %v1258
    %2423 = vmatmul.mubr.bf16.gmra.mrb[0].mxu0 %v1257
    %v2424 = vpop.f32.mrb[0].mxu0
    %v2425 = vadd.f32 %v2384, %v2424
    %v2426 = vpop.f32.mrb[0].mxu0
    %v2427 = vpop.f32.mrb[0].mxu0
    %v2428 = vadd.f32 %v2387, %v2427
    %v2429 = vpop.f32.mrb[0].mxu0
    %2430 = vdwg.mxu0
    %v2431 = vtanh.pop %v1915
    %v2432 = vtanh.pop %v1917
    %v2433 = vtanh.pop %v2087
    %v2434 = vtanh.pop %v2089
    %v2435 = vtanh.pop %v2259
    %v2436 = vtanh.pop %v2261
    %v2437 = vtanh.pop %v2425
    %v2438 = vtanh.pop %v1919
    %v2439 = vtanh.pop %v1921
    %v2440 = vtanh.pop %v2091
    %v2441 = vtanh.pop %v2093
    %v2442 = vtanh.pop %v2263
    %v2443 = vtanh.pop %v2265
    %v2444 = vtanh.pop %v2428
    %v2445 = vpack.c.bf16 %v2438, %v2431
    %v2446 = vpack.c.bf16 %v2439, %v2432
    %v2447 = vpack.c.bf16 %v2440, %v2433
    %v2448 = vpack.c.bf16 %v2441, %v2434
    %v2449 = vpack.c.bf16 %v2442, %v2435
    %v2450 = vpack.c.bf16 %v2443, %v2436
    %v2451 = vpack.c.bf16 %v2444, %v2437
    %v2459 = vunpack.c.l.b16 %v2445
    %v2460 = vunpack.c.l.b16 %v2446
    %v2461 = vunpack.c.l.b16 %v2447
    %v2462 = vunpack.c.l.b16 %v2448
    %v2463 = vunpack.c.l.b16 %v2449
    %v2464 = vunpack.c.l.b16 %v2450
    %v2465 = vunpack.c.l.b16 %v2451
    %v2466 = vunpack.c.h.b16 %v2445
    %v2467 = vunpack.c.h.b16 %v2446
    %v2468 = vunpack.c.h.b16 %v2447
    %v2469 = vunpack.c.h.b16 %v2448
    %v2470 = vunpack.c.h.b16 %v2449
    %v2471 = vunpack.c.h.b16 %v2450
    %v2472 = vunpack.c.h.b16 %v2451
    %v2473 = vpack.c.b16 %v2460, %v2459
    %v2474 = vpack.c.b16 %v2462, %v2461
    %v2475 = vpack.c.b16 %v2464, %v2463
    %v2476 = vpack.c.b16 %v2465, %v2465
    %v2477 = vpack.c.b16 %v2467, %v2466
    %v2478 = vpack.c.b16 %v2469, %v2468
    %v2479 = vpack.c.b16 %v2471, %v2470
    %v2480 = vpack.c.b16 %v2472, %v2472
    %2489 = vst [vmem:[#allocation15] sm:$0xff] %v2473
    %2490 = vst [vmem:[#allocation15 + $0x8] sm:$0xff] %v2474
    %2491 = vst [vmem:[#allocation15 + $0x10] sm:$0xff] %v2475
    %2492 = vst [vmem:[#allocation15 + $0x18] sm:$0xf] %v2476
    %2493 = vst [vmem:[#allocation15 + $0x1c] sm:$0xff] %v2477
    %2494 = vst [vmem:[#allocation15 + $0x24] sm:$0xff] %v2478
    %2495 = vst [vmem:[#allocation15 + $0x2c] sm:$0xff] %v2479
    %2496 = vst [vmem:[#allocation15 + $0x34] sm:$0xf] %v2480
    // Predicated region
    $region38: #{_generator_padded.1} parent=1 // pred_check
      _
    $region39: #{_generator_padded.1} parent=1 // pred_check_branch
      %2498 = sbr.rel (0) target = $region41
    $region40: #{_generator_padded.1} parent=1 // pred_region
      %s2500 = ssub.s32 896, 896
      %2501 = vsyncadd [#allocation11], %s2500
      %s2502 = sshll.u32 [#allocation15], 4
      %s2503 = int_to_ptr.vmem [resolvable:$true] %s2502
      %2508 = dma.vmem_to_hbm [thread:$0]  %s2503, 896, %s9, [#allocation11], 448, 448, 28
    $region41: #{_generator_padded.1} parent=1 // pred_fallthru
      _
    // Predicated region
    $region42: #{_generator_padded.1} parent=1 // pred_check
      _
    $region43: #{_generator_padded.1} parent=1 // pred_check_branch
      %2510 = sbr.rel (0) target = $region45
    $region44: #{_generator_padded.1} parent=1 // pred_region
      %2511 = dma.done [#allocation11], 896
    $region45: #{_generator_padded.1} parent=1 // pred_fallthru
      _
    %2512 = vsyncpa [#allocation10], 1
    %2513 = vsyncpa [#allocation13], 1
    %2514 = vsyncpa [#allocation11], 1
  %2515 = vsyncmov [#allocation8]
  %s2516 = vpop.sfrf %2515
  %p2517 = scmp.eq.s32.totalorder %s2516, 0
  %p2518 = pneg %p2517
  %2520 = shalt.err (%p2518)
  %s2521 = scalar_lea.sflag [#allocation8], 1
  %2522 = vsyncmov %s2521
  %s2523 = vpop.sfrf %2522
  %p2524 = scmp.eq.s32.totalorder %s2523, 0
  %p2525 = pneg %p2524
  %2527 = shalt.err (%p2525)
  %s2528 = scalar_lea.sflag [#allocation8], 2
  %2529 = vsyncmov %s2528
  %s2530 = vpop.sfrf %2529
  %p2531 = scmp.eq.s32.totalorder %s2530, 0
  %p2532 = pneg %p2531
  %2534 = shalt.err (%p2532)
  %s2535 = scalar_lea.sflag [#allocation8], 3
  %2536 = vsyncmov %s2535
  %s2537 = vpop.sfrf %2536
  %p2538 = scmp.eq.s32.totalorder %s2537, 0
  %p2539 = pneg %p2538
  %2541 = shalt.err (%p2539)
  %s2542 = scalar_lea.sflag [#allocation8], 4
  %2543 = vsyncmov %s2542
  %s2544 = vpop.sfrf %2543
  %p2545 = scmp.eq.s32.totalorder %s2544, 0
  %p2546 = pneg %p2545
  %2548 = shalt.err (%p2546)
  %s2549 = scalar_lea.sflag [#allocation8], 5
  %2550 = vsyncmov %s2549
  %s2551 = vpop.sfrf %2550
  %p2552 = scmp.eq.s32.totalorder %s2551, 0
  %p2553 = pneg %p2552
  %2555 = shalt.err (%p2553)

</llo_original>
